<compile_context>
chip_gen: v7x
topology: tpu7x:2x2x1
jax: 0.10.0
libtpu: 0.0.40
codegen_flags: <defaults>
</compile_context>

<pallas_src>
import functools

import jax
import jax.numpy as jnp
from jax.experimental import pallas as pl
from jax.experimental.pallas import tpu as pltpu

H = 100            # PyTorch hidden size
HP = 128           # padded hidden size (lane-aligned)
OUT_P = 128        # padded output lanes for the Linear head
GATE_PERM = (0, 1, 3, 2)   # PyTorch (i, f, g, o) -> kernel (i, f, o, g); self-inverse


def _naplstm_kernel(x_ref, wih1_ref, whh1_ref, b1_ref,
                    w2_ref, b2_ref, wout_ref, bout_ref,
                    out_ref,
                    xw1_ref):
    T = x_ref.shape[0]
    B = x_ref.shape[1]

    # ------------------------------------------------------------------
    # Off-critical-path precompute: layer-1 input projection + bias for
    # all time steps (independent of the recurrence, fully overlappable).
    # ------------------------------------------------------------------
    wih1 = wih1_ref[...]                                   # (D_in, 4*HP)
    b1b = jnp.broadcast_to(b1_ref[...], (B, 4 * HP))       # hoisted broadcast
    for t in range(T):                                     # static unroll
        xw1_ref[t] = (jnp.dot(x_ref[t], wih1,
                              preferred_element_type=jnp.float32) + b1b)

    # Hoist loop-invariant weights / broadcasts.
    whh1 = whh1_ref[...]                                   # (HP,   4*HP)
    w2 = w2_ref[...]                                       # (2*HP, 4*HP)
    b2b = jnp.broadcast_to(b2_ref[...], (B, 4 * HP))       # hoisted broadcast

    def cell_tail(gates, c):
        # Gate layout: [i | f | o | g], each HP lanes (128-aligned slices).
        act = jax.nn.sigmoid(gates[:, :3 * HP])            # one EUP sigmoid pass
        i = act[:, 0 * HP:1 * HP]
        f = act[:, 1 * HP:2 * HP]
        o = act[:, 2 * HP:3 * HP]
        g = jnp.tanh(gates[:, 3 * HP:])                    # one EUP tanh pass
        c_new = f * c + i * g
        h_new = o * jnp.tanh(c_new)
        return h_new, c_new

    # ------------------------------------------------------------------
    # Recurrence: state lives in vregs, time loop fully unrolled (T static).
    # ------------------------------------------------------------------
    zeros = jnp.zeros((B, HP), jnp.float32)
    h1, c1, h2, c2 = zeros, zeros, zeros, zeros
    for t in range(T):
        # Layer 1: only the recurrent matmul sits on the dependence chain.
        gates1 = xw1_ref[t] + jnp.dot(h1, whh1,
                                      preferred_element_type=jnp.float32)
        h1, c1 = cell_tail(gates1, c1)

        # Layer 2: single fused K=256 GEMM over [h1_new | h2].
        gates2 = jnp.dot(jnp.concatenate([h1, h2], axis=1), w2,
                         preferred_element_type=jnp.float32) + b2b
        h2, c2 = cell_tail(gates2, c2)

    # Last-step hidden of layer 2 -> Linear head (lane-dense 128-wide store).
    out_ref[...] = (jnp.dot(h2, wout_ref[...],
                            preferred_element_type=jnp.float32)
                    + bout_ref[...])


def nap_lstm_forward(x, params, out_size):
    """x: (B, T, D_in) float32. Returns (B, out_size) float32."""
    x = x.astype(jnp.float32)
    B, T, D_in = x.shape
    Bp = max(8, ((B + 7) // 8) * 8)                        # pad batch to sublanes

    x_tm = jnp.swapaxes(x, 0, 1)                           # (T, B, D_in)
    if Bp != B:
        x_tm = jnp.pad(x_tm, ((0, 0), (0, Bp - B), (0, 0)))

    vmem = pl.BlockSpec(memory_space=pltpu.MemorySpace.VMEM)
    kernel = pl.pallas_call(
        _naplstm_kernel,
        out_shape=jax.ShapeDtypeStruct((Bp, OUT_P), jnp.float32),
        in_specs=[vmem] * 8,
        out_specs=vmem,
        scratch_shapes=[pltpu.VMEM((T, Bp, 4 * HP), jnp.float32)],  # xW1 + b1
    )
    out_p = kernel(x_tm,
                   params["wih1_p"], params["whh1_p"], params["b1_p"],
                   params["w2_p"], params["b2_p"],
                   params["wout_p"], params["bout_p"])
    return out_p[:B, :out_size]


# ----------------------------------------------------------------------------
# Parameter construction (deterministic, PyTorch-shaped) + padding/reordering.
# ----------------------------------------------------------------------------
def _pad_gates_cols(w_t):
    """(in_dim, 4*H) in (i,f,g,o) order -> (in_dim, 4*HP) in (i,f,o,g) order,
    each gate block zero-padded H->HP along lanes."""
    in_dim = w_t.shape[0]
    w4 = w_t.reshape(in_dim, 4, H)
    w4 = w4[:, jnp.array(GATE_PERM), :]
    w4 = jnp.pad(w4, ((0, 0), (0, 0), (0, HP - H)))
    return w4.reshape(in_dim, 4 * HP)


def _pad_rows(w, rows_to):
    return jnp.pad(w, ((0, rows_to - w.shape[0]), (0, 0)))


def make_params(key, input_size, output_size):
    k = jax.random.split(key, 10)
    s = 1.0 / jnp.sqrt(float(H))
    u = lambda kk, shape: jax.random.uniform(kk, shape, jnp.float32, -s, s)

    # PyTorch-layout raw params (gate order i, f, g, o).
    raw = dict(
        wih1=u(k[0], (4 * H, input_size)), whh1=u(k[1], (4 * H, H)),
        bih1=u(k[2], (4 * H,)),            bhh1=u(k[3], (4 * H,)),
        wih2=u(k[4], (4 * H, H)),          whh2=u(k[5], (4 * H, H)),
        bih2=u(k[6], (4 * H,)),            bhh2=u(k[7], (4 * H,)),
        wout=u(k[8], (output_size, H)),    bout=u(k[9], (output_size,)),
    )

    wih2_p = _pad_rows(_pad_gates_cols(raw["wih2"].T), HP)        # (HP, 4*HP)
    whh2_p = _pad_rows(_pad_gates_cols(raw["whh2"].T), HP)        # (HP, 4*HP)

    wout_p = _pad_rows(raw["wout"].T, HP)                          # (HP, out)
    wout_p = jnp.pad(wout_p, ((0, 0), (0, OUT_P - output_size)))   # (HP, OUT_P)
    bout_p = jnp.pad(raw["bout"], (0, OUT_P - output_size))[None]  # (1, OUT_P)

    padded = dict(
        wih1_p=_pad_gates_cols(raw["wih1"].T),                      # (D_in, 4*HP)
        whh1_p=_pad_rows(_pad_gates_cols(raw["whh1"].T), HP),       # (HP,   4*HP)
        b1_p=_pad_gates_cols((raw["bih1"] + raw["bhh1"])[None, :]), # (1,    4*HP)
        w2_p=jnp.concatenate([wih2_p, whh2_p], axis=0),             # (2*HP, 4*HP)
        b2_p=_pad_gates_cols((raw["bih2"] + raw["bhh2"])[None, :]), # (1,    4*HP)
        wout_p=wout_p,                                              # (HP, OUT_P)
        bout_p=bout_p,                                              # (1,  OUT_P)
    )
    return raw, padded


# ----------------------------------------------------------------------------
# Pure-JAX reference (un-padded, mirrors torch.nn.LSTM batch_first forward).
# ----------------------------------------------------------------------------
def _lstm_ref(x, wih, whh, bih, bhh):
    B = x.shape[0]

    def step(carry, x_t):
        h, c = carry
        gates = x_t @ wih.T + bih + h @ whh.T + bhh
        i = jax.nn.sigmoid(gates[:, :H])
        f = jax.nn.sigmoid(gates[:, H:2 * H])
        g = jnp.tanh(gates[:, 2 * H:3 * H])
        o = jax.nn.sigmoid(gates[:, 3 * H:])
        c = f * c + i * g
        h = o * jnp.tanh(c)
        return (h, c), h

    init = (jnp.zeros((B, H), jnp.float32), jnp.zeros((B, H), jnp.float32))
    _, hs = jax.lax.scan(step, init, jnp.swapaxes(x, 0, 1))
    return jnp.swapaxes(hs, 0, 1)


def nap_lstm_ref(x, raw):
    x = x.astype(jnp.float32)
    h1 = _lstm_ref(x, raw["wih1"], raw["whh1"], raw["bih1"], raw["bhh1"])
    h2 = _lstm_ref(h1, raw["wih2"], raw["whh2"], raw["bih2"], raw["bhh2"])
    last = h2[:, -1]
    return last @ raw["wout"].T + raw["bout"]


if __name__ == "__main__":
    B, T, D_in, OUT = 2, 8, 16, 10
    key = jax.random.PRNGKey(0)
    kx, kp = jax.random.split(key)

    x = jax.random.normal(kx, (B, T, D_in), jnp.float32)
    raw, padded = make_params(kp, D_in, OUT)

    fwd = jax.jit(functools.partial(nap_lstm_forward, params=padded, out_size=OUT))
    out = jax.block_until_ready(fwd(x))

    ref = nap_lstm_ref(x, raw)
    assert out.shape == (B, OUT), out.shape
    assert jnp.allclose(out, ref, rtol=1e-5, atol=1e-5), \
        float(jnp.max(jnp.abs(out - ref)))

    print("KERNEL_OK")
</pallas_src>

<mosaic_0001>
module attributes {stable_mosaic.version = 11 : i64} {
  func.func @_naplstm_kernel(%arg0: memref<8x8x16xf32, #tpu.memory_space<vmem>>, %arg1: memref<16x512xf32, #tpu.memory_space<vmem>>, %arg2: memref<128x512xf32, #tpu.memory_space<vmem>>, %arg3: memref<1x512xf32, #tpu.memory_space<vmem>>, %arg4: memref<256x512xf32, #tpu.memory_space<vmem>>, %arg5: memref<1x512xf32, #tpu.memory_space<vmem>>, %arg6: memref<128x128xf32, #tpu.memory_space<vmem>>, %arg7: memref<1x128xf32, #tpu.memory_space<vmem>>, %arg8: memref<8x128xf32, #tpu.memory_space<vmem>>, %arg9: memref<8x8x512xf32, #tpu.memory_space<vmem>>) attributes {dimension_semantics = [], scalar_prefetch = 0 : i64, scratch_operands = 1 : i64, tpu.core_type = #tpu.core_type<tc>} {
    %c0 = arith.constant 0 : index
    %c0_0 = arith.constant 0 : index
    %0 = vector.load %arg1[%c0, %c0_0] : memref<16x512xf32, #tpu.memory_space<vmem>>, vector<16x512xf32>
    %c0_1 = arith.constant 0 : index
    %c0_2 = arith.constant 0 : index
    %1 = vector.load %arg3[%c0_1, %c0_2] : memref<1x512xf32, #tpu.memory_space<vmem>>, vector<1x512xf32>
    %2 = vector.shape_cast %1 : vector<1x512xf32> to vector<1x512xf32>
    %3 = vector.broadcast %2 : vector<1x512xf32> to vector<8x512xf32>
    %c0_3 = arith.constant 0 : index
    %c0_4 = arith.constant 0 : index
    %c0_5 = arith.constant 0 : index
    %4 = vector.load %arg0[%c0_3, %c0_4, %c0_5] : memref<8x8x16xf32, #tpu.memory_space<vmem>>, vector<1x8x16xf32>
    %5 = vector.shape_cast %4 : vector<1x8x16xf32> to vector<8x16xf32>
    %cst = arith.constant dense<0.000000e+00> : vector<8x512xf32>
    %6 = tpu.matmul %5, %0, %cst {dimension_numbers = #tpu.dot_dimension_numbers<[1], [0], [0], [1], [0, 0, 1, 1], [], []>} : vector<8x16xf32>, vector<16x512xf32>, vector<8x512xf32> -> vector<8x512xf32>
    %7 = arith.addf %6, %3 : vector<8x512xf32>
    %c0_6 = arith.constant 0 : index
    %c0_7 = arith.constant 0 : index
    %c0_8 = arith.constant 0 : index
    %8 = vector.load %arg9[%c0_6, %c0_7, %c0_8] : memref<8x8x512xf32, #tpu.memory_space<vmem>>, vector<1x8x512xf32>
    %9 = vector.shape_cast %8 : vector<1x8x512xf32> to vector<8x512xf32>
    %10 = vector.shape_cast %7 : vector<8x512xf32> to vector<1x8x512xf32>
    tpu.vector_store %arg9[%c0_6, %c0_7, %c0_8], %10 {strides = array<i32>} : memref<8x8x512xf32, #tpu.memory_space<vmem>>, vector<1x8x512xf32>,
    %c1 = arith.constant 1 : index
    %c0_9 = arith.constant 0 : index
    %c0_10 = arith.constant 0 : index
    %11 = vector.load %arg0[%c1, %c0_9, %c0_10] : memref<8x8x16xf32, #tpu.memory_space<vmem>>, vector<1x8x16xf32>
    %12 = vector.shape_cast %11 : vector<1x8x16xf32> to vector<8x16xf32>
    %cst_11 = arith.constant dense<0.000000e+00> : vector<8x512xf32>
    %13 = tpu.matmul %12, %0, %cst_11 {dimension_numbers = #tpu.dot_dimension_numbers<[1], [0], [0], [1], [0, 0, 1, 1], [], []>} : vector<8x16xf32>, vector<16x512xf32>, vector<8x512xf32> -> vector<8x512xf32>
    %14 = arith.addf %13, %3 : vector<8x512xf32>
    %c1_12 = arith.constant 1 : index
    %c0_13 = arith.constant 0 : index
    %c0_14 = arith.constant 0 : index
    %15 = vector.load %arg9[%c1_12, %c0_13, %c0_14] : memref<8x8x512xf32, #tpu.memory_space<vmem>>, vector<1x8x512xf32>
    %16 = vector.shape_cast %15 : vector<1x8x512xf32> to vector<8x512xf32>
    %17 = vector.shape_cast %14 : vector<8x512xf32> to vector<1x8x512xf32>
    tpu.vector_store %arg9[%c1_12, %c0_13, %c0_14], %17 {strides = array<i32>} : memref<8x8x512xf32, #tpu.memory_space<vmem>>, vector<1x8x512xf32>,
    %c2 = arith.constant 2 : index
    %c0_15 = arith.constant 0 : index
    %c0_16 = arith.constant 0 : index
    %18 = vector.load %arg0[%c2, %c0_15, %c0_16] : memref<8x8x16xf32, #tpu.memory_space<vmem>>, vector<1x8x16xf32>
    %19 = vector.shape_cast %18 : vector<1x8x16xf32> to vector<8x16xf32>
    %cst_17 = arith.constant dense<0.000000e+00> : vector<8x512xf32>
    %20 = tpu.matmul %19, %0, %cst_17 {dimension_numbers = #tpu.dot_dimension_numbers<[1], [0], [0], [1], [0, 0, 1, 1], [], []>} : vector<8x16xf32>, vector<16x512xf32>, vector<8x512xf32> -> vector<8x512xf32>
    %21 = arith.addf %20, %3 : vector<8x512xf32>
    %c2_18 = arith.constant 2 : index
    %c0_19 = arith.constant 0 : index
    %c0_20 = arith.constant 0 : index
    %22 = vector.load %arg9[%c2_18, %c0_19, %c0_20] : memref<8x8x512xf32, #tpu.memory_space<vmem>>, vector<1x8x512xf32>
    %23 = vector.shape_cast %22 : vector<1x8x512xf32> to vector<8x512xf32>
    %24 = vector.shape_cast %21 : vector<8x512xf32> to vector<1x8x512xf32>
    tpu.vector_store %arg9[%c2_18, %c0_19, %c0_20], %24 {strides = array<i32>} : memref<8x8x512xf32, #tpu.memory_space<vmem>>, vector<1x8x512xf32>,
    %c3 = arith.constant 3 : index
    %c0_21 = arith.constant 0 : index
    %c0_22 = arith.constant 0 : index
    %25 = vector.load %arg0[%c3, %c0_21, %c0_22] : memref<8x8x16xf32, #tpu.memory_space<vmem>>, vector<1x8x16xf32>
    %26 = vector.shape_cast %25 : vector<1x8x16xf32> to vector<8x16xf32>
    %cst_23 = arith.constant dense<0.000000e+00> : vector<8x512xf32>
    %27 = tpu.matmul %26, %0, %cst_23 {dimension_numbers = #tpu.dot_dimension_numbers<[1], [0], [0], [1], [0, 0, 1, 1], [], []>} : vector<8x16xf32>, vector<16x512xf32>, vector<8x512xf32> -> vector<8x512xf32>
    %28 = arith.addf %27, %3 : vector<8x512xf32>
    %c3_24 = arith.constant 3 : index
    %c0_25 = arith.constant 0 : index
    %c0_26 = arith.constant 0 : index
    %29 = vector.load %arg9[%c3_24, %c0_25, %c0_26] : memref<8x8x512xf32, #tpu.memory_space<vmem>>, vector<1x8x512xf32>
    %30 = vector.shape_cast %29 : vector<1x8x512xf32> to vector<8x512xf32>
    %31 = vector.shape_cast %28 : vector<8x512xf32> to vector<1x8x512xf32>
    tpu.vector_store %arg9[%c3_24, %c0_25, %c0_26], %31 {strides = array<i32>} : memref<8x8x512xf32, #tpu.memory_space<vmem>>, vector<1x8x512xf32>,
    %c4 = arith.constant 4 : index
    %c0_27 = arith.constant 0 : index
    %c0_28 = arith.constant 0 : index
    %32 = vector.load %arg0[%c4, %c0_27, %c0_28] : memref<8x8x16xf32, #tpu.memory_space<vmem>>, vector<1x8x16xf32>
    %33 = vector.shape_cast %32 : vector<1x8x16xf32> to vector<8x16xf32>
    %cst_29 = arith.constant dense<0.000000e+00> : vector<8x512xf32>
    %34 = tpu.matmul %33, %0, %cst_29 {dimension_numbers = #tpu.dot_dimension_numbers<[1], [0], [0], [1], [0, 0, 1, 1], [], []>} : vector<8x16xf32>, vector<16x512xf32>, vector<8x512xf32> -> vector<8x512xf32>
    %35 = arith.addf %34, %3 : vector<8x512xf32>
    %c4_30 = arith.constant 4 : index
    %c0_31 = arith.constant 0 : index
    %c0_32 = arith.constant 0 : index
    %36 = vector.load %arg9[%c4_30, %c0_31, %c0_32] : memref<8x8x512xf32, #tpu.memory_space<vmem>>, vector<1x8x512xf32>
    %37 = vector.shape_cast %36 : vector<1x8x512xf32> to vector<8x512xf32>
    %38 = vector.shape_cast %35 : vector<8x512xf32> to vector<1x8x512xf32>
    tpu.vector_store %arg9[%c4_30, %c0_31, %c0_32], %38 {strides = array<i32>} : memref<8x8x512xf32, #tpu.memory_space<vmem>>, vector<1x8x512xf32>,
    %c5 = arith.constant 5 : index
    %c0_33 = arith.constant 0 : index
    %c0_34 = arith.constant 0 : index
    %39 = vector.load %arg0[%c5, %c0_33, %c0_34] : memref<8x8x16xf32, #tpu.memory_space<vmem>>, vector<1x8x16xf32>
    %40 = vector.shape_cast %39 : vector<1x8x16xf32> to vector<8x16xf32>
    %cst_35 = arith.constant dense<0.000000e+00> : vector<8x512xf32>
    %41 = tpu.matmul %40, %0, %cst_35 {dimension_numbers = #tpu.dot_dimension_numbers<[1], [0], [0], [1], [0, 0, 1, 1], [], []>} : vector<8x16xf32>, vector<16x512xf32>, vector<8x512xf32> -> vector<8x512xf32>
    %42 = arith.addf %41, %3 : vector<8x512xf32>
    %c5_36 = arith.constant 5 : index
    %c0_37 = arith.constant 0 : index
    %c0_38 = arith.constant 0 : index
    %43 = vector.load %arg9[%c5_36, %c0_37, %c0_38] : memref<8x8x512xf32, #tpu.memory_space<vmem>>, vector<1x8x512xf32>
    %44 = vector.shape_cast %43 : vector<1x8x512xf32> to vector<8x512xf32>
    %45 = vector.shape_cast %42 : vector<8x512xf32> to vector<1x8x512xf32>
    tpu.vector_store %arg9[%c5_36, %c0_37, %c0_38], %45 {strides = array<i32>} : memref<8x8x512xf32, #tpu.memory_space<vmem>>, vector<1x8x512xf32>,
    %c6 = arith.constant 6 : index
    %c0_39 = arith.constant 0 : index
    %c0_40 = arith.constant 0 : index
    %46 = vector.load %arg0[%c6, %c0_39, %c0_40] : memref<8x8x16xf32, #tpu.memory_space<vmem>>, vector<1x8x16xf32>
    %47 = vector.shape_cast %46 : vector<1x8x16xf32> to vector<8x16xf32>
    %cst_41 = arith.constant dense<0.000000e+00> : vector<8x512xf32>
    %48 = tpu.matmul %47, %0, %cst_41 {dimension_numbers = #tpu.dot_dimension_numbers<[1], [0], [0], [1], [0, 0, 1, 1], [], []>} : vector<8x16xf32>, vector<16x512xf32>, vector<8x512xf32> -> vector<8x512xf32>
    %49 = arith.addf %48, %3 : vector<8x512xf32>
    %c6_42 = arith.constant 6 : index
    %c0_43 = arith.constant 0 : index
    %c0_44 = arith.constant 0 : index
    %50 = vector.load %arg9[%c6_42, %c0_43, %c0_44] : memref<8x8x512xf32, #tpu.memory_space<vmem>>, vector<1x8x512xf32>
    %51 = vector.shape_cast %50 : vector<1x8x512xf32> to vector<8x512xf32>
    %52 = vector.shape_cast %49 : vector<8x512xf32> to vector<1x8x512xf32>
    tpu.vector_store %arg9[%c6_42, %c0_43, %c0_44], %52 {strides = array<i32>} : memref<8x8x512xf32, #tpu.memory_space<vmem>>, vector<1x8x512xf32>,
    %c7 = arith.constant 7 : index
    %c0_45 = arith.constant 0 : index
    %c0_46 = arith.constant 0 : index
    %53 = vector.load %arg0[%c7, %c0_45, %c0_46] : memref<8x8x16xf32, #tpu.memory_space<vmem>>, vector<1x8x16xf32>
    %54 = vector.shape_cast %53 : vector<1x8x16xf32> to vector<8x16xf32>
    %cst_47 = arith.constant dense<0.000000e+00> : vector<8x512xf32>
    %55 = tpu.matmul %54, %0, %cst_47 {dimension_numbers = #tpu.dot_dimension_numbers<[1], [0], [0], [1], [0, 0, 1, 1], [], []>} : vector<8x16xf32>, vector<16x512xf32>, vector<8x512xf32> -> vector<8x512xf32>
    %56 = arith.addf %55, %3 : vector<8x512xf32>
    %c7_48 = arith.constant 7 : index
    %c0_49 = arith.constant 0 : index
    %c0_50 = arith.constant 0 : index
    %57 = vector.load %arg9[%c7_48, %c0_49, %c0_50] : memref<8x8x512xf32, #tpu.memory_space<vmem>>, vector<1x8x512xf32>
    %58 = vector.shape_cast %57 : vector<1x8x512xf32> to vector<8x512xf32>
    %59 = vector.shape_cast %56 : vector<8x512xf32> to vector<1x8x512xf32>
    tpu.vector_store %arg9[%c7_48, %c0_49, %c0_50], %59 {strides = array<i32>} : memref<8x8x512xf32, #tpu.memory_space<vmem>>, vector<1x8x512xf32>,
    %c0_51 = arith.constant 0 : index
    %c0_52 = arith.constant 0 : index
    %60 = vector.load %arg2[%c0_51, %c0_52] : memref<128x512xf32, #tpu.memory_space<vmem>>, vector<128x512xf32>
    %c0_53 = arith.constant 0 : index
    %c0_54 = arith.constant 0 : index
    %61 = vector.load %arg4[%c0_53, %c0_54] : memref<256x512xf32, #tpu.memory_space<vmem>>, vector<256x512xf32>
    %c0_55 = arith.constant 0 : index
    %c0_56 = arith.constant 0 : index
    %62 = vector.load %arg5[%c0_55, %c0_56] : memref<1x512xf32, #tpu.memory_space<vmem>>, vector<1x512xf32>
    %63 = vector.shape_cast %62 : vector<1x512xf32> to vector<1x512xf32>
    %64 = vector.broadcast %63 : vector<1x512xf32> to vector<8x512xf32>
    %cst_57 = arith.constant 0.000000e+00 : f32
    %65 = vector.broadcast %cst_57 : f32 to vector<8x128xf32>
    %c0_58 = arith.constant 0 : index
    %c0_59 = arith.constant 0 : index
    %c0_60 = arith.constant 0 : index
    %66 = vector.load %arg9[%c0_58, %c0_59, %c0_60] : memref<8x8x512xf32, #tpu.memory_space<vmem>>, vector<1x8x512xf32>
    %67 = vector.shape_cast %66 : vector<1x8x512xf32> to vector<8x512xf32>
    %cst_61 = arith.constant dense<0.000000e+00> : vector<8x512xf32>
    %68 = tpu.matmul %65, %60, %cst_61 {dimension_numbers = #tpu.dot_dimension_numbers<[1], [0], [0], [1], [0, 0, 1, 1], [], []>} : vector<8x128xf32>, vector<128x512xf32>, vector<8x512xf32> -> vector<8x512xf32>
    %69 = arith.addf %67, %68 : vector<8x512xf32>
    %70 = vector.extract_strided_slice %69 {offsets = [0, 0], sizes = [8, 384], strides = [1, 1]} : vector<8x512xf32> to vector<8x384xf32>
    %71 = arith.negf %70 : vector<8x384xf32>
    %72 = math.exp %71 : vector<8x384xf32>
    %cst_62 = arith.constant 1.000000e+00 : f32
    %73 = vector.broadcast %cst_62 : f32 to vector<8x384xf32>
    %74 = arith.addf %73, %72 : vector<8x384xf32>
    %75 = arith.divf %73, %74 : vector<8x384xf32>
    %76 = vector.extract_strided_slice %75 {offsets = [0, 0], sizes = [8, 128], strides = [1, 1]} : vector<8x384xf32> to vector<8x128xf32>
    %77 = vector.extract_strided_slice %75 {offsets = [0, 128], sizes = [8, 128], strides = [1, 1]} : vector<8x384xf32> to vector<8x128xf32>
    %78 = vector.extract_strided_slice %75 {offsets = [0, 256], sizes = [8, 128], strides = [1, 1]} : vector<8x384xf32> to vector<8x128xf32>
    %79 = vector.extract_strided_slice %69 {offsets = [0, 384], sizes = [8, 128], strides = [1, 1]} : vector<8x512xf32> to vector<8x128xf32>
    %80 = math.tanh %79 : vector<8x128xf32>
    %81 = arith.mulf %77, %65 : vector<8x128xf32>
    %82 = arith.mulf %76, %80 : vector<8x128xf32>
    %83 = arith.addf %81, %82 : vector<8x128xf32>
    %84 = math.tanh %83 : vector<8x128xf32>
    %85 = arith.mulf %78, %84 : vector<8x128xf32>
    %86 = tpu.concatenate %85, %65 in 1 : vector<8x128xf32>, vector<8x128xf32> -> vector<8x256xf32>
    %cst_63 = arith.constant dense<0.000000e+00> : vector<8x512xf32>
    %87 = tpu.matmul %86, %61, %cst_63 {dimension_numbers = #tpu.dot_dimension_numbers<[1], [0], [0], [1], [0, 0, 1, 1], [], []>} : vector<8x256xf32>, vector<256x512xf32>, vector<8x512xf32> -> vector<8x512xf32>
    %88 = arith.addf %87, %64 : vector<8x512xf32>
    %89 = vector.extract_strided_slice %88 {offsets = [0, 0], sizes = [8, 384], strides = [1, 1]} : vector<8x512xf32> to vector<8x384xf32>
    %90 = arith.negf %89 : vector<8x384xf32>
    %91 = math.exp %90 : vector<8x384xf32>
    %cst_64 = arith.constant 1.000000e+00 : f32
    %92 = vector.broadcast %cst_64 : f32 to vector<8x384xf32>
    %93 = arith.addf %92, %91 : vector<8x384xf32>
    %94 = arith.divf %92, %93 : vector<8x384xf32>
    %95 = vector.extract_strided_slice %94 {offsets = [0, 0], sizes = [8, 128], strides = [1, 1]} : vector<8x384xf32> to vector<8x128xf32>
    %96 = vector.extract_strided_slice %94 {offsets = [0, 128], sizes = [8, 128], strides = [1, 1]} : vector<8x384xf32> to vector<8x128xf32>
    %97 = vector.extract_strided_slice %94 {offsets = [0, 256], sizes = [8, 128], strides = [1, 1]} : vector<8x384xf32> to vector<8x128xf32>
    %98 = vector.extract_strided_slice %88 {offsets = [0, 384], sizes = [8, 128], strides = [1, 1]} : vector<8x512xf32> to vector<8x128xf32>
    %99 = math.tanh %98 : vector<8x128xf32>
    %100 = arith.mulf %96, %65 : vector<8x128xf32>
    %101 = arith.mulf %95, %99 : vector<8x128xf32>
    %102 = arith.addf %100, %101 : vector<8x128xf32>
    %103 = math.tanh %102 : vector<8x128xf32>
    %104 = arith.mulf %97, %103 : vector<8x128xf32>
    %c1_65 = arith.constant 1 : index
    %c0_66 = arith.constant 0 : index
    %c0_67 = arith.constant 0 : index
    %105 = vector.load %arg9[%c1_65, %c0_66, %c0_67] : memref<8x8x512xf32, #tpu.memory_space<vmem>>, vector<1x8x512xf32>
    %106 = vector.shape_cast %105 : vector<1x8x512xf32> to vector<8x512xf32>
    %cst_68 = arith.constant dense<0.000000e+00> : vector<8x512xf32>
    %107 = tpu.matmul %85, %60, %cst_68 {dimension_numbers = #tpu.dot_dimension_numbers<[1], [0], [0], [1], [0, 0, 1, 1], [], []>} : vector<8x128xf32>, vector<128x512xf32>, vector<8x512xf32> -> vector<8x512xf32>
    %108 = arith.addf %106, %107 : vector<8x512xf32>
    %109 = vector.extract_strided_slice %108 {offsets = [0, 0], sizes = [8, 384], strides = [1, 1]} : vector<8x512xf32> to vector<8x384xf32>
    %110 = arith.negf %109 : vector<8x384xf32>
    %111 = math.exp %110 : vector<8x384xf32>
    %cst_69 = arith.constant 1.000000e+00 : f32
    %112 = vector.broadcast %cst_69 : f32 to vector<8x384xf32>
    %113 = arith.addf %112, %111 : vector<8x384xf32>
    %114 = arith.divf %112, %113 : vector<8x384xf32>
    %115 = vector.extract_strided_slice %114 {offsets = [0, 0], sizes = [8, 128], strides = [1, 1]} : vector<8x384xf32> to vector<8x128xf32>
    %116 = vector.extract_strided_slice %114 {offsets = [0, 128], sizes = [8, 128], strides = [1, 1]} : vector<8x384xf32> to vector<8x128xf32>
    %117 = vector.extract_strided_slice %114 {offsets = [0, 256], sizes = [8, 128], strides = [1, 1]} : vector<8x384xf32> to vector<8x128xf32>
    %118 = vector.extract_strided_slice %108 {offsets = [0, 384], sizes = [8, 128], strides = [1, 1]} : vector<8x512xf32> to vector<8x128xf32>
    %119 = math.tanh %118 : vector<8x128xf32>
    %120 = arith.mulf %116, %83 : vector<8x128xf32>
    %121 = arith.mulf %115, %119 : vector<8x128xf32>
    %122 = arith.addf %120, %121 : vector<8x128xf32>
    %123 = math.tanh %122 : vector<8x128xf32>
    %124 = arith.mulf %117, %123 : vector<8x128xf32>
    %125 = tpu.concatenate %124, %104 in 1 : vector<8x128xf32>, vector<8x128xf32> -> vector<8x256xf32>
    %cst_70 = arith.constant dense<0.000000e+00> : vector<8x512xf32>
    %126 = tpu.matmul %125, %61, %cst_70 {dimension_numbers = #tpu.dot_dimension_numbers<[1], [0], [0], [1], [0, 0, 1, 1], [], []>} : vector<8x256xf32>, vector<256x512xf32>, vector<8x512xf32> -> vector<8x512xf32>
    %127 = arith.addf %126, %64 : vector<8x512xf32>
    %128 = vector.extract_strided_slice %127 {offsets = [0, 0], sizes = [8, 384], strides = [1, 1]} : vector<8x512xf32> to vector<8x384xf32>
    %129 = arith.negf %128 : vector<8x384xf32>
    %130 = math.exp %129 : vector<8x384xf32>
    %cst_71 = arith.constant 1.000000e+00 : f32
    %131 = vector.broadcast %cst_71 : f32 to vector<8x384xf32>
    %132 = arith.addf %131, %130 : vector<8x384xf32>
    %133 = arith.divf %131, %132 : vector<8x384xf32>
    %134 = vector.extract_strided_slice %133 {offsets = [0, 0], sizes = [8, 128], strides = [1, 1]} : vector<8x384xf32> to vector<8x128xf32>
    %135 = vector.extract_strided_slice %133 {offsets = [0, 128], sizes = [8, 128], strides = [1, 1]} : vector<8x384xf32> to vector<8x128xf32>
    %136 = vector.extract_strided_slice %133 {offsets = [0, 256], sizes = [8, 128], strides = [1, 1]} : vector<8x384xf32> to vector<8x128xf32>
    %137 = vector.extract_strided_slice %127 {offsets = [0, 384], sizes = [8, 128], strides = [1, 1]} : vector<8x512xf32> to vector<8x128xf32>
    %138 = math.tanh %137 : vector<8x128xf32>
    %139 = arith.mulf %135, %102 : vector<8x128xf32>
    %140 = arith.mulf %134, %138 : vector<8x128xf32>
    %141 = arith.addf %139, %140 : vector<8x128xf32>
    %142 = math.tanh %141 : vector<8x128xf32>
    %143 = arith.mulf %136, %142 : vector<8x128xf32>
    %c2_72 = arith.constant 2 : index
    %c0_73 = arith.constant 0 : index
    %c0_74 = arith.constant 0 : index
    %144 = vector.load %arg9[%c2_72, %c0_73, %c0_74] : memref<8x8x512xf32, #tpu.memory_space<vmem>>, vector<1x8x512xf32>
    %145 = vector.shape_cast %144 : vector<1x8x512xf32> to vector<8x512xf32>
    %cst_75 = arith.constant dense<0.000000e+00> : vector<8x512xf32>
    %146 = tpu.matmul %124, %60, %cst_75 {dimension_numbers = #tpu.dot_dimension_numbers<[1], [0], [0], [1], [0, 0, 1, 1], [], []>} : vector<8x128xf32>, vector<128x512xf32>, vector<8x512xf32> -> vector<8x512xf32>
    %147 = arith.addf %145, %146 : vector<8x512xf32>
    %148 = vector.extract_strided_slice %147 {offsets = [0, 0], sizes = [8, 384], strides = [1, 1]} : vector<8x512xf32> to vector<8x384xf32>
    %149 = arith.negf %148 : vector<8x384xf32>
    %150 = math.exp %149 : vector<8x384xf32>
    %cst_76 = arith.constant 1.000000e+00 : f32
    %151 = vector.broadcast %cst_76 : f32 to vector<8x384xf32>
    %152 = arith.addf %151, %150 : vector<8x384xf32>
    %153 = arith.divf %151, %152 : vector<8x384xf32>
    %154 = vector.extract_strided_slice %153 {offsets = [0, 0], sizes = [8, 128], strides = [1, 1]} : vector<8x384xf32> to vector<8x128xf32>
    %155 = vector.extract_strided_slice %153 {offsets = [0, 128], sizes = [8, 128], strides = [1, 1]} : vector<8x384xf32> to vector<8x128xf32>
    %156 = vector.extract_strided_slice %153 {offsets = [0, 256], sizes = [8, 128], strides = [1, 1]} : vector<8x384xf32> to vector<8x128xf32>
    %157 = vector.extract_strided_slice %147 {offsets = [0, 384], sizes = [8, 128], strides = [1, 1]} : vector<8x512xf32> to vector<8x128xf32>
    %158 = math.tanh %157 : vector<8x128xf32>
    %159 = arith.mulf %155, %122 : vector<8x128xf32>
    %160 = arith.mulf %154, %158 : vector<8x128xf32>
    %161 = arith.addf %159, %160 : vector<8x128xf32>
    %162 = math.tanh %161 : vector<8x128xf32>
    %163 = arith.mulf %156, %162 : vector<8x128xf32>
    %164 = tpu.concatenate %163, %143 in 1 : vector<8x128xf32>, vector<8x128xf32> -> vector<8x256xf32>
    %cst_77 = arith.constant dense<0.000000e+00> : vector<8x512xf32>
    %165 = tpu.matmul %164, %61, %cst_77 {dimension_numbers = #tpu.dot_dimension_numbers<[1], [0], [0], [1], [0, 0, 1, 1], [], []>} : vector<8x256xf32>, vector<256x512xf32>, vector<8x512xf32> -> vector<8x512xf32>
    %166 = arith.addf %165, %64 : vector<8x512xf32>
    %167 = vector.extract_strided_slice %166 {offsets = [0, 0], sizes = [8, 384], strides = [1, 1]} : vector<8x512xf32> to vector<8x384xf32>
    %168 = arith.negf %167 : vector<8x384xf32>
    %169 = math.exp %168 : vector<8x384xf32>
    %cst_78 = arith.constant 1.000000e+00 : f32
    %170 = vector.broadcast %cst_78 : f32 to vector<8x384xf32>
    %171 = arith.addf %170, %169 : vector<8x384xf32>
    %172 = arith.divf %170, %171 : vector<8x384xf32>
    %173 = vector.extract_strided_slice %172 {offsets = [0, 0], sizes = [8, 128], strides = [1, 1]} : vector<8x384xf32> to vector<8x128xf32>
    %174 = vector.extract_strided_slice %172 {offsets = [0, 128], sizes = [8, 128], strides = [1, 1]} : vector<8x384xf32> to vector<8x128xf32>
    %175 = vector.extract_strided_slice %172 {offsets = [0, 256], sizes = [8, 128], strides = [1, 1]} : vector<8x384xf32> to vector<8x128xf32>
    %176 = vector.extract_strided_slice %166 {offsets = [0, 384], sizes = [8, 128], strides = [1, 1]} : vector<8x512xf32> to vector<8x128xf32>
    %177 = math.tanh %176 : vector<8x128xf32>
    %178 = arith.mulf %174, %141 : vector<8x128xf32>
    %179 = arith.mulf %173, %177 : vector<8x128xf32>
    %180 = arith.addf %178, %179 : vector<8x128xf32>
    %181 = math.tanh %180 : vector<8x128xf32>
    %182 = arith.mulf %175, %181 : vector<8x128xf32>
    %c3_79 = arith.constant 3 : index
    %c0_80 = arith.constant 0 : index
    %c0_81 = arith.constant 0 : index
    %183 = vector.load %arg9[%c3_79, %c0_80, %c0_81] : memref<8x8x512xf32, #tpu.memory_space<vmem>>, vector<1x8x512xf32>
    %184 = vector.shape_cast %183 : vector<1x8x512xf32> to vector<8x512xf32>
    %cst_82 = arith.constant dense<0.000000e+00> : vector<8x512xf32>
    %185 = tpu.matmul %163, %60, %cst_82 {dimension_numbers = #tpu.dot_dimension_numbers<[1], [0], [0], [1], [0, 0, 1, 1], [], []>} : vector<8x128xf32>, vector<128x512xf32>, vector<8x512xf32> -> vector<8x512xf32>
    %186 = arith.addf %184, %185 : vector<8x512xf32>
    %187 = vector.extract_strided_slice %186 {offsets = [0, 0], sizes = [8, 384], strides = [1, 1]} : vector<8x512xf32> to vector<8x384xf32>
    %188 = arith.negf %187 : vector<8x384xf32>
    %189 = math.exp %188 : vector<8x384xf32>
    %cst_83 = arith.constant 1.000000e+00 : f32
    %190 = vector.broadcast %cst_83 : f32 to vector<8x384xf32>
    %191 = arith.addf %190, %189 : vector<8x384xf32>
    %192 = arith.divf %190, %191 : vector<8x384xf32>
    %193 = vector.extract_strided_slice %192 {offsets = [0, 0], sizes = [8, 128], strides = [1, 1]} : vector<8x384xf32> to vector<8x128xf32>
    %194 = vector.extract_strided_slice %192 {offsets = [0, 128], sizes = [8, 128], strides = [1, 1]} : vector<8x384xf32> to vector<8x128xf32>
    %195 = vector.extract_strided_slice %192 {offsets = [0, 256], sizes = [8, 128], strides = [1, 1]} : vector<8x384xf32> to vector<8x128xf32>
    %196 = vector.extract_strided_slice %186 {offsets = [0, 384], sizes = [8, 128], strides = [1, 1]} : vector<8x512xf32> to vector<8x128xf32>
    %197 = math.tanh %196 : vector<8x128xf32>
    %198 = arith.mulf %194, %161 : vector<8x128xf32>
    %199 = arith.mulf %193, %197 : vector<8x128xf32>
    %200 = arith.addf %198, %199 : vector<8x128xf32>
    %201 = math.tanh %200 : vector<8x128xf32>
    %202 = arith.mulf %195, %201 : vector<8x128xf32>
    %203 = tpu.concatenate %202, %182 in 1 : vector<8x128xf32>, vector<8x128xf32> -> vector<8x256xf32>
    %cst_84 = arith.constant dense<0.000000e+00> : vector<8x512xf32>
    %204 = tpu.matmul %203, %61, %cst_84 {dimension_numbers = #tpu.dot_dimension_numbers<[1], [0], [0], [1], [0, 0, 1, 1], [], []>} : vector<8x256xf32>, vector<256x512xf32>, vector<8x512xf32> -> vector<8x512xf32>
    %205 = arith.addf %204, %64 : vector<8x512xf32>
    %206 = vector.extract_strided_slice %205 {offsets = [0, 0], sizes = [8, 384], strides = [1, 1]} : vector<8x512xf32> to vector<8x384xf32>
    %207 = arith.negf %206 : vector<8x384xf32>
    %208 = math.exp %207 : vector<8x384xf32>
    %cst_85 = arith.constant 1.000000e+00 : f32
    %209 = vector.broadcast %cst_85 : f32 to vector<8x384xf32>
    %210 = arith.addf %209, %208 : vector<8x384xf32>
    %211 = arith.divf %209, %210 : vector<8x384xf32>
    %212 = vector.extract_strided_slice %211 {offsets = [0, 0], sizes = [8, 128], strides = [1, 1]} : vector<8x384xf32> to vector<8x128xf32>
    %213 = vector.extract_strided_slice %211 {offsets = [0, 128], sizes = [8, 128], strides = [1, 1]} : vector<8x384xf32> to vector<8x128xf32>
    %214 = vector.extract_strided_slice %211 {offsets = [0, 256], sizes = [8, 128], strides = [1, 1]} : vector<8x384xf32> to vector<8x128xf32>
    %215 = vector.extract_strided_slice %205 {offsets = [0, 384], sizes = [8, 128], strides = [1, 1]} : vector<8x512xf32> to vector<8x128xf32>
    %216 = math.tanh %215 : vector<8x128xf32>
    %217 = arith.mulf %213, %180 : vector<8x128xf32>
    %218 = arith.mulf %212, %216 : vector<8x128xf32>
    %219 = arith.addf %217, %218 : vector<8x128xf32>
    %220 = math.tanh %219 : vector<8x128xf32>
    %221 = arith.mulf %214, %220 : vector<8x128xf32>
    %c4_86 = arith.constant 4 : index
    %c0_87 = arith.constant 0 : index
    %c0_88 = arith.constant 0 : index
    %222 = vector.load %arg9[%c4_86, %c0_87, %c0_88] : memref<8x8x512xf32, #tpu.memory_space<vmem>>, vector<1x8x512xf32>
    %223 = vector.shape_cast %222 : vector<1x8x512xf32> to vector<8x512xf32>
    %cst_89 = arith.constant dense<0.000000e+00> : vector<8x512xf32>
    %224 = tpu.matmul %202, %60, %cst_89 {dimension_numbers = #tpu.dot_dimension_numbers<[1], [0], [0], [1], [0, 0, 1, 1], [], []>} : vector<8x128xf32>, vector<128x512xf32>, vector<8x512xf32> -> vector<8x512xf32>
    %225 = arith.addf %223, %224 : vector<8x512xf32>
    %226 = vector.extract_strided_slice %225 {offsets = [0, 0], sizes = [8, 384], strides = [1, 1]} : vector<8x512xf32> to vector<8x384xf32>
    %227 = arith.negf %226 : vector<8x384xf32>
    %228 = math.exp %227 : vector<8x384xf32>
    %cst_90 = arith.constant 1.000000e+00 : f32
    %229 = vector.broadcast %cst_90 : f32 to vector<8x384xf32>
    %230 = arith.addf %229, %228 : vector<8x384xf32>
    %231 = arith.divf %229, %230 : vector<8x384xf32>
    %232 = vector.extract_strided_slice %231 {offsets = [0, 0], sizes = [8, 128], strides = [1, 1]} : vector<8x384xf32> to vector<8x128xf32>
    %233 = vector.extract_strided_slice %231 {offsets = [0, 128], sizes = [8, 128], strides = [1, 1]} : vector<8x384xf32> to vector<8x128xf32>
    %234 = vector.extract_strided_slice %231 {offsets = [0, 256], sizes = [8, 128], strides = [1, 1]} : vector<8x384xf32> to vector<8x128xf32>
    %235 = vector.extract_strided_slice %225 {offsets = [0, 384], sizes = [8, 128], strides = [1, 1]} : vector<8x512xf32> to vector<8x128xf32>
    %236 = math.tanh %235 : vector<8x128xf32>
    %237 = arith.mulf %233, %200 : vector<8x128xf32>
    %238 = arith.mulf %232, %236 : vector<8x128xf32>
    %239 = arith.addf %237, %238 : vector<8x128xf32>
    %240 = math.tanh %239 : vector<8x128xf32>
    %241 = arith.mulf %234, %240 : vector<8x128xf32>
    %242 = tpu.concatenate %241, %221 in 1 : vector<8x128xf32>, vector<8x128xf32> -> vector<8x256xf32>
    %cst_91 = arith.constant dense<0.000000e+00> : vector<8x512xf32>
    %243 = tpu.matmul %242, %61, %cst_91 {dimension_numbers = #tpu.dot_dimension_numbers<[1], [0], [0], [1], [0, 0, 1, 1], [], []>} : vector<8x256xf32>, vector<256x512xf32>, vector<8x512xf32> -> vector<8x512xf32>
    %244 = arith.addf %243, %64 : vector<8x512xf32>
    %245 = vector.extract_strided_slice %244 {offsets = [0, 0], sizes = [8, 384], strides = [1, 1]} : vector<8x512xf32> to vector<8x384xf32>
    %246 = arith.negf %245 : vector<8x384xf32>
    %247 = math.exp %246 : vector<8x384xf32>
    %cst_92 = arith.constant 1.000000e+00 : f32
    %248 = vector.broadcast %cst_92 : f32 to vector<8x384xf32>
    %249 = arith.addf %248, %247 : vector<8x384xf32>
    %250 = arith.divf %248, %249 : vector<8x384xf32>
    %251 = vector.extract_strided_slice %250 {offsets = [0, 0], sizes = [8, 128], strides = [1, 1]} : vector<8x384xf32> to vector<8x128xf32>
    %252 = vector.extract_strided_slice %250 {offsets = [0, 128], sizes = [8, 128], strides = [1, 1]} : vector<8x384xf32> to vector<8x128xf32>
    %253 = vector.extract_strided_slice %250 {offsets = [0, 256], sizes = [8, 128], strides = [1, 1]} : vector<8x384xf32> to vector<8x128xf32>
    %254 = vector.extract_strided_slice %244 {offsets = [0, 384], sizes = [8, 128], strides = [1, 1]} : vector<8x512xf32> to vector<8x128xf32>
    %255 = math.tanh %254 : vector<8x128xf32>
    %256 = arith.mulf %252, %219 : vector<8x128xf32>
    %257 = arith.mulf %251, %255 : vector<8x128xf32>
    %258 = arith.addf %256, %257 : vector<8x128xf32>
    %259 = math.tanh %258 : vector<8x128xf32>
    %260 = arith.mulf %253, %259 : vector<8x128xf32>
    %c5_93 = arith.constant 5 : index
    %c0_94 = arith.constant 0 : index
    %c0_95 = arith.constant 0 : index
    %261 = vector.load %arg9[%c5_93, %c0_94, %c0_95] : memref<8x8x512xf32, #tpu.memory_space<vmem>>, vector<1x8x512xf32>
    %262 = vector.shape_cast %261 : vector<1x8x512xf32> to vector<8x512xf32>
    %cst_96 = arith.constant dense<0.000000e+00> : vector<8x512xf32>
    %263 = tpu.matmul %241, %60, %cst_96 {dimension_numbers = #tpu.dot_dimension_numbers<[1], [0], [0], [1], [0, 0, 1, 1], [], []>} : vector<8x128xf32>, vector<128x512xf32>, vector<8x512xf32> -> vector<8x512xf32>
    %264 = arith.addf %262, %263 : vector<8x512xf32>
    %265 = vector.extract_strided_slice %264 {offsets = [0, 0], sizes = [8, 384], strides = [1, 1]} : vector<8x512xf32> to vector<8x384xf32>
    %266 = arith.negf %265 : vector<8x384xf32>
    %267 = math.exp %266 : vector<8x384xf32>
    %cst_97 = arith.constant 1.000000e+00 : f32
    %268 = vector.broadcast %cst_97 : f32 to vector<8x384xf32>
    %269 = arith.addf %268, %267 : vector<8x384xf32>
    %270 = arith.divf %268, %269 : vector<8x384xf32>
    %271 = vector.extract_strided_slice %270 {offsets = [0, 0], sizes = [8, 128], strides = [1, 1]} : vector<8x384xf32> to vector<8x128xf32>
    %272 = vector.extract_strided_slice %270 {offsets = [0, 128], sizes = [8, 128], strides = [1, 1]} : vector<8x384xf32> to vector<8x128xf32>
    %273 = vector.extract_strided_slice %270 {offsets = [0, 256], sizes = [8, 128], strides = [1, 1]} : vector<8x384xf32> to vector<8x128xf32>
    %274 = vector.extract_strided_slice %264 {offsets = [0, 384], sizes = [8, 128], strides = [1, 1]} : vector<8x512xf32> to vector<8x128xf32>
    %275 = math.tanh %274 : vector<8x128xf32>
    %276 = arith.mulf %272, %239 : vector<8x128xf32>
    %277 = arith.mulf %271, %275 : vector<8x128xf32>
    %278 = arith.addf %276, %277 : vector<8x128xf32>
    %279 = math.tanh %278 : vector<8x128xf32>
    %280 = arith.mulf %273, %279 : vector<8x128xf32>
    %281 = tpu.concatenate %280, %260 in 1 : vector<8x128xf32>, vector<8x128xf32> -> vector<8x256xf32>
    %cst_98 = arith.constant dense<0.000000e+00> : vector<8x512xf32>
    %282 = tpu.matmul %281, %61, %cst_98 {dimension_numbers = #tpu.dot_dimension_numbers<[1], [0], [0], [1], [0, 0, 1, 1], [], []>} : vector<8x256xf32>, vector<256x512xf32>, vector<8x512xf32> -> vector<8x512xf32>
    %283 = arith.addf %282, %64 : vector<8x512xf32>
    %284 = vector.extract_strided_slice %283 {offsets = [0, 0], sizes = [8, 384], strides = [1, 1]} : vector<8x512xf32> to vector<8x384xf32>
    %285 = arith.negf %284 : vector<8x384xf32>
    %286 = math.exp %285 : vector<8x384xf32>
    %cst_99 = arith.constant 1.000000e+00 : f32
    %287 = vector.broadcast %cst_99 : f32 to vector<8x384xf32>
    %288 = arith.addf %287, %286 : vector<8x384xf32>
    %289 = arith.divf %287, %288 : vector<8x384xf32>
    %290 = vector.extract_strided_slice %289 {offsets = [0, 0], sizes = [8, 128], strides = [1, 1]} : vector<8x384xf32> to vector<8x128xf32>
    %291 = vector.extract_strided_slice %289 {offsets = [0, 128], sizes = [8, 128], strides = [1, 1]} : vector<8x384xf32> to vector<8x128xf32>
    %292 = vector.extract_strided_slice %289 {offsets = [0, 256], sizes = [8, 128], strides = [1, 1]} : vector<8x384xf32> to vector<8x128xf32>
    %293 = vector.extract_strided_slice %283 {offsets = [0, 384], sizes = [8, 128], strides = [1, 1]} : vector<8x512xf32> to vector<8x128xf32>
    %294 = math.tanh %293 : vector<8x128xf32>
    %295 = arith.mulf %291, %258 : vector<8x128xf32>
    %296 = arith.mulf %290, %294 : vector<8x128xf32>
    %297 = arith.addf %295, %296 : vector<8x128xf32>
    %298 = math.tanh %297 : vector<8x128xf32>
    %299 = arith.mulf %292, %298 : vector<8x128xf32>
    %c6_100 = arith.constant 6 : index
    %c0_101 = arith.constant 0 : index
    %c0_102 = arith.constant 0 : index
    %300 = vector.load %arg9[%c6_100, %c0_101, %c0_102] : memref<8x8x512xf32, #tpu.memory_space<vmem>>, vector<1x8x512xf32>
    %301 = vector.shape_cast %300 : vector<1x8x512xf32> to vector<8x512xf32>
    %cst_103 = arith.constant dense<0.000000e+00> : vector<8x512xf32>
    %302 = tpu.matmul %280, %60, %cst_103 {dimension_numbers = #tpu.dot_dimension_numbers<[1], [0], [0], [1], [0, 0, 1, 1], [], []>} : vector<8x128xf32>, vector<128x512xf32>, vector<8x512xf32> -> vector<8x512xf32>
    %303 = arith.addf %301, %302 : vector<8x512xf32>
    %304 = vector.extract_strided_slice %303 {offsets = [0, 0], sizes = [8, 384], strides = [1, 1]} : vector<8x512xf32> to vector<8x384xf32>
    %305 = arith.negf %304 : vector<8x384xf32>
    %306 = math.exp %305 : vector<8x384xf32>
    %cst_104 = arith.constant 1.000000e+00 : f32
    %307 = vector.broadcast %cst_104 : f32 to vector<8x384xf32>
    %308 = arith.addf %307, %306 : vector<8x384xf32>
    %309 = arith.divf %307, %308 : vector<8x384xf32>
    %310 = vector.extract_strided_slice %309 {offsets = [0, 0], sizes = [8, 128], strides = [1, 1]} : vector<8x384xf32> to vector<8x128xf32>
    %311 = vector.extract_strided_slice %309 {offsets = [0, 128], sizes = [8, 128], strides = [1, 1]} : vector<8x384xf32> to vector<8x128xf32>
    %312 = vector.extract_strided_slice %309 {offsets = [0, 256], sizes = [8, 128], strides = [1, 1]} : vector<8x384xf32> to vector<8x128xf32>
    %313 = vector.extract_strided_slice %303 {offsets = [0, 384], sizes = [8, 128], strides = [1, 1]} : vector<8x512xf32> to vector<8x128xf32>
    %314 = math.tanh %313 : vector<8x128xf32>
    %315 = arith.mulf %311, %278 : vector<8x128xf32>
    %316 = arith.mulf %310, %314 : vector<8x128xf32>
    %317 = arith.addf %315, %316 : vector<8x128xf32>
    %318 = math.tanh %317 : vector<8x128xf32>
    %319 = arith.mulf %312, %318 : vector<8x128xf32>
    %320 = tpu.concatenate %319, %299 in 1 : vector<8x128xf32>, vector<8x128xf32> -> vector<8x256xf32>
    %cst_105 = arith.constant dense<0.000000e+00> : vector<8x512xf32>
    %321 = tpu.matmul %320, %61, %cst_105 {dimension_numbers = #tpu.dot_dimension_numbers<[1], [0], [0], [1], [0, 0, 1, 1], [], []>} : vector<8x256xf32>, vector<256x512xf32>, vector<8x512xf32> -> vector<8x512xf32>
    %322 = arith.addf %321, %64 : vector<8x512xf32>
    %323 = vector.extract_strided_slice %322 {offsets = [0, 0], sizes = [8, 384], strides = [1, 1]} : vector<8x512xf32> to vector<8x384xf32>
    %324 = arith.negf %323 : vector<8x384xf32>
    %325 = math.exp %324 : vector<8x384xf32>
    %cst_106 = arith.constant 1.000000e+00 : f32
    %326 = vector.broadcast %cst_106 : f32 to vector<8x384xf32>
    %327 = arith.addf %326, %325 : vector<8x384xf32>
    %328 = arith.divf %326, %327 : vector<8x384xf32>
    %329 = vector.extract_strided_slice %328 {offsets = [0, 0], sizes = [8, 128], strides = [1, 1]} : vector<8x384xf32> to vector<8x128xf32>
    %330 = vector.extract_strided_slice %328 {offsets = [0, 128], sizes = [8, 128], strides = [1, 1]} : vector<8x384xf32> to vector<8x128xf32>
    %331 = vector.extract_strided_slice %328 {offsets = [0, 256], sizes = [8, 128], strides = [1, 1]} : vector<8x384xf32> to vector<8x128xf32>
    %332 = vector.extract_strided_slice %322 {offsets = [0, 384], sizes = [8, 128], strides = [1, 1]} : vector<8x512xf32> to vector<8x128xf32>
    %333 = math.tanh %332 : vector<8x128xf32>
    %334 = arith.mulf %330, %297 : vector<8x128xf32>
    %335 = arith.mulf %329, %333 : vector<8x128xf32>
    %336 = arith.addf %334, %335 : vector<8x128xf32>
    %337 = math.tanh %336 : vector<8x128xf32>
    %338 = arith.mulf %331, %337 : vector<8x128xf32>
    %c7_107 = arith.constant 7 : index
    %c0_108 = arith.constant 0 : index
    %c0_109 = arith.constant 0 : index
    %339 = vector.load %arg9[%c7_107, %c0_108, %c0_109] : memref<8x8x512xf32, #tpu.memory_space<vmem>>, vector<1x8x512xf32>
    %340 = vector.shape_cast %339 : vector<1x8x512xf32> to vector<8x512xf32>
    %cst_110 = arith.constant dense<0.000000e+00> : vector<8x512xf32>
    %341 = tpu.matmul %319, %60, %cst_110 {dimension_numbers = #tpu.dot_dimension_numbers<[1], [0], [0], [1], [0, 0, 1, 1], [], []>} : vector<8x128xf32>, vector<128x512xf32>, vector<8x512xf32> -> vector<8x512xf32>
    %342 = arith.addf %340, %341 : vector<8x512xf32>
    %343 = vector.extract_strided_slice %342 {offsets = [0, 0], sizes = [8, 384], strides = [1, 1]} : vector<8x512xf32> to vector<8x384xf32>
    %344 = arith.negf %343 : vector<8x384xf32>
    %345 = math.exp %344 : vector<8x384xf32>
    %cst_111 = arith.constant 1.000000e+00 : f32
    %346 = vector.broadcast %cst_111 : f32 to vector<8x384xf32>
    %347 = arith.addf %346, %345 : vector<8x384xf32>
    %348 = arith.divf %346, %347 : vector<8x384xf32>
    %349 = vector.extract_strided_slice %348 {offsets = [0, 0], sizes = [8, 128], strides = [1, 1]} : vector<8x384xf32> to vector<8x128xf32>
    %350 = vector.extract_strided_slice %348 {offsets = [0, 128], sizes = [8, 128], strides = [1, 1]} : vector<8x384xf32> to vector<8x128xf32>
    %351 = vector.extract_strided_slice %348 {offsets = [0, 256], sizes = [8, 128], strides = [1, 1]} : vector<8x384xf32> to vector<8x128xf32>
    %352 = vector.extract_strided_slice %342 {offsets = [0, 384], sizes = [8, 128], strides = [1, 1]} : vector<8x512xf32> to vector<8x128xf32>
    %353 = math.tanh %352 : vector<8x128xf32>
    %354 = arith.mulf %350, %317 : vector<8x128xf32>
    %355 = arith.mulf %349, %353 : vector<8x128xf32>
    %356 = arith.addf %354, %355 : vector<8x128xf32>
    %357 = math.tanh %356 : vector<8x128xf32>
    %358 = arith.mulf %351, %357 : vector<8x128xf32>
    %359 = tpu.concatenate %358, %338 in 1 : vector<8x128xf32>, vector<8x128xf32> -> vector<8x256xf32>
    %cst_112 = arith.constant dense<0.000000e+00> : vector<8x512xf32>
    %360 = tpu.matmul %359, %61, %cst_112 {dimension_numbers = #tpu.dot_dimension_numbers<[1], [0], [0], [1], [0, 0, 1, 1], [], []>} : vector<8x256xf32>, vector<256x512xf32>, vector<8x512xf32> -> vector<8x512xf32>
    %361 = arith.addf %360, %64 : vector<8x512xf32>
    %362 = vector.extract_strided_slice %361 {offsets = [0, 0], sizes = [8, 384], strides = [1, 1]} : vector<8x512xf32> to vector<8x384xf32>
    %363 = arith.negf %362 : vector<8x384xf32>
    %364 = math.exp %363 : vector<8x384xf32>
    %cst_113 = arith.constant 1.000000e+00 : f32
    %365 = vector.broadcast %cst_113 : f32 to vector<8x384xf32>
    %366 = arith.addf %365, %364 : vector<8x384xf32>
    %367 = arith.divf %365, %366 : vector<8x384xf32>
    %368 = vector.extract_strided_slice %367 {offsets = [0, 0], sizes = [8, 128], strides = [1, 1]} : vector<8x384xf32> to vector<8x128xf32>
    %369 = vector.extract_strided_slice %367 {offsets = [0, 128], sizes = [8, 128], strides = [1, 1]} : vector<8x384xf32> to vector<8x128xf32>
    %370 = vector.extract_strided_slice %367 {offsets = [0, 256], sizes = [8, 128], strides = [1, 1]} : vector<8x384xf32> to vector<8x128xf32>
    %371 = vector.extract_strided_slice %361 {offsets = [0, 384], sizes = [8, 128], strides = [1, 1]} : vector<8x512xf32> to vector<8x128xf32>
    %372 = math.tanh %371 : vector<8x128xf32>
    %373 = arith.mulf %369, %336 : vector<8x128xf32>
    %374 = arith.mulf %368, %372 : vector<8x128xf32>
    %375 = arith.addf %373, %374 : vector<8x128xf32>
    %376 = math.tanh %375 : vector<8x128xf32>
    %377 = arith.mulf %370, %376 : vector<8x128xf32>
    %c0_114 = arith.constant 0 : index
    %c0_115 = arith.constant 0 : index
    %378 = vector.load %arg6[%c0_114, %c0_115] : memref<128x128xf32, #tpu.memory_space<vmem>>, vector<128x128xf32>
    %cst_116 = arith.constant dense<0.000000e+00> : vector<8x128xf32>
    %379 = tpu.matmul %377, %378, %cst_116 {dimension_numbers = #tpu.dot_dimension_numbers<[1], [0], [0], [1], [0, 0, 1, 1], [], []>} : vector<8x128xf32>, vector<128x128xf32>, vector<8x128xf32> -> vector<8x128xf32>
    %c0_117 = arith.constant 0 : index
    %c0_118 = arith.constant 0 : index
    %380 = vector.load %arg7[%c0_117, %c0_118] : memref<1x128xf32, #tpu.memory_space<vmem>>, vector<1x128xf32>
    %381 = vector.broadcast %380 : vector<1x128xf32> to vector<8x128xf32>
    %382 = arith.addf %379, %381 : vector<8x128xf32>
    %c0_119 = arith.constant 0 : index
    %c0_120 = arith.constant 0 : index
    %383 = vector.load %arg8[%c0_119, %c0_120] : memref<8x128xf32, #tpu.memory_space<vmem>>, vector<8x128xf32>
    tpu.vector_store %arg8[%c0_119, %c0_120], %382 {strides = array<i32>} : memref<8x128xf32, #tpu.memory_space<vmem>>, vector<8x128xf32>,
    return
  }
}

</mosaic_0001>

<llo_original>
// kernel: nap_lstm_forward.1
$region0: #{nap_lstm_forward.1}
  #allocation0 [shape = 'u32[]', space=smem, size = 0x4, offset = 0x4, fixed_abs, tag = 'smem constant byte address 0x4 - core index']
  #allocation1 [shape = 'u32[144,128]{1,0:T(1,128)}', space=vmem, size = 0x12000, scoped, tag = 'internal scratch']
  #allocation2 [shape = 'f32[8,8,512]{2,1,0:T(8,128)}', space=vmem, size = 0x20000, scoped, tag = 'scratch operand']
  %s0 = inlined_call_operand.vmem [shape: f32[8,8,16], index: 0, kind: input, shape index: {}]
  %s1 = inlined_call_operand.hbm [shape: f32[16,512], index: 1, kind: input, shape index: {}]
  %s2 = inlined_call_operand.hbm [shape: f32[128,512], index: 2, kind: input, shape index: {}]
  %s3 = inlined_call_operand.hbm [shape: f32[1,512], index: 3, kind: input, shape index: {}]
  %s4 = inlined_call_operand.hbm [shape: f32[256,512], index: 4, kind: input, shape index: {}]
  %s5 = inlined_call_operand.vmem [shape: f32[1,512], index: 5, kind: input, shape index: {}]
  %s6 = inlined_call_operand.vmem [shape: f32[128,128], index: 6, kind: input, shape index: {}]
  %s7 = inlined_call_operand.vmem [shape: f32[1,128], index: 7, kind: input, shape index: {}]
  %s8 = inlined_call_operand.vmem [shape: f32[8,128], index: 8, kind: output, shape index: {}]
  %s9 = sld [smem:[#allocation0]]
  $region58: #{nap_lstm_forward.1} parent=0
    _
  %s11 = ssub.s32 1, %s9
  %s12 = scalar_select 0, %s11, %s9
  $region1: #{nap_lstm_forward.1} parent=0
    #allocation3 [shape = 'u8[32768]{0}', space=vmem, size = 0x8000, scoped, tag = 'input window, operand 1, single buffered']
    #allocation4 [shape = 's32[1]{0}', space=sflag, size = 0x4, scoped, tag = 'scoped memory for nap_lstm_forward.1']
    #allocation5 [shape = 'u8[262144]{0}', space=vmem, size = 0x40000, scoped, tag = 'input window, operand 2, single buffered']
    #allocation6 [shape = 's32[1]{0}', space=sflag, size = 0x4, scoped, tag = 'scoped memory for nap_lstm_forward.1']
    #allocation7 [shape = 'u8[2048]{0}', space=vmem, size = 0x800, scoped, tag = 'input window, operand 3, single buffered']
    #allocation8 [shape = 'u8[524288]{0}', space=vmem, size = 0x80000, scoped, tag = 'input window, operand 4, single buffered']
    #allocation9 [shape = 's32[1]{0}', space=sflag, size = 0x4, scoped, tag = 'scoped memory for nap_lstm_forward.1']
    %13 = vsyncpa [#allocation4], 0
    %14 = vsyncpa [#allocation6], 0
    %15 = vsyncpa [#allocation9], 0
    // Predicated region
    $region2: #{nap_lstm_forward.1} parent=1 // pred_check
      _
    $region3: #{nap_lstm_forward.1} parent=1 // pred_check_branch
      %17 = sbr.rel (0) target = $region5
    $region4: #{nap_lstm_forward.1} parent=1 // pred_region
      _
    $region5: #{nap_lstm_forward.1} parent=1 // pred_fallthru
      _
    // Predicated region
    $region6: #{nap_lstm_forward.1} parent=1 // pred_check
      _
    $region7: #{nap_lstm_forward.1} parent=1 // pred_check_branch
      %19 = sbr.rel (0) target = $region9
    $region8: #{nap_lstm_forward.1} parent=1 // pred_region
      %s21 = ssub.s32 1024, 1024
      %22 = vsyncadd [#allocation4], %s21
      %s23 = sshll.u32 [#allocation3], 4
      %s24 = int_to_ptr.vmem [resolvable:$true] %s23
      %29 = dma.hbm_to_vmem [thread:$0]  %s1, 1024, %s24, [#allocation4], 512, 512, 32
    $region9: #{nap_lstm_forward.1} parent=1 // pred_fallthru
      _
    // Predicated region
    $region10: #{nap_lstm_forward.1} parent=1 // pred_check
      _
    $region11: #{nap_lstm_forward.1} parent=1 // pred_check_branch
      %31 = sbr.rel (0) target = $region13
    $region12: #{nap_lstm_forward.1} parent=1 // pred_region
      %s33 = ssub.s32 8192, 8192
      %34 = vsyncadd [#allocation6], %s33
      %s35 = sshll.u32 [#allocation5], 4
      %s36 = int_to_ptr.vmem [resolvable:$true] %s35
      %41 = dma.hbm_to_vmem [thread:$0]  %s2, 8192, %s36, [#allocation6], 512, 512, 32
    $region13: #{nap_lstm_forward.1} parent=1 // pred_fallthru
      _
    // Predicated region
    $region14: #{nap_lstm_forward.1} parent=1 // pred_check
      _
    $region15: #{nap_lstm_forward.1} parent=1 // pred_check_branch
      %43 = sbr.rel (0) target = $region17
    $region16: #{nap_lstm_forward.1} parent=1 // pred_region
      %s45 = ssub.s32 64, 64
      %46 = vsyncadd [#allocation6], %s45
      %s48 = sshll.u32 [#allocation7], 4
      %s49 = int_to_ptr.vmem [resolvable:$true] %s48
      %51 = dma.hbm_to_vmem [thread:$0]  %s3, 64, %s49, [#allocation6]
    $region17: #{nap_lstm_forward.1} parent=1 // pred_fallthru
      _
    // Predicated region
    $region18: #{nap_lstm_forward.1} parent=1 // pred_check
      _
    $region19: #{nap_lstm_forward.1} parent=1 // pred_check_branch
      %53 = sbr.rel (0) target = $region21
    $region20: #{nap_lstm_forward.1} parent=1 // pred_region
      %s55 = ssub.s32 16384, 16384
      %56 = vsyncadd [#allocation9], %s55
      %s57 = sshll.u32 [#allocation8], 4
      %s58 = int_to_ptr.vmem [resolvable:$true] %s57
      %63 = dma.hbm_to_vmem [thread:$0]  %s4, 16384, %s58, [#allocation9], 512, 512, 32
    $region21: #{nap_lstm_forward.1} parent=1 // pred_fallthru
      _
    // Predicated region
    $region22: #{nap_lstm_forward.1} parent=1 // pred_check
      _
    $region23: #{nap_lstm_forward.1} parent=1 // pred_check_branch
      %65 = sbr.rel (0) target = $region25
    $region24: #{nap_lstm_forward.1} parent=1 // pred_region
      _
    $region25: #{nap_lstm_forward.1} parent=1 // pred_fallthru
      _
    // Predicated region
    $region26: #{nap_lstm_forward.1} parent=1 // pred_check
      _
    $region27: #{nap_lstm_forward.1} parent=1 // pred_check_branch
      %67 = sbr.rel (0) target = $region29
    $region28: #{nap_lstm_forward.1} parent=1 // pred_region
      _
    $region29: #{nap_lstm_forward.1} parent=1 // pred_fallthru
      _
    // Predicated region
    $region30: #{nap_lstm_forward.1} parent=1 // pred_check
      _
    $region31: #{nap_lstm_forward.1} parent=1 // pred_check_branch
      %69 = sbr.rel (0) target = $region33
    $region32: #{nap_lstm_forward.1} parent=1 // pred_region
      _
    $region33: #{nap_lstm_forward.1} parent=1 // pred_fallthru
      _
    // Predicated region
    $region34: #{nap_lstm_forward.1} parent=1 // pred_check
      _
    $region35: #{nap_lstm_forward.1} parent=1 // pred_check_branch
      %71 = sbr.rel (0) target = $region37
    $region36: #{nap_lstm_forward.1} parent=1 // pred_region
      %72 = dma.done [#allocation4], 1024
    $region37: #{nap_lstm_forward.1} parent=1 // pred_fallthru
      _
    // Predicated region
    $region38: #{nap_lstm_forward.1} parent=1 // pred_check
      _
    $region39: #{nap_lstm_forward.1} parent=1 // pred_check_branch
      %74 = sbr.rel (0) target = $region41
    $region40: #{nap_lstm_forward.1} parent=1 // pred_region
      %75 = dma.done [#allocation6], 8192
    $region41: #{nap_lstm_forward.1} parent=1 // pred_fallthru
      _
    // Predicated region
    $region42: #{nap_lstm_forward.1} parent=1 // pred_check
      _
    $region43: #{nap_lstm_forward.1} parent=1 // pred_check_branch
      %77 = sbr.rel (0) target = $region45
    $region44: #{nap_lstm_forward.1} parent=1 // pred_region
      %78 = dma.done [#allocation6], 64
    $region45: #{nap_lstm_forward.1} parent=1 // pred_fallthru
      _
    // Predicated region
    $region46: #{nap_lstm_forward.1} parent=1 // pred_check
      _
    $region47: #{nap_lstm_forward.1} parent=1 // pred_check_branch
      %80 = sbr.rel (0) target = $region49
    $region48: #{nap_lstm_forward.1} parent=1 // pred_region
      %81 = dma.done [#allocation9], 16384
    $region49: #{nap_lstm_forward.1} parent=1 // pred_fallthru
      _
    %v82 = vld [vmem:[#allocation3] sm:$0xff]
    %v83 = vld [vmem:[#allocation3 + $0x8] sm:$0xff]
    %v84 = vld [vmem:[#allocation3 + $0x10] sm:$0xff]
    %v85 = vld [vmem:[#allocation3 + $0x18] sm:$0xff]
    %v86 = vld [vmem:[#allocation3 + $0x20] sm:$0xff]
    %v87 = vld [vmem:[#allocation3 + $0x28] sm:$0xff]
    %v88 = vld [vmem:[#allocation3 + $0x30] sm:$0xff]
    %v89 = vld [vmem:[#allocation3 + $0x38] sm:$0xff]
    %v90 = vld [vmem:[#allocation7] sm:$0xf]
    %v92 = vlaneseq
    %v93 = vshrl.u32 %v92, 7
    %v94 = vsub.s32 0, %v93
    %v95 = vrot.slane %v90, %v94
    %v96 = vlaneseq
    %v97 = vshrl.u32 %v96, 7
    %v98 = vsub.s32 1, %v97
    %v99 = vrot.slane %v90, %v98
    %v100 = vlaneseq
    %v101 = vshrl.u32 %v100, 7
    %v102 = vsub.s32 2, %v101
    %v103 = vrot.slane %v90, %v102
    %v104 = vlaneseq
    %v105 = vshrl.u32 %v104, 7
    %v106 = vsub.s32 3, %v105
    %v107 = vrot.slane %v90, %v106
    %v112 = vld [vmem:[%s0] sm:$0xff]
    %vm113 = vcmask 130048
    %v115 = vsel %vm113, %v112, 0
    %117 = vmatprep.subr.mxu0 %v83
    %118 = vmatpush1.msra.mxu0 %v82
    %119 = vmatprep.subr.mxu0 %v87
    %120 = vmatpush1.msra.mxu0 %v86
    %121 = vmatprep.subr.mxu0 0.0
    %122 = vmatpush1.msra.mxu0 0.0
    %123 = vmatprep.subr.mxu0 0.0
    %124 = vmatpush1.msra.mxu0 0.0
    %125 = vmatprep.subr.mxu0 0.0
    %126 = vmatpush1.msra.mxu0 0.0
    %127 = vmatprep.subr.mxu0 0.0
    %128 = vmatpush1.msra.mxu0 0.0
    %129 = vmatprep.subr.mxu0 0.0
    %130 = vmatpush1.msra.mxu0 0.0
    %131 = vmatprep.subr.mxu0 0.0
    %132 = vmatpush1.msra.mxu0 0.0
    %133 = vmatprep.subr.mxu0 0.0
    %134 = vmatpush1.msra.mxu0 0.0
    %135 = vmatprep.subr.mxu0 0.0
    %136 = vmatpush1.msra.mxu0 0.0
    %137 = vmatprep.subr.mxu0 0.0
    %138 = vmatpush1.msra.mxu0 0.0
    %139 = vmatprep.subr.mxu0 0.0
    %140 = vmatpush1.msra.mxu0 0.0
    %141 = vmatprep.subr.mxu0 0.0
    %142 = vmatpush1.msra.mxu0 0.0
    %143 = vmatprep.subr.mxu0 0.0
    %144 = vmatpush1.msra.mxu0 0.0
    %145 = vmatprep.subr.mxu0 0.0
    %146 = vmatpush1.msra.mxu0 0.0
    %147 = vmatprep.subr.mxu0 0.0
    %148 = vmatpush1.msra.mxu0 0.0
    %149 = vmatprep.subr.mxu0 0.0
    %150 = vmatpush1.msra.mxu0 0.0
    %151 = vmatprep.subr.mxu0 0.0
    %152 = vmatpush1.msra.mxu0 0.0
    %153 = vmatprep.subr.mxu0 0.0
    %154 = vmatpush1.msra.mxu0 0.0
    %155 = vmatprep.subr.mxu0 0.0
    %156 = vmatpush1.msra.mxu0 0.0
    %157 = vmatprep.subr.mxu0 0.0
    %158 = vmatpush1.msra.mxu0 0.0
    %159 = vmatprep.subr.mxu0 0.0
    %160 = vmatpush1.msra.mxu0 0.0
    %161 = vmatprep.subr.mxu0 0.0
    %162 = vmatpush1.msra.mxu0 0.0
    %163 = vmatprep.subr.mxu0 0.0
    %164 = vmatpush1.msra.mxu0 0.0
    %165 = vmatprep.subr.mxu0 0.0
    %166 = vmatpush1.msra.mxu0 0.0
    %167 = vmatprep.subr.mxu0 0.0
    %168 = vmatpush1.msra.mxu0 0.0
    %169 = vmatprep.subr.mxu0 0.0
    %170 = vmatpush1.msra.mxu0 0.0
    %171 = vmatprep.subr.mxu0 0.0
    %172 = vmatpush1.msra.mxu0 0.0
    %173 = vmatprep.subr.mxu0 0.0
    %174 = vmatpush1.msra.mxu0 0.0
    %175 = vmatprep.subr.mxu0 0.0
    %176 = vmatpush1.msra.mxu0 0.0
    %177 = vmatprep.subr.mxu0 0.0
    %178 = vmatpush1.msra.mxu0 0.0
    %179 = vmatprep.subr.mxu0 0.0
    %180 = vmatpush1.msra.mxu0 0.0
    %181 = vmatprep.mubr.f32.mxu0 0.0
    %182 = vmatmul.mubr.f32.gmra.mrb[0].mxu0 %v115
    %v183 = vpop.f32.mrb[0].mxu0
    %v184 = vadd.f32 %v95, %v183
    %v185 = vpop.f32.mrb[0].mxu0
    %v186 = vadd.f32 %v99, %v185
    %187 = vdwg.mxu0
    %188 = vmatprep.subr.mxu0 %v85
    %189 = vmatpush1.msra.mxu0 %v84
    %190 = vmatprep.subr.mxu0 %v89
    %191 = vmatpush1.msra.mxu0 %v88
    %192 = vmatprep.subr.mxu0 0.0
    %193 = vmatpush1.msra.mxu0 0.0
    %194 = vmatprep.subr.mxu0 0.0
    %195 = vmatpush1.msra.mxu0 0.0
    %196 = vmatprep.subr.mxu0 0.0
    %197 = vmatpush1.msra.mxu0 0.0
    %198 = vmatprep.subr.mxu0 0.0
    %199 = vmatpush1.msra.mxu0 0.0
    %200 = vmatprep.subr.mxu0 0.0
    %201 = vmatpush1.msra.mxu0 0.0
    %202 = vmatprep.subr.mxu0 0.0
    %203 = vmatpush1.msra.mxu0 0.0
    %204 = vmatprep.subr.mxu0 0.0
    %205 = vmatpush1.msra.mxu0 0.0
    %206 = vmatprep.subr.mxu0 0.0
    %207 = vmatpush1.msra.mxu0 0.0
    %208 = vmatprep.subr.mxu0 0.0
    %209 = vmatpush1.msra.mxu0 0.0
    %210 = vmatprep.subr.mxu0 0.0
    %211 = vmatpush1.msra.mxu0 0.0
    %212 = vmatprep.subr.mxu0 0.0
    %213 = vmatpush1.msra.mxu0 0.0
    %214 = vmatprep.subr.mxu0 0.0
    %215 = vmatpush1.msra.mxu0 0.0
    %216 = vmatprep.subr.mxu0 0.0
    %217 = vmatpush1.msra.mxu0 0.0
    %218 = vmatprep.subr.mxu0 0.0
    %219 = vmatpush1.msra.mxu0 0.0
    %220 = vmatprep.subr.mxu0 0.0
    %221 = vmatpush1.msra.mxu0 0.0
    %222 = vmatprep.subr.mxu0 0.0
    %223 = vmatpush1.msra.mxu0 0.0
    %224 = vmatprep.subr.mxu0 0.0
    %225 = vmatpush1.msra.mxu0 0.0
    %226 = vmatprep.subr.mxu0 0.0
    %227 = vmatpush1.msra.mxu0 0.0
    %228 = vmatprep.subr.mxu0 0.0
    %229 = vmatpush1.msra.mxu0 0.0
    %230 = vmatprep.subr.mxu0 0.0
    %231 = vmatpush1.msra.mxu0 0.0
    %232 = vmatprep.subr.mxu0 0.0
    %233 = vmatpush1.msra.mxu0 0.0
    %234 = vmatprep.subr.mxu0 0.0
    %235 = vmatpush1.msra.mxu0 0.0
    %236 = vmatprep.subr.mxu0 0.0
    %237 = vmatpush1.msra.mxu0 0.0
    %238 = vmatprep.subr.mxu0 0.0
    %239 = vmatpush1.msra.mxu0 0.0
    %240 = vmatprep.subr.mxu0 0.0
    %241 = vmatpush1.msra.mxu0 0.0
    %242 = vmatprep.subr.mxu0 0.0
    %243 = vmatpush1.msra.mxu0 0.0
    %244 = vmatprep.subr.mxu0 0.0
    %245 = vmatpush1.msra.mxu0 0.0
    %246 = vmatprep.subr.mxu0 0.0
    %247 = vmatpush1.msra.mxu0 0.0
    %248 = vmatprep.subr.mxu0 0.0
    %249 = vmatpush1.msra.mxu0 0.0
    %250 = vmatprep.subr.mxu0 0.0
    %251 = vmatpush1.msra.mxu0 0.0
    %252 = vmatprep.mubr.f32.mxu0 0.0
    %253 = vmatmul.mubr.f32.gmra.mrb[0].mxu0 %v115
    %v254 = vpop.f32.mrb[0].mxu0
    %v255 = vadd.f32 %v103, %v254
    %v256 = vpop.f32.mrb[0].mxu0
    %v257 = vadd.f32 %v107, %v256
    %258 = vdwg.mxu0
    %259 = vst [vmem:[#allocation2] sm:$0xff] %v184
    %260 = vst [vmem:[#allocation2 + $0x8] sm:$0xff] %v186
    %261 = vst [vmem:[#allocation2 + $0x10] sm:$0xff] %v255
    %262 = vst [vmem:[#allocation2 + $0x18] sm:$0xff] %v257
    %s263 = scalar_lea.vmem %s0, 8
    %v264 = vld [vmem:[%s263] sm:$0xff]
    %v266 = vsel %vm113, %v264, 0
    %268 = vmatprep.subr.mxu0 %v83
    %269 = vmatpush1.msra.mxu0 %v82
    %270 = vmatprep.subr.mxu0 %v87
    %271 = vmatpush1.msra.mxu0 %v86
    %272 = vmatprep.subr.mxu0 0.0
    %273 = vmatpush1.msra.mxu0 0.0
    %274 = vmatprep.subr.mxu0 0.0
    %275 = vmatpush1.msra.mxu0 0.0
    %276 = vmatprep.subr.mxu0 0.0
    %277 = vmatpush1.msra.mxu0 0.0
    %278 = vmatprep.subr.mxu0 0.0
    %279 = vmatpush1.msra.mxu0 0.0
    %280 = vmatprep.subr.mxu0 0.0
    %281 = vmatpush1.msra.mxu0 0.0
    %282 = vmatprep.subr.mxu0 0.0
    %283 = vmatpush1.msra.mxu0 0.0
    %284 = vmatprep.subr.mxu0 0.0
    %285 = vmatpush1.msra.mxu0 0.0
    %286 = vmatprep.subr.mxu0 0.0
    %287 = vmatpush1.msra.mxu0 0.0
    %288 = vmatprep.subr.mxu0 0.0
    %289 = vmatpush1.msra.mxu0 0.0
    %290 = vmatprep.subr.mxu0 0.0
    %291 = vmatpush1.msra.mxu0 0.0
    %292 = vmatprep.subr.mxu0 0.0
    %293 = vmatpush1.msra.mxu0 0.0
    %294 = vmatprep.subr.mxu0 0.0
    %295 = vmatpush1.msra.mxu0 0.0
    %296 = vmatprep.subr.mxu0 0.0
    %297 = vmatpush1.msra.mxu0 0.0
    %298 = vmatprep.subr.mxu0 0.0
    %299 = vmatpush1.msra.mxu0 0.0
    %300 = vmatprep.subr.mxu0 0.0
    %301 = vmatpush1.msra.mxu0 0.0
    %302 = vmatprep.subr.mxu0 0.0
    %303 = vmatpush1.msra.mxu0 0.0
    %304 = vmatprep.subr.mxu0 0.0
    %305 = vmatpush1.msra.mxu0 0.0
    %306 = vmatprep.subr.mxu0 0.0
    %307 = vmatpush1.msra.mxu0 0.0
    %308 = vmatprep.subr.mxu0 0.0
    %309 = vmatpush1.msra.mxu0 0.0
    %310 = vmatprep.subr.mxu0 0.0
    %311 = vmatpush1.msra.mxu0 0.0
    %312 = vmatprep.subr.mxu0 0.0
    %313 = vmatpush1.msra.mxu0 0.0
    %314 = vmatprep.subr.mxu0 0.0
    %315 = vmatpush1.msra.mxu0 0.0
    %316 = vmatprep.subr.mxu0 0.0
    %317 = vmatpush1.msra.mxu0 0.0
    %318 = vmatprep.subr.mxu0 0.0
    %319 = vmatpush1.msra.mxu0 0.0
    %320 = vmatprep.subr.mxu0 0.0
    %321 = vmatpush1.msra.mxu0 0.0
    %322 = vmatprep.subr.mxu0 0.0
    %323 = vmatpush1.msra.mxu0 0.0
    %324 = vmatprep.subr.mxu0 0.0
    %325 = vmatpush1.msra.mxu0 0.0
    %326 = vmatprep.subr.mxu0 0.0
    %327 = vmatpush1.msra.mxu0 0.0
    %328 = vmatprep.subr.mxu0 0.0
    %329 = vmatpush1.msra.mxu0 0.0
    %330 = vmatprep.subr.mxu0 0.0
    %331 = vmatpush1.msra.mxu0 0.0
    %332 = vmatprep.mubr.f32.mxu0 0.0
    %333 = vmatmul.mubr.f32.gmra.mrb[0].mxu0 %v266
    %v334 = vpop.f32.mrb[0].mxu0
    %v335 = vadd.f32 %v95, %v334
    %v336 = vpop.f32.mrb[0].mxu0
    %v337 = vadd.f32 %v99, %v336
    %338 = vdwg.mxu0
    %339 = vmatprep.subr.mxu0 %v85
    %340 = vmatpush1.msra.mxu0 %v84
    %341 = vmatprep.subr.mxu0 %v89
    %342 = vmatpush1.msra.mxu0 %v88
    %343 = vmatprep.subr.mxu0 0.0
    %344 = vmatpush1.msra.mxu0 0.0
    %345 = vmatprep.subr.mxu0 0.0
    %346 = vmatpush1.msra.mxu0 0.0
    %347 = vmatprep.subr.mxu0 0.0
    %348 = vmatpush1.msra.mxu0 0.0
    %349 = vmatprep.subr.mxu0 0.0
    %350 = vmatpush1.msra.mxu0 0.0
    %351 = vmatprep.subr.mxu0 0.0
    %352 = vmatpush1.msra.mxu0 0.0
    %353 = vmatprep.subr.mxu0 0.0
    %354 = vmatpush1.msra.mxu0 0.0
    %355 = vmatprep.subr.mxu0 0.0
    %356 = vmatpush1.msra.mxu0 0.0
    %357 = vmatprep.subr.mxu0 0.0
    %358 = vmatpush1.msra.mxu0 0.0
    %359 = vmatprep.subr.mxu0 0.0
    %360 = vmatpush1.msra.mxu0 0.0
    %361 = vmatprep.subr.mxu0 0.0
    %362 = vmatpush1.msra.mxu0 0.0
    %363 = vmatprep.subr.mxu0 0.0
    %364 = vmatpush1.msra.mxu0 0.0
    %365 = vmatprep.subr.mxu0 0.0
    %366 = vmatpush1.msra.mxu0 0.0
    %367 = vmatprep.subr.mxu0 0.0
    %368 = vmatpush1.msra.mxu0 0.0
    %369 = vmatprep.subr.mxu0 0.0
    %370 = vmatpush1.msra.mxu0 0.0
    %371 = vmatprep.subr.mxu0 0.0
    %372 = vmatpush1.msra.mxu0 0.0
    %373 = vmatprep.subr.mxu0 0.0
    %374 = vmatpush1.msra.mxu0 0.0
    %375 = vmatprep.subr.mxu0 0.0
    %376 = vmatpush1.msra.mxu0 0.0
    %377 = vmatprep.subr.mxu0 0.0
    %378 = vmatpush1.msra.mxu0 0.0
    %379 = vmatprep.subr.mxu0 0.0
    %380 = vmatpush1.msra.mxu0 0.0
    %381 = vmatprep.subr.mxu0 0.0
    %382 = vmatpush1.msra.mxu0 0.0
    %383 = vmatprep.subr.mxu0 0.0
    %384 = vmatpush1.msra.mxu0 0.0
    %385 = vmatprep.subr.mxu0 0.0
    %386 = vmatpush1.msra.mxu0 0.0
    %387 = vmatprep.subr.mxu0 0.0
    %388 = vmatpush1.msra.mxu0 0.0
    %389 = vmatprep.subr.mxu0 0.0
    %390 = vmatpush1.msra.mxu0 0.0
    %391 = vmatprep.subr.mxu0 0.0
    %392 = vmatpush1.msra.mxu0 0.0
    %393 = vmatprep.subr.mxu0 0.0
    %394 = vmatpush1.msra.mxu0 0.0
    %395 = vmatprep.subr.mxu0 0.0
    %396 = vmatpush1.msra.mxu0 0.0
    %397 = vmatprep.subr.mxu0 0.0
    %398 = vmatpush1.msra.mxu0 0.0
    %399 = vmatprep.subr.mxu0 0.0
    %400 = vmatpush1.msra.mxu0 0.0
    %401 = vmatprep.subr.mxu0 0.0
    %402 = vmatpush1.msra.mxu0 0.0
    %403 = vmatprep.mubr.f32.mxu0 0.0
    %404 = vmatmul.mubr.f32.gmra.mrb[0].mxu0 %v266
    %v405 = vpop.f32.mrb[0].mxu0
    %v406 = vadd.f32 %v103, %v405
    %v407 = vpop.f32.mrb[0].mxu0
    %v408 = vadd.f32 %v107, %v407
    %409 = vdwg.mxu0
    %s410 = scalar_lea.vmem [#allocation2], 32
    %411 = vst [vmem:[%s410] sm:$0xff] %v335
    %412 = vst [vmem:[%s410 + $0x8] sm:$0xff] %v337
    %413 = vst [vmem:[%s410 + $0x10] sm:$0xff] %v406
    %414 = vst [vmem:[%s410 + $0x18] sm:$0xff] %v408
    %s415 = scalar_lea.vmem %s0, 16
    %v416 = vld [vmem:[%s415] sm:$0xff]
    %v418 = vsel %vm113, %v416, 0
    %420 = vmatprep.subr.mxu0 %v83
    %421 = vmatpush1.msra.mxu0 %v82
    %422 = vmatprep.subr.mxu0 %v87
    %423 = vmatpush1.msra.mxu0 %v86
    %424 = vmatprep.subr.mxu0 0.0
    %425 = vmatpush1.msra.mxu0 0.0
    %426 = vmatprep.subr.mxu0 0.0
    %427 = vmatpush1.msra.mxu0 0.0
    %428 = vmatprep.subr.mxu0 0.0
    %429 = vmatpush1.msra.mxu0 0.0
    %430 = vmatprep.subr.mxu0 0.0
    %431 = vmatpush1.msra.mxu0 0.0
    %432 = vmatprep.subr.mxu0 0.0
    %433 = vmatpush1.msra.mxu0 0.0
    %434 = vmatprep.subr.mxu0 0.0
    %435 = vmatpush1.msra.mxu0 0.0
    %436 = vmatprep.subr.mxu0 0.0
    %437 = vmatpush1.msra.mxu0 0.0
    %438 = vmatprep.subr.mxu0 0.0
    %439 = vmatpush1.msra.mxu0 0.0
    %440 = vmatprep.subr.mxu0 0.0
    %441 = vmatpush1.msra.mxu0 0.0
    %442 = vmatprep.subr.mxu0 0.0
    %443 = vmatpush1.msra.mxu0 0.0
    %444 = vmatprep.subr.mxu0 0.0
    %445 = vmatpush1.msra.mxu0 0.0
    %446 = vmatprep.subr.mxu0 0.0
    %447 = vmatpush1.msra.mxu0 0.0
    %448 = vmatprep.subr.mxu0 0.0
    %449 = vmatpush1.msra.mxu0 0.0
    %450 = vmatprep.subr.mxu0 0.0
    %451 = vmatpush1.msra.mxu0 0.0
    %452 = vmatprep.subr.mxu0 0.0
    %453 = vmatpush1.msra.mxu0 0.0
    %454 = vmatprep.subr.mxu0 0.0
    %455 = vmatpush1.msra.mxu0 0.0
    %456 = vmatprep.subr.mxu0 0.0
    %457 = vmatpush1.msra.mxu0 0.0
    %458 = vmatprep.subr.mxu0 0.0
    %459 = vmatpush1.msra.mxu0 0.0
    %460 = vmatprep.subr.mxu0 0.0
    %461 = vmatpush1.msra.mxu0 0.0
    %462 = vmatprep.subr.mxu0 0.0
    %463 = vmatpush1.msra.mxu0 0.0
    %464 = vmatprep.subr.mxu0 0.0
    %465 = vmatpush1.msra.mxu0 0.0
    %466 = vmatprep.subr.mxu0 0.0
    %467 = vmatpush1.msra.mxu0 0.0
    %468 = vmatprep.subr.mxu0 0.0
    %469 = vmatpush1.msra.mxu0 0.0
    %470 = vmatprep.subr.mxu0 0.0
    %471 = vmatpush1.msra.mxu0 0.0
    %472 = vmatprep.subr.mxu0 0.0
    %473 = vmatpush1.msra.mxu0 0.0
    %474 = vmatprep.subr.mxu0 0.0
    %475 = vmatpush1.msra.mxu0 0.0
    %476 = vmatprep.subr.mxu0 0.0
    %477 = vmatpush1.msra.mxu0 0.0
    %478 = vmatprep.subr.mxu0 0.0
    %479 = vmatpush1.msra.mxu0 0.0
    %480 = vmatprep.subr.mxu0 0.0
    %481 = vmatpush1.msra.mxu0 0.0
    %482 = vmatprep.subr.mxu0 0.0
    %483 = vmatpush1.msra.mxu0 0.0
    %484 = vmatprep.mubr.f32.mxu0 0.0
    %485 = vmatmul.mubr.f32.gmra.mrb[0].mxu0 %v418
    %v486 = vpop.f32.mrb[0].mxu0
    %v487 = vadd.f32 %v95, %v486
    %v488 = vpop.f32.mrb[0].mxu0
    %v489 = vadd.f32 %v99, %v488
    %490 = vdwg.mxu0
    %491 = vmatprep.subr.mxu0 %v85
    %492 = vmatpush1.msra.mxu0 %v84
    %493 = vmatprep.subr.mxu0 %v89
    %494 = vmatpush1.msra.mxu0 %v88
    %495 = vmatprep.subr.mxu0 0.0
    %496 = vmatpush1.msra.mxu0 0.0
    %497 = vmatprep.subr.mxu0 0.0
    %498 = vmatpush1.msra.mxu0 0.0
    %499 = vmatprep.subr.mxu0 0.0
    %500 = vmatpush1.msra.mxu0 0.0
    %501 = vmatprep.subr.mxu0 0.0
    %502 = vmatpush1.msra.mxu0 0.0
    %503 = vmatprep.subr.mxu0 0.0
    %504 = vmatpush1.msra.mxu0 0.0
    %505 = vmatprep.subr.mxu0 0.0
    %506 = vmatpush1.msra.mxu0 0.0
    %507 = vmatprep.subr.mxu0 0.0
    %508 = vmatpush1.msra.mxu0 0.0
    %509 = vmatprep.subr.mxu0 0.0
    %510 = vmatpush1.msra.mxu0 0.0
    %511 = vmatprep.subr.mxu0 0.0
    %512 = vmatpush1.msra.mxu0 0.0
    %513 = vmatprep.subr.mxu0 0.0
    %514 = vmatpush1.msra.mxu0 0.0
    %515 = vmatprep.subr.mxu0 0.0
    %516 = vmatpush1.msra.mxu0 0.0
    %517 = vmatprep.subr.mxu0 0.0
    %518 = vmatpush1.msra.mxu0 0.0
    %519 = vmatprep.subr.mxu0 0.0
    %520 = vmatpush1.msra.mxu0 0.0
    %521 = vmatprep.subr.mxu0 0.0
    %522 = vmatpush1.msra.mxu0 0.0
    %523 = vmatprep.subr.mxu0 0.0
    %524 = vmatpush1.msra.mxu0 0.0
    %525 = vmatprep.subr.mxu0 0.0
    %526 = vmatpush1.msra.mxu0 0.0
    %527 = vmatprep.subr.mxu0 0.0
    %528 = vmatpush1.msra.mxu0 0.0
    %529 = vmatprep.subr.mxu0 0.0
    %530 = vmatpush1.msra.mxu0 0.0
    %531 = vmatprep.subr.mxu0 0.0
    %532 = vmatpush1.msra.mxu0 0.0
    %533 = vmatprep.subr.mxu0 0.0
    %534 = vmatpush1.msra.mxu0 0.0
    %535 = vmatprep.subr.mxu0 0.0
    %536 = vmatpush1.msra.mxu0 0.0
    %537 = vmatprep.subr.mxu0 0.0
    %538 = vmatpush1.msra.mxu0 0.0
    %539 = vmatprep.subr.mxu0 0.0
    %540 = vmatpush1.msra.mxu0 0.0
    %541 = vmatprep.subr.mxu0 0.0
    %542 = vmatpush1.msra.mxu0 0.0
    %543 = vmatprep.subr.mxu0 0.0
    %544 = vmatpush1.msra.mxu0 0.0
    %545 = vmatprep.subr.mxu0 0.0
    %546 = vmatpush1.msra.mxu0 0.0
    %547 = vmatprep.subr.mxu0 0.0
    %548 = vmatpush1.msra.mxu0 0.0
    %549 = vmatprep.subr.mxu0 0.0
    %550 = vmatpush1.msra.mxu0 0.0
    %551 = vmatprep.subr.mxu0 0.0
    %552 = vmatpush1.msra.mxu0 0.0
    %553 = vmatprep.subr.mxu0 0.0
    %554 = vmatpush1.msra.mxu0 0.0
    %555 = vmatprep.mubr.f32.mxu0 0.0
    %556 = vmatmul.mubr.f32.gmra.mrb[0].mxu0 %v418
    %v557 = vpop.f32.mrb[0].mxu0
    %v558 = vadd.f32 %v103, %v557
    %v559 = vpop.f32.mrb[0].mxu0
    %v560 = vadd.f32 %v107, %v559
    %561 = vdwg.mxu0
    %s562 = scalar_lea.vmem [#allocation2], 64
    %563 = vst [vmem:[%s562] sm:$0xff] %v487
    %564 = vst [vmem:[%s562 + $0x8] sm:$0xff] %v489
    %565 = vst [vmem:[%s562 + $0x10] sm:$0xff] %v558
    %566 = vst [vmem:[%s562 + $0x18] sm:$0xff] %v560
    %s567 = scalar_lea.vmem %s0, 24
    %v568 = vld [vmem:[%s567] sm:$0xff]
    %v570 = vsel %vm113, %v568, 0
    %572 = vmatprep.subr.mxu0 %v83
    %573 = vmatpush1.msra.mxu0 %v82
    %574 = vmatprep.subr.mxu0 %v87
    %575 = vmatpush1.msra.mxu0 %v86
    %576 = vmatprep.subr.mxu0 0.0
    %577 = vmatpush1.msra.mxu0 0.0
    %578 = vmatprep.subr.mxu0 0.0
    %579 = vmatpush1.msra.mxu0 0.0
    %580 = vmatprep.subr.mxu0 0.0
    %581 = vmatpush1.msra.mxu0 0.0
    %582 = vmatprep.subr.mxu0 0.0
    %583 = vmatpush1.msra.mxu0 0.0
    %584 = vmatprep.subr.mxu0 0.0
    %585 = vmatpush1.msra.mxu0 0.0
    %586 = vmatprep.subr.mxu0 0.0
    %587 = vmatpush1.msra.mxu0 0.0
    %588 = vmatprep.subr.mxu0 0.0
    %589 = vmatpush1.msra.mxu0 0.0
    %590 = vmatprep.subr.mxu0 0.0
    %591 = vmatpush1.msra.mxu0 0.0
    %592 = vmatprep.subr.mxu0 0.0
    %593 = vmatpush1.msra.mxu0 0.0
    %594 = vmatprep.subr.mxu0 0.0
    %595 = vmatpush1.msra.mxu0 0.0
    %596 = vmatprep.subr.mxu0 0.0
    %597 = vmatpush1.msra.mxu0 0.0
    %598 = vmatprep.subr.mxu0 0.0
    %599 = vmatpush1.msra.mxu0 0.0
    %600 = vmatprep.subr.mxu0 0.0
    %601 = vmatpush1.msra.mxu0 0.0
    %602 = vmatprep.subr.mxu0 0.0
    %603 = vmatpush1.msra.mxu0 0.0
    %604 = vmatprep.subr.mxu0 0.0
    %605 = vmatpush1.msra.mxu0 0.0
    %606 = vmatprep.subr.mxu0 0.0
    %607 = vmatpush1.msra.mxu0 0.0
    %608 = vmatprep.subr.mxu0 0.0
    %609 = vmatpush1.msra.mxu0 0.0
    %610 = vmatprep.subr.mxu0 0.0
    %611 = vmatpush1.msra.mxu0 0.0
    %612 = vmatprep.subr.mxu0 0.0
    %613 = vmatpush1.msra.mxu0 0.0
    %614 = vmatprep.subr.mxu0 0.0
    %615 = vmatpush1.msra.mxu0 0.0
    %616 = vmatprep.subr.mxu0 0.0
    %617 = vmatpush1.msra.mxu0 0.0
    %618 = vmatprep.subr.mxu0 0.0
    %619 = vmatpush1.msra.mxu0 0.0
    %620 = vmatprep.subr.mxu0 0.0
    %621 = vmatpush1.msra.mxu0 0.0
    %622 = vmatprep.subr.mxu0 0.0
    %623 = vmatpush1.msra.mxu0 0.0
    %624 = vmatprep.subr.mxu0 0.0
    %625 = vmatpush1.msra.mxu0 0.0
    %626 = vmatprep.subr.mxu0 0.0
    %627 = vmatpush1.msra.mxu0 0.0
    %628 = vmatprep.subr.mxu0 0.0
    %629 = vmatpush1.msra.mxu0 0.0
    %630 = vmatprep.subr.mxu0 0.0
    %631 = vmatpush1.msra.mxu0 0.0
    %632 = vmatprep.subr.mxu0 0.0
    %633 = vmatpush1.msra.mxu0 0.0
    %634 = vmatprep.subr.mxu0 0.0
    %635 = vmatpush1.msra.mxu0 0.0
    %636 = vmatprep.mubr.f32.mxu0 0.0
    %637 = vmatmul.mubr.f32.gmra.mrb[0].mxu0 %v570
    %v638 = vpop.f32.mrb[0].mxu0
    %v639 = vadd.f32 %v95, %v638
    %v640 = vpop.f32.mrb[0].mxu0
    %v641 = vadd.f32 %v99, %v640
    %642 = vdwg.mxu0
    %643 = vmatprep.subr.mxu0 %v85
    %644 = vmatpush1.msra.mxu0 %v84
    %645 = vmatprep.subr.mxu0 %v89
    %646 = vmatpush1.msra.mxu0 %v88
    %647 = vmatprep.subr.mxu0 0.0
    %648 = vmatpush1.msra.mxu0 0.0
    %649 = vmatprep.subr.mxu0 0.0
    %650 = vmatpush1.msra.mxu0 0.0
    %651 = vmatprep.subr.mxu0 0.0
    %652 = vmatpush1.msra.mxu0 0.0
    %653 = vmatprep.subr.mxu0 0.0
    %654 = vmatpush1.msra.mxu0 0.0
    %655 = vmatprep.subr.mxu0 0.0
    %656 = vmatpush1.msra.mxu0 0.0
    %657 = vmatprep.subr.mxu0 0.0
    %658 = vmatpush1.msra.mxu0 0.0
    %659 = vmatprep.subr.mxu0 0.0
    %660 = vmatpush1.msra.mxu0 0.0
    %661 = vmatprep.subr.mxu0 0.0
    %662 = vmatpush1.msra.mxu0 0.0
    %663 = vmatprep.subr.mxu0 0.0
    %664 = vmatpush1.msra.mxu0 0.0
    %665 = vmatprep.subr.mxu0 0.0
    %666 = vmatpush1.msra.mxu0 0.0
    %667 = vmatprep.subr.mxu0 0.0
    %668 = vmatpush1.msra.mxu0 0.0
    %669 = vmatprep.subr.mxu0 0.0
    %670 = vmatpush1.msra.mxu0 0.0
    %671 = vmatprep.subr.mxu0 0.0
    %672 = vmatpush1.msra.mxu0 0.0
    %673 = vmatprep.subr.mxu0 0.0
    %674 = vmatpush1.msra.mxu0 0.0
    %675 = vmatprep.subr.mxu0 0.0
    %676 = vmatpush1.msra.mxu0 0.0
    %677 = vmatprep.subr.mxu0 0.0
    %678 = vmatpush1.msra.mxu0 0.0
    %679 = vmatprep.subr.mxu0 0.0
    %680 = vmatpush1.msra.mxu0 0.0
    %681 = vmatprep.subr.mxu0 0.0
    %682 = vmatpush1.msra.mxu0 0.0
    %683 = vmatprep.subr.mxu0 0.0
    %684 = vmatpush1.msra.mxu0 0.0
    %685 = vmatprep.subr.mxu0 0.0
    %686 = vmatpush1.msra.mxu0 0.0
    %687 = vmatprep.subr.mxu0 0.0
    %688 = vmatpush1.msra.mxu0 0.0
    %689 = vmatprep.subr.mxu0 0.0
    %690 = vmatpush1.msra.mxu0 0.0
    %691 = vmatprep.subr.mxu0 0.0
    %692 = vmatpush1.msra.mxu0 0.0
    %693 = vmatprep.subr.mxu0 0.0
    %694 = vmatpush1.msra.mxu0 0.0
    %695 = vmatprep.subr.mxu0 0.0
    %696 = vmatpush1.msra.mxu0 0.0
    %697 = vmatprep.subr.mxu0 0.0
    %698 = vmatpush1.msra.mxu0 0.0
    %699 = vmatprep.subr.mxu0 0.0
    %700 = vmatpush1.msra.mxu0 0.0
    %701 = vmatprep.subr.mxu0 0.0
    %702 = vmatpush1.msra.mxu0 0.0
    %703 = vmatprep.subr.mxu0 0.0
    %704 = vmatpush1.msra.mxu0 0.0
    %705 = vmatprep.subr.mxu0 0.0
    %706 = vmatpush1.msra.mxu0 0.0
    %707 = vmatprep.mubr.f32.mxu0 0.0
    %708 = vmatmul.mubr.f32.gmra.mrb[0].mxu0 %v570
    %v709 = vpop.f32.mrb[0].mxu0
    %v710 = vadd.f32 %v103, %v709
    %v711 = vpop.f32.mrb[0].mxu0
    %v712 = vadd.f32 %v107, %v711
    %713 = vdwg.mxu0
    %s714 = scalar_lea.vmem [#allocation2], 96
    %715 = vst [vmem:[%s714] sm:$0xff] %v639
    %716 = vst [vmem:[%s714 + $0x8] sm:$0xff] %v641
    %717 = vst [vmem:[%s714 + $0x10] sm:$0xff] %v710
    %718 = vst [vmem:[%s714 + $0x18] sm:$0xff] %v712
    %s719 = scalar_lea.vmem %s0, 32
    %v720 = vld [vmem:[%s719] sm:$0xff]
    %v722 = vsel %vm113, %v720, 0
    %724 = vmatprep.subr.mxu0 %v83
    %725 = vmatpush1.msra.mxu0 %v82
    %726 = vmatprep.subr.mxu0 %v87
    %727 = vmatpush1.msra.mxu0 %v86
    %728 = vmatprep.subr.mxu0 0.0
    %729 = vmatpush1.msra.mxu0 0.0
    %730 = vmatprep.subr.mxu0 0.0
    %731 = vmatpush1.msra.mxu0 0.0
    %732 = vmatprep.subr.mxu0 0.0
    %733 = vmatpush1.msra.mxu0 0.0
    %734 = vmatprep.subr.mxu0 0.0
    %735 = vmatpush1.msra.mxu0 0.0
    %736 = vmatprep.subr.mxu0 0.0
    %737 = vmatpush1.msra.mxu0 0.0
    %738 = vmatprep.subr.mxu0 0.0
    %739 = vmatpush1.msra.mxu0 0.0
    %740 = vmatprep.subr.mxu0 0.0
    %741 = vmatpush1.msra.mxu0 0.0
    %742 = vmatprep.subr.mxu0 0.0
    %743 = vmatpush1.msra.mxu0 0.0
    %744 = vmatprep.subr.mxu0 0.0
    %745 = vmatpush1.msra.mxu0 0.0
    %746 = vmatprep.subr.mxu0 0.0
    %747 = vmatpush1.msra.mxu0 0.0
    %748 = vmatprep.subr.mxu0 0.0
    %749 = vmatpush1.msra.mxu0 0.0
    %750 = vmatprep.subr.mxu0 0.0
    %751 = vmatpush1.msra.mxu0 0.0
    %752 = vmatprep.subr.mxu0 0.0
    %753 = vmatpush1.msra.mxu0 0.0
    %754 = vmatprep.subr.mxu0 0.0
    %755 = vmatpush1.msra.mxu0 0.0
    %756 = vmatprep.subr.mxu0 0.0
    %757 = vmatpush1.msra.mxu0 0.0
    %758 = vmatprep.subr.mxu0 0.0
    %759 = vmatpush1.msra.mxu0 0.0
    %760 = vmatprep.subr.mxu0 0.0
    %761 = vmatpush1.msra.mxu0 0.0
    %762 = vmatprep.subr.mxu0 0.0
    %763 = vmatpush1.msra.mxu0 0.0
    %764 = vmatprep.subr.mxu0 0.0
    %765 = vmatpush1.msra.mxu0 0.0
    %766 = vmatprep.subr.mxu0 0.0
    %767 = vmatpush1.msra.mxu0 0.0
    %768 = vmatprep.subr.mxu0 0.0
    %769 = vmatpush1.msra.mxu0 0.0
    %770 = vmatprep.subr.mxu0 0.0
    %771 = vmatpush1.msra.mxu0 0.0
    %772 = vmatprep.subr.mxu0 0.0
    %773 = vmatpush1.msra.mxu0 0.0
    %774 = vmatprep.subr.mxu0 0.0
    %775 = vmatpush1.msra.mxu0 0.0
    %776 = vmatprep.subr.mxu0 0.0
    %777 = vmatpush1.msra.mxu0 0.0
    %778 = vmatprep.subr.mxu0 0.0
    %779 = vmatpush1.msra.mxu0 0.0
    %780 = vmatprep.subr.mxu0 0.0
    %781 = vmatpush1.msra.mxu0 0.0
    %782 = vmatprep.subr.mxu0 0.0
    %783 = vmatpush1.msra.mxu0 0.0
    %784 = vmatprep.subr.mxu0 0.0
    %785 = vmatpush1.msra.mxu0 0.0
    %786 = vmatprep.subr.mxu0 0.0
    %787 = vmatpush1.msra.mxu0 0.0
    %788 = vmatprep.mubr.f32.mxu0 0.0
    %789 = vmatmul.mubr.f32.gmra.mrb[0].mxu0 %v722
    %v790 = vpop.f32.mrb[0].mxu0
    %v791 = vadd.f32 %v95, %v790
    %v792 = vpop.f32.mrb[0].mxu0
    %v793 = vadd.f32 %v99, %v792
    %794 = vdwg.mxu0
    %795 = vmatprep.subr.mxu0 %v85
    %796 = vmatpush1.msra.mxu0 %v84
    %797 = vmatprep.subr.mxu0 %v89
    %798 = vmatpush1.msra.mxu0 %v88
    %799 = vmatprep.subr.mxu0 0.0
    %800 = vmatpush1.msra.mxu0 0.0
    %801 = vmatprep.subr.mxu0 0.0
    %802 = vmatpush1.msra.mxu0 0.0
    %803 = vmatprep.subr.mxu0 0.0
    %804 = vmatpush1.msra.mxu0 0.0
    %805 = vmatprep.subr.mxu0 0.0
    %806 = vmatpush1.msra.mxu0 0.0
    %807 = vmatprep.subr.mxu0 0.0
    %808 = vmatpush1.msra.mxu0 0.0
    %809 = vmatprep.subr.mxu0 0.0
    %810 = vmatpush1.msra.mxu0 0.0
    %811 = vmatprep.subr.mxu0 0.0
    %812 = vmatpush1.msra.mxu0 0.0
    %813 = vmatprep.subr.mxu0 0.0
    %814 = vmatpush1.msra.mxu0 0.0
    %815 = vmatprep.subr.mxu0 0.0
    %816 = vmatpush1.msra.mxu0 0.0
    %817 = vmatprep.subr.mxu0 0.0
    %818 = vmatpush1.msra.mxu0 0.0
    %819 = vmatprep.subr.mxu0 0.0
    %820 = vmatpush1.msra.mxu0 0.0
    %821 = vmatprep.subr.mxu0 0.0
    %822 = vmatpush1.msra.mxu0 0.0
    %823 = vmatprep.subr.mxu0 0.0
    %824 = vmatpush1.msra.mxu0 0.0
    %825 = vmatprep.subr.mxu0 0.0
    %826 = vmatpush1.msra.mxu0 0.0
    %827 = vmatprep.subr.mxu0 0.0
    %828 = vmatpush1.msra.mxu0 0.0
    %829 = vmatprep.subr.mxu0 0.0
    %830 = vmatpush1.msra.mxu0 0.0
    %831 = vmatprep.subr.mxu0 0.0
    %832 = vmatpush1.msra.mxu0 0.0
    %833 = vmatprep.subr.mxu0 0.0
    %834 = vmatpush1.msra.mxu0 0.0
    %835 = vmatprep.subr.mxu0 0.0
    %836 = vmatpush1.msra.mxu0 0.0
    %837 = vmatprep.subr.mxu0 0.0
    %838 = vmatpush1.msra.mxu0 0.0
    %839 = vmatprep.subr.mxu0 0.0
    %840 = vmatpush1.msra.mxu0 0.0
    %841 = vmatprep.subr.mxu0 0.0
    %842 = vmatpush1.msra.mxu0 0.0
    %843 = vmatprep.subr.mxu0 0.0
    %844 = vmatpush1.msra.mxu0 0.0
    %845 = vmatprep.subr.mxu0 0.0
    %846 = vmatpush1.msra.mxu0 0.0
    %847 = vmatprep.subr.mxu0 0.0
    %848 = vmatpush1.msra.mxu0 0.0
    %849 = vmatprep.subr.mxu0 0.0
    %850 = vmatpush1.msra.mxu0 0.0
    %851 = vmatprep.subr.mxu0 0.0
    %852 = vmatpush1.msra.mxu0 0.0
    %853 = vmatprep.subr.mxu0 0.0
    %854 = vmatpush1.msra.mxu0 0.0
    %855 = vmatprep.subr.mxu0 0.0
    %856 = vmatpush1.msra.mxu0 0.0
    %857 = vmatprep.subr.mxu0 0.0
    %858 = vmatpush1.msra.mxu0 0.0
    %859 = vmatprep.mubr.f32.mxu0 0.0
    %860 = vmatmul.mubr.f32.gmra.mrb[0].mxu0 %v722
    %v861 = vpop.f32.mrb[0].mxu0
    %v862 = vadd.f32 %v103, %v861
    %v863 = vpop.f32.mrb[0].mxu0
    %v864 = vadd.f32 %v107, %v863
    %865 = vdwg.mxu0
    %s866 = scalar_lea.vmem [#allocation2], 128
    %867 = vst [vmem:[%s866] sm:$0xff] %v791
    %868 = vst [vmem:[%s866 + $0x8] sm:$0xff] %v793
    %869 = vst [vmem:[%s866 + $0x10] sm:$0xff] %v862
    %870 = vst [vmem:[%s866 + $0x18] sm:$0xff] %v864
    %s871 = scalar_lea.vmem %s0, 40
    %v872 = vld [vmem:[%s871] sm:$0xff]
    %v874 = vsel %vm113, %v872, 0
    %876 = vmatprep.subr.mxu0 %v83
    %877 = vmatpush1.msra.mxu0 %v82
    %878 = vmatprep.subr.mxu0 %v87
    %879 = vmatpush1.msra.mxu0 %v86
    %880 = vmatprep.subr.mxu0 0.0
    %881 = vmatpush1.msra.mxu0 0.0
    %882 = vmatprep.subr.mxu0 0.0
    %883 = vmatpush1.msra.mxu0 0.0
    %884 = vmatprep.subr.mxu0 0.0
    %885 = vmatpush1.msra.mxu0 0.0
    %886 = vmatprep.subr.mxu0 0.0
    %887 = vmatpush1.msra.mxu0 0.0
    %888 = vmatprep.subr.mxu0 0.0
    %889 = vmatpush1.msra.mxu0 0.0
    %890 = vmatprep.subr.mxu0 0.0
    %891 = vmatpush1.msra.mxu0 0.0
    %892 = vmatprep.subr.mxu0 0.0
    %893 = vmatpush1.msra.mxu0 0.0
    %894 = vmatprep.subr.mxu0 0.0
    %895 = vmatpush1.msra.mxu0 0.0
    %896 = vmatprep.subr.mxu0 0.0
    %897 = vmatpush1.msra.mxu0 0.0
    %898 = vmatprep.subr.mxu0 0.0
    %899 = vmatpush1.msra.mxu0 0.0
    %900 = vmatprep.subr.mxu0 0.0
    %901 = vmatpush1.msra.mxu0 0.0
    %902 = vmatprep.subr.mxu0 0.0
    %903 = vmatpush1.msra.mxu0 0.0
    %904 = vmatprep.subr.mxu0 0.0
    %905 = vmatpush1.msra.mxu0 0.0
    %906 = vmatprep.subr.mxu0 0.0
    %907 = vmatpush1.msra.mxu0 0.0
    %908 = vmatprep.subr.mxu0 0.0
    %909 = vmatpush1.msra.mxu0 0.0
    %910 = vmatprep.subr.mxu0 0.0
    %911 = vmatpush1.msra.mxu0 0.0
    %912 = vmatprep.subr.mxu0 0.0
    %913 = vmatpush1.msra.mxu0 0.0
    %914 = vmatprep.subr.mxu0 0.0
    %915 = vmatpush1.msra.mxu0 0.0
    %916 = vmatprep.subr.mxu0 0.0
    %917 = vmatpush1.msra.mxu0 0.0
    %918 = vmatprep.subr.mxu0 0.0
    %919 = vmatpush1.msra.mxu0 0.0
    %920 = vmatprep.subr.mxu0 0.0
    %921 = vmatpush1.msra.mxu0 0.0
    %922 = vmatprep.subr.mxu0 0.0
    %923 = vmatpush1.msra.mxu0 0.0
    %924 = vmatprep.subr.mxu0 0.0
    %925 = vmatpush1.msra.mxu0 0.0
    %926 = vmatprep.subr.mxu0 0.0
    %927 = vmatpush1.msra.mxu0 0.0
    %928 = vmatprep.subr.mxu0 0.0
    %929 = vmatpush1.msra.mxu0 0.0
    %930 = vmatprep.subr.mxu0 0.0
    %931 = vmatpush1.msra.mxu0 0.0
    %932 = vmatprep.subr.mxu0 0.0
    %933 = vmatpush1.msra.mxu0 0.0
    %934 = vmatprep.subr.mxu0 0.0
    %935 = vmatpush1.msra.mxu0 0.0
    %936 = vmatprep.subr.mxu0 0.0
    %937 = vmatpush1.msra.mxu0 0.0
    %938 = vmatprep.subr.mxu0 0.0
    %939 = vmatpush1.msra.mxu0 0.0
    %940 = vmatprep.mubr.f32.mxu0 0.0
    %941 = vmatmul.mubr.f32.gmra.mrb[0].mxu0 %v874
    %v942 = vpop.f32.mrb[0].mxu0
    %v943 = vadd.f32 %v95, %v942
    %v944 = vpop.f32.mrb[0].mxu0
    %v945 = vadd.f32 %v99, %v944
    %946 = vdwg.mxu0
    %947 = vmatprep.subr.mxu0 %v85
    %948 = vmatpush1.msra.mxu0 %v84
    %949 = vmatprep.subr.mxu0 %v89
    %950 = vmatpush1.msra.mxu0 %v88
    %951 = vmatprep.subr.mxu0 0.0
    %952 = vmatpush1.msra.mxu0 0.0
    %953 = vmatprep.subr.mxu0 0.0
    %954 = vmatpush1.msra.mxu0 0.0
    %955 = vmatprep.subr.mxu0 0.0
    %956 = vmatpush1.msra.mxu0 0.0
    %957 = vmatprep.subr.mxu0 0.0
    %958 = vmatpush1.msra.mxu0 0.0
    %959 = vmatprep.subr.mxu0 0.0
    %960 = vmatpush1.msra.mxu0 0.0
    %961 = vmatprep.subr.mxu0 0.0
    %962 = vmatpush1.msra.mxu0 0.0
    %963 = vmatprep.subr.mxu0 0.0
    %964 = vmatpush1.msra.mxu0 0.0
    %965 = vmatprep.subr.mxu0 0.0
    %966 = vmatpush1.msra.mxu0 0.0
    %967 = vmatprep.subr.mxu0 0.0
    %968 = vmatpush1.msra.mxu0 0.0
    %969 = vmatprep.subr.mxu0 0.0
    %970 = vmatpush1.msra.mxu0 0.0
    %971 = vmatprep.subr.mxu0 0.0
    %972 = vmatpush1.msra.mxu0 0.0
    %973 = vmatprep.subr.mxu0 0.0
    %974 = vmatpush1.msra.mxu0 0.0
    %975 = vmatprep.subr.mxu0 0.0
    %976 = vmatpush1.msra.mxu0 0.0
    %977 = vmatprep.subr.mxu0 0.0
    %978 = vmatpush1.msra.mxu0 0.0
    %979 = vmatprep.subr.mxu0 0.0
    %980 = vmatpush1.msra.mxu0 0.0
    %981 = vmatprep.subr.mxu0 0.0
    %982 = vmatpush1.msra.mxu0 0.0
    %983 = vmatprep.subr.mxu0 0.0
    %984 = vmatpush1.msra.mxu0 0.0
    %985 = vmatprep.subr.mxu0 0.0
    %986 = vmatpush1.msra.mxu0 0.0
    %987 = vmatprep.subr.mxu0 0.0
    %988 = vmatpush1.msra.mxu0 0.0
    %989 = vmatprep.subr.mxu0 0.0
    %990 = vmatpush1.msra.mxu0 0.0
    %991 = vmatprep.subr.mxu0 0.0
    %992 = vmatpush1.msra.mxu0 0.0
    %993 = vmatprep.subr.mxu0 0.0
    %994 = vmatpush1.msra.mxu0 0.0
    %995 = vmatprep.subr.mxu0 0.0
    %996 = vmatpush1.msra.mxu0 0.0
    %997 = vmatprep.subr.mxu0 0.0
    %998 = vmatpush1.msra.mxu0 0.0
    %999 = vmatprep.subr.mxu0 0.0
    %1000 = vmatpush1.msra.mxu0 0.0
    %1001 = vmatprep.subr.mxu0 0.0
    %1002 = vmatpush1.msra.mxu0 0.0
    %1003 = vmatprep.subr.mxu0 0.0
    %1004 = vmatpush1.msra.mxu0 0.0
    %1005 = vmatprep.subr.mxu0 0.0
    %1006 = vmatpush1.msra.mxu0 0.0
    %1007 = vmatprep.subr.mxu0 0.0
    %1008 = vmatpush1.msra.mxu0 0.0
    %1009 = vmatprep.subr.mxu0 0.0
    %1010 = vmatpush1.msra.mxu0 0.0
    %1011 = vmatprep.mubr.f32.mxu0 0.0
    %1012 = vmatmul.mubr.f32.gmra.mrb[0].mxu0 %v874
    %v1013 = vpop.f32.mrb[0].mxu0
    %v1014 = vadd.f32 %v103, %v1013
    %v1015 = vpop.f32.mrb[0].mxu0
    %v1016 = vadd.f32 %v107, %v1015
    %1017 = vdwg.mxu0
    %s1018 = scalar_lea.vmem [#allocation2], 160
    %1019 = vst [vmem:[%s1018] sm:$0xff] %v943
    %1020 = vst [vmem:[%s1018 + $0x8] sm:$0xff] %v945
    %1021 = vst [vmem:[%s1018 + $0x10] sm:$0xff] %v1014
    %1022 = vst [vmem:[%s1018 + $0x18] sm:$0xff] %v1016
    %s1023 = scalar_lea.vmem %s0, 48
    %v1024 = vld [vmem:[%s1023] sm:$0xff]
    %v1026 = vsel %vm113, %v1024, 0
    %1028 = vmatprep.subr.mxu0 %v83
    %1029 = vmatpush1.msra.mxu0 %v82
    %1030 = vmatprep.subr.mxu0 %v87
    %1031 = vmatpush1.msra.mxu0 %v86
    %1032 = vmatprep.subr.mxu0 0.0
    %1033 = vmatpush1.msra.mxu0 0.0
    %1034 = vmatprep.subr.mxu0 0.0
    %1035 = vmatpush1.msra.mxu0 0.0
    %1036 = vmatprep.subr.mxu0 0.0
    %1037 = vmatpush1.msra.mxu0 0.0
    %1038 = vmatprep.subr.mxu0 0.0
    %1039 = vmatpush1.msra.mxu0 0.0
    %1040 = vmatprep.subr.mxu0 0.0
    %1041 = vmatpush1.msra.mxu0 0.0
    %1042 = vmatprep.subr.mxu0 0.0
    %1043 = vmatpush1.msra.mxu0 0.0
    %1044 = vmatprep.subr.mxu0 0.0
    %1045 = vmatpush1.msra.mxu0 0.0
    %1046 = vmatprep.subr.mxu0 0.0
    %1047 = vmatpush1.msra.mxu0 0.0
    %1048 = vmatprep.subr.mxu0 0.0
    %1049 = vmatpush1.msra.mxu0 0.0
    %1050 = vmatprep.subr.mxu0 0.0
    %1051 = vmatpush1.msra.mxu0 0.0
    %1052 = vmatprep.subr.mxu0 0.0
    %1053 = vmatpush1.msra.mxu0 0.0
    %1054 = vmatprep.subr.mxu0 0.0
    %1055 = vmatpush1.msra.mxu0 0.0
    %1056 = vmatprep.subr.mxu0 0.0
    %1057 = vmatpush1.msra.mxu0 0.0
    %1058 = vmatprep.subr.mxu0 0.0
    %1059 = vmatpush1.msra.mxu0 0.0
    %1060 = vmatprep.subr.mxu0 0.0
    %1061 = vmatpush1.msra.mxu0 0.0
    %1062 = vmatprep.subr.mxu0 0.0
    %1063 = vmatpush1.msra.mxu0 0.0
    %1064 = vmatprep.subr.mxu0 0.0
    %1065 = vmatpush1.msra.mxu0 0.0
    %1066 = vmatprep.subr.mxu0 0.0
    %1067 = vmatpush1.msra.mxu0 0.0
    %1068 = vmatprep.subr.mxu0 0.0
    %1069 = vmatpush1.msra.mxu0 0.0
    %1070 = vmatprep.subr.mxu0 0.0
    %1071 = vmatpush1.msra.mxu0 0.0
    %1072 = vmatprep.subr.mxu0 0.0
    %1073 = vmatpush1.msra.mxu0 0.0
    %1074 = vmatprep.subr.mxu0 0.0
    %1075 = vmatpush1.msra.mxu0 0.0
    %1076 = vmatprep.subr.mxu0 0.0
    %1077 = vmatpush1.msra.mxu0 0.0
    %1078 = vmatprep.subr.mxu0 0.0
    %1079 = vmatpush1.msra.mxu0 0.0
    %1080 = vmatprep.subr.mxu0 0.0
    %1081 = vmatpush1.msra.mxu0 0.0
    %1082 = vmatprep.subr.mxu0 0.0
    %1083 = vmatpush1.msra.mxu0 0.0
    %1084 = vmatprep.subr.mxu0 0.0
    %1085 = vmatpush1.msra.mxu0 0.0
    %1086 = vmatprep.subr.mxu0 0.0
    %1087 = vmatpush1.msra.mxu0 0.0
    %1088 = vmatprep.subr.mxu0 0.0
    %1089 = vmatpush1.msra.mxu0 0.0
    %1090 = vmatprep.subr.mxu0 0.0
    %1091 = vmatpush1.msra.mxu0 0.0
    %1092 = vmatprep.mubr.f32.mxu0 0.0
    %1093 = vmatmul.mubr.f32.gmra.mrb[0].mxu0 %v1026
    %v1094 = vpop.f32.mrb[0].mxu0
    %v1095 = vadd.f32 %v95, %v1094
    %v1096 = vpop.f32.mrb[0].mxu0
    %v1097 = vadd.f32 %v99, %v1096
    %1098 = vdwg.mxu0
    %1099 = vmatprep.subr.mxu0 %v85
    %1100 = vmatpush1.msra.mxu0 %v84
    %1101 = vmatprep.subr.mxu0 %v89
    %1102 = vmatpush1.msra.mxu0 %v88
    %1103 = vmatprep.subr.mxu0 0.0
    %1104 = vmatpush1.msra.mxu0 0.0
    %1105 = vmatprep.subr.mxu0 0.0
    %1106 = vmatpush1.msra.mxu0 0.0
    %1107 = vmatprep.subr.mxu0 0.0
    %1108 = vmatpush1.msra.mxu0 0.0
    %1109 = vmatprep.subr.mxu0 0.0
    %1110 = vmatpush1.msra.mxu0 0.0
    %1111 = vmatprep.subr.mxu0 0.0
    %1112 = vmatpush1.msra.mxu0 0.0
    %1113 = vmatprep.subr.mxu0 0.0
    %1114 = vmatpush1.msra.mxu0 0.0
    %1115 = vmatprep.subr.mxu0 0.0
    %1116 = vmatpush1.msra.mxu0 0.0
    %1117 = vmatprep.subr.mxu0 0.0
    %1118 = vmatpush1.msra.mxu0 0.0
    %1119 = vmatprep.subr.mxu0 0.0
    %1120 = vmatpush1.msra.mxu0 0.0
    %1121 = vmatprep.subr.mxu0 0.0
    %1122 = vmatpush1.msra.mxu0 0.0
    %1123 = vmatprep.subr.mxu0 0.0
    %1124 = vmatpush1.msra.mxu0 0.0
    %1125 = vmatprep.subr.mxu0 0.0
    %1126 = vmatpush1.msra.mxu0 0.0
    %1127 = vmatprep.subr.mxu0 0.0
    %1128 = vmatpush1.msra.mxu0 0.0
    %1129 = vmatprep.subr.mxu0 0.0
    %1130 = vmatpush1.msra.mxu0 0.0
    %1131 = vmatprep.subr.mxu0 0.0
    %1132 = vmatpush1.msra.mxu0 0.0
    %1133 = vmatprep.subr.mxu0 0.0
    %1134 = vmatpush1.msra.mxu0 0.0
    %1135 = vmatprep.subr.mxu0 0.0
    %1136 = vmatpush1.msra.mxu0 0.0
    %1137 = vmatprep.subr.mxu0 0.0
    %1138 = vmatpush1.msra.mxu0 0.0
    %1139 = vmatprep.subr.mxu0 0.0
    %1140 = vmatpush1.msra.mxu0 0.0
    %1141 = vmatprep.subr.mxu0 0.0
    %1142 = vmatpush1.msra.mxu0 0.0
    %1143 = vmatprep.subr.mxu0 0.0
    %1144 = vmatpush1.msra.mxu0 0.0
    %1145 = vmatprep.subr.mxu0 0.0
    %1146 = vmatpush1.msra.mxu0 0.0
    %1147 = vmatprep.subr.mxu0 0.0
    %1148 = vmatpush1.msra.mxu0 0.0
    %1149 = vmatprep.subr.mxu0 0.0
    %1150 = vmatpush1.msra.mxu0 0.0
    %1151 = vmatprep.subr.mxu0 0.0
    %1152 = vmatpush1.msra.mxu0 0.0
    %1153 = vmatprep.subr.mxu0 0.0
    %1154 = vmatpush1.msra.mxu0 0.0
    %1155 = vmatprep.subr.mxu0 0.0
    %1156 = vmatpush1.msra.mxu0 0.0
    %1157 = vmatprep.subr.mxu0 0.0
    %1158 = vmatpush1.msra.mxu0 0.0
    %1159 = vmatprep.subr.mxu0 0.0
    %1160 = vmatpush1.msra.mxu0 0.0
    %1161 = vmatprep.subr.mxu0 0.0
    %1162 = vmatpush1.msra.mxu0 0.0
    %1163 = vmatprep.mubr.f32.mxu0 0.0
    %1164 = vmatmul.mubr.f32.gmra.mrb[0].mxu0 %v1026
    %v1165 = vpop.f32.mrb[0].mxu0
    %v1166 = vadd.f32 %v103, %v1165
    %v1167 = vpop.f32.mrb[0].mxu0
    %v1168 = vadd.f32 %v107, %v1167
    %1169 = vdwg.mxu0
    %s1170 = scalar_lea.vmem [#allocation2], 192
    %1171 = vst [vmem:[%s1170] sm:$0xff] %v1095
    %1172 = vst [vmem:[%s1170 + $0x8] sm:$0xff] %v1097
    %1173 = vst [vmem:[%s1170 + $0x10] sm:$0xff] %v1166
    %1174 = vst [vmem:[%s1170 + $0x18] sm:$0xff] %v1168
    %s1175 = scalar_lea.vmem %s0, 56
    %v1176 = vld [vmem:[%s1175] sm:$0xff]
    %v1178 = vsel %vm113, %v1176, 0
    %1180 = vmatprep.subr.mxu0 %v83
    %1181 = vmatpush1.msra.mxu0 %v82
    %1182 = vmatprep.subr.mxu0 %v87
    %1183 = vmatpush1.msra.mxu0 %v86
    %1184 = vmatprep.subr.mxu0 0.0
    %1185 = vmatpush1.msra.mxu0 0.0
    %1186 = vmatprep.subr.mxu0 0.0
    %1187 = vmatpush1.msra.mxu0 0.0
    %1188 = vmatprep.subr.mxu0 0.0
    %1189 = vmatpush1.msra.mxu0 0.0
    %1190 = vmatprep.subr.mxu0 0.0
    %1191 = vmatpush1.msra.mxu0 0.0
    %1192 = vmatprep.subr.mxu0 0.0
    %1193 = vmatpush1.msra.mxu0 0.0
    %1194 = vmatprep.subr.mxu0 0.0
    %1195 = vmatpush1.msra.mxu0 0.0
    %1196 = vmatprep.subr.mxu0 0.0
    %1197 = vmatpush1.msra.mxu0 0.0
    %1198 = vmatprep.subr.mxu0 0.0
    %1199 = vmatpush1.msra.mxu0 0.0
    %1200 = vmatprep.subr.mxu0 0.0
    %1201 = vmatpush1.msra.mxu0 0.0
    %1202 = vmatprep.subr.mxu0 0.0
    %1203 = vmatpush1.msra.mxu0 0.0
    %1204 = vmatprep.subr.mxu0 0.0
    %1205 = vmatpush1.msra.mxu0 0.0
    %1206 = vmatprep.subr.mxu0 0.0
    %1207 = vmatpush1.msra.mxu0 0.0
    %1208 = vmatprep.subr.mxu0 0.0
    %1209 = vmatpush1.msra.mxu0 0.0
    %1210 = vmatprep.subr.mxu0 0.0
    %1211 = vmatpush1.msra.mxu0 0.0
    %1212 = vmatprep.subr.mxu0 0.0
    %1213 = vmatpush1.msra.mxu0 0.0
    %1214 = vmatprep.subr.mxu0 0.0
    %1215 = vmatpush1.msra.mxu0 0.0
    %1216 = vmatprep.subr.mxu0 0.0
    %1217 = vmatpush1.msra.mxu0 0.0
    %1218 = vmatprep.subr.mxu0 0.0
    %1219 = vmatpush1.msra.mxu0 0.0
    %1220 = vmatprep.subr.mxu0 0.0
    %1221 = vmatpush1.msra.mxu0 0.0
    %1222 = vmatprep.subr.mxu0 0.0
    %1223 = vmatpush1.msra.mxu0 0.0
    %1224 = vmatprep.subr.mxu0 0.0
    %1225 = vmatpush1.msra.mxu0 0.0
    %1226 = vmatprep.subr.mxu0 0.0
    %1227 = vmatpush1.msra.mxu0 0.0
    %1228 = vmatprep.subr.mxu0 0.0
    %1229 = vmatpush1.msra.mxu0 0.0
    %1230 = vmatprep.subr.mxu0 0.0
    %1231 = vmatpush1.msra.mxu0 0.0
    %1232 = vmatprep.subr.mxu0 0.0
    %1233 = vmatpush1.msra.mxu0 0.0
    %1234 = vmatprep.subr.mxu0 0.0
    %1235 = vmatpush1.msra.mxu0 0.0
    %1236 = vmatprep.subr.mxu0 0.0
    %1237 = vmatpush1.msra.mxu0 0.0
    %1238 = vmatprep.subr.mxu0 0.0
    %1239 = vmatpush1.msra.mxu0 0.0
    %1240 = vmatprep.subr.mxu0 0.0
    %1241 = vmatpush1.msra.mxu0 0.0
    %1242 = vmatprep.subr.mxu0 0.0
    %1243 = vmatpush1.msra.mxu0 0.0
    %1244 = vmatprep.mubr.f32.mxu0 0.0
    %1245 = vmatmul.mubr.f32.gmra.mrb[0].mxu0 %v1178
    %v1246 = vpop.f32.mrb[0].mxu0
    %v1247 = vadd.f32 %v95, %v1246
    %v1248 = vpop.f32.mrb[0].mxu0
    %v1249 = vadd.f32 %v99, %v1248
    %1250 = vdwg.mxu0
    %1251 = vmatprep.subr.mxu0 %v85
    %1252 = vmatpush1.msra.mxu0 %v84
    %1253 = vmatprep.subr.mxu0 %v89
    %1254 = vmatpush1.msra.mxu0 %v88
    %1255 = vmatprep.subr.mxu0 0.0
    %1256 = vmatpush1.msra.mxu0 0.0
    %1257 = vmatprep.subr.mxu0 0.0
    %1258 = vmatpush1.msra.mxu0 0.0
    %1259 = vmatprep.subr.mxu0 0.0
    %1260 = vmatpush1.msra.mxu0 0.0
    %1261 = vmatprep.subr.mxu0 0.0
    %1262 = vmatpush1.msra.mxu0 0.0
    %1263 = vmatprep.subr.mxu0 0.0
    %1264 = vmatpush1.msra.mxu0 0.0
    %1265 = vmatprep.subr.mxu0 0.0
    %1266 = vmatpush1.msra.mxu0 0.0
    %1267 = vmatprep.subr.mxu0 0.0
    %1268 = vmatpush1.msra.mxu0 0.0
    %1269 = vmatprep.subr.mxu0 0.0
    %1270 = vmatpush1.msra.mxu0 0.0
    %1271 = vmatprep.subr.mxu0 0.0
    %1272 = vmatpush1.msra.mxu0 0.0
    %1273 = vmatprep.subr.mxu0 0.0
    %1274 = vmatpush1.msra.mxu0 0.0
    %1275 = vmatprep.subr.mxu0 0.0
    %1276 = vmatpush1.msra.mxu0 0.0
    %1277 = vmatprep.subr.mxu0 0.0
    %1278 = vmatpush1.msra.mxu0 0.0
    %1279 = vmatprep.subr.mxu0 0.0
    %1280 = vmatpush1.msra.mxu0 0.0
    %1281 = vmatprep.subr.mxu0 0.0
    %1282 = vmatpush1.msra.mxu0 0.0
    %1283 = vmatprep.subr.mxu0 0.0
    %1284 = vmatpush1.msra.mxu0 0.0
    %1285 = vmatprep.subr.mxu0 0.0
    %1286 = vmatpush1.msra.mxu0 0.0
    %1287 = vmatprep.subr.mxu0 0.0
    %1288 = vmatpush1.msra.mxu0 0.0
    %1289 = vmatprep.subr.mxu0 0.0
    %1290 = vmatpush1.msra.mxu0 0.0
    %1291 = vmatprep.subr.mxu0 0.0
    %1292 = vmatpush1.msra.mxu0 0.0
    %1293 = vmatprep.subr.mxu0 0.0
    %1294 = vmatpush1.msra.mxu0 0.0
    %1295 = vmatprep.subr.mxu0 0.0
    %1296 = vmatpush1.msra.mxu0 0.0
    %1297 = vmatprep.subr.mxu0 0.0
    %1298 = vmatpush1.msra.mxu0 0.0
    %1299 = vmatprep.subr.mxu0 0.0
    %1300 = vmatpush1.msra.mxu0 0.0
    %1301 = vmatprep.subr.mxu0 0.0
    %1302 = vmatpush1.msra.mxu0 0.0
    %1303 = vmatprep.subr.mxu0 0.0
    %1304 = vmatpush1.msra.mxu0 0.0
    %1305 = vmatprep.subr.mxu0 0.0
    %1306 = vmatpush1.msra.mxu0 0.0
    %1307 = vmatprep.subr.mxu0 0.0
    %1308 = vmatpush1.msra.mxu0 0.0
    %1309 = vmatprep.subr.mxu0 0.0
    %1310 = vmatpush1.msra.mxu0 0.0
    %1311 = vmatprep.subr.mxu0 0.0
    %1312 = vmatpush1.msra.mxu0 0.0
    %1313 = vmatprep.subr.mxu0 0.0
    %1314 = vmatpush1.msra.mxu0 0.0
    %1315 = vmatprep.mubr.f32.mxu0 0.0
    %1316 = vmatmul.mubr.f32.gmra.mrb[0].mxu0 %v1178
    %v1317 = vpop.f32.mrb[0].mxu0
    %v1318 = vadd.f32 %v103, %v1317
    %v1319 = vpop.f32.mrb[0].mxu0
    %v1320 = vadd.f32 %v107, %v1319
    %1321 = vdwg.mxu0
    %s1322 = scalar_lea.vmem [#allocation2], 224
    %1323 = vst [vmem:[%s1322] sm:$0xff] %v1247
    %1324 = vst [vmem:[%s1322 + $0x8] sm:$0xff] %v1249
    %1325 = vst [vmem:[%s1322 + $0x10] sm:$0xff] %v1318
    %1326 = vst [vmem:[%s1322 + $0x18] sm:$0xff] %v1320
    %v1327 = vld [vmem:[#allocation5] sm:$0xff]
    %v1328 = vld [vmem:[#allocation5 + $0x8] sm:$0xff]
    %v1329 = vld [vmem:[#allocation5 + $0x10] sm:$0xff]
    %v1330 = vld [vmem:[#allocation5 + $0x18] sm:$0xff]
    %v1331 = vld [vmem:[#allocation5 + $0x20] sm:$0xff]
    %v1332 = vld [vmem:[#allocation5 + $0x28] sm:$0xff]
    %v1333 = vld [vmem:[#allocation5 + $0x30] sm:$0xff]
    %v1334 = vld [vmem:[#allocation5 + $0x38] sm:$0xff]
    %v1335 = vld [vmem:[#allocation5 + $0x40] sm:$0xff]
    %v1336 = vld [vmem:[#allocation5 + $0x48] sm:$0xff]
    %v1337 = vld [vmem:[#allocation5 + $0x50] sm:$0xff]
    %v1338 = vld [vmem:[#allocation5 + $0x58] sm:$0xff]
    %v1339 = vld [vmem:[#allocation5 + $0x60] sm:$0xff]
    %v1340 = vld [vmem:[#allocation5 + $0x68] sm:$0xff]
    %v1341 = vld [vmem:[#allocation5 + $0x70] sm:$0xff]
    %v1342 = vld [vmem:[#allocation5 + $0x78] sm:$0xff]
    %v1343 = vld [vmem:[#allocation5 + $0x80] sm:$0xff]
    %v1344 = vld [vmem:[#allocation5 + $0x88] sm:$0xff]
    %v1345 = vld [vmem:[#allocation5 + $0x90] sm:$0xff]
    %v1346 = vld [vmem:[#allocation5 + $0x98] sm:$0xff]
    %v1347 = vld [vmem:[#allocation5 + $0xa0] sm:$0xff]
    %v1348 = vld [vmem:[#allocation5 + $0xa8] sm:$0xff]
    %v1349 = vld [vmem:[#allocation5 + $0xb0] sm:$0xff]
    %v1350 = vld [vmem:[#allocation5 + $0xb8] sm:$0xff]
    %v1351 = vld [vmem:[#allocation5 + $0xc0] sm:$0xff]
    %v1352 = vld [vmem:[#allocation5 + $0xc8] sm:$0xff]
    %v1353 = vld [vmem:[#allocation5 + $0xd0] sm:$0xff]
    %v1354 = vld [vmem:[#allocation5 + $0xd8] sm:$0xff]
    %v1355 = vld [vmem:[#allocation5 + $0xe0] sm:$0xff]
    %v1356 = vld [vmem:[#allocation5 + $0xe8] sm:$0xff]
    %v1357 = vld [vmem:[#allocation5 + $0xf0] sm:$0xff]
    %v1358 = vld [vmem:[#allocation5 + $0xf8] sm:$0xff]
    %v1359 = vld [vmem:[#allocation5 + $0x100] sm:$0xff]
    %v1360 = vld [vmem:[#allocation5 + $0x108] sm:$0xff]
    %v1361 = vld [vmem:[#allocation5 + $0x110] sm:$0xff]
    %v1362 = vld [vmem:[#allocation5 + $0x118] sm:$0xff]
    %v1363 = vld [vmem:[#allocation5 + $0x120] sm:$0xff]
    %v1364 = vld [vmem:[#allocation5 + $0x128] sm:$0xff]
    %v1365 = vld [vmem:[#allocation5 + $0x130] sm:$0xff]
    %v1366 = vld [vmem:[#allocation5 + $0x138] sm:$0xff]
    %v1367 = vld [vmem:[#allocation5 + $0x140] sm:$0xff]
    %v1368 = vld [vmem:[#allocation5 + $0x148] sm:$0xff]
    %v1369 = vld [vmem:[#allocation5 + $0x150] sm:$0xff]
    %v1370 = vld [vmem:[#allocation5 + $0x158] sm:$0xff]
    %v1371 = vld [vmem:[#allocation5 + $0x160] sm:$0xff]
    %v1372 = vld [vmem:[#allocation5 + $0x168] sm:$0xff]
    %v1373 = vld [vmem:[#allocation5 + $0x170] sm:$0xff]
    %v1374 = vld [vmem:[#allocation5 + $0x178] sm:$0xff]
    %v1375 = vld [vmem:[#allocation5 + $0x180] sm:$0xff]
    %v1376 = vld [vmem:[#allocation5 + $0x188] sm:$0xff]
    %v1377 = vld [vmem:[#allocation5 + $0x190] sm:$0xff]
    %v1378 = vld [vmem:[#allocation5 + $0x198] sm:$0xff]
    %v1379 = vld [vmem:[#allocation5 + $0x1a0] sm:$0xff]
    %v1380 = vld [vmem:[#allocation5 + $0x1a8] sm:$0xff]
    %v1381 = vld [vmem:[#allocation5 + $0x1b0] sm:$0xff]
    %v1382 = vld [vmem:[#allocation5 + $0x1b8] sm:$0xff]
    %v1383 = vld [vmem:[#allocation5 + $0x1c0] sm:$0xff]
    %v1384 = vld [vmem:[#allocation5 + $0x1c8] sm:$0xff]
    %v1385 = vld [vmem:[#allocation5 + $0x1d0] sm:$0xff]
    %v1386 = vld [vmem:[#allocation5 + $0x1d8] sm:$0xff]
    %v1387 = vld [vmem:[#allocation5 + $0x1e0] sm:$0xff]
    %v1388 = vld [vmem:[#allocation5 + $0x1e8] sm:$0xff]
    %v1389 = vld [vmem:[#allocation5 + $0x1f0] sm:$0xff]
    %v1390 = vld [vmem:[#allocation5 + $0x1f8] sm:$0xff]
    %v1391 = vld [vmem:[#allocation8] sm:$0xff]
    %v1392 = vld [vmem:[#allocation8 + $0x8] sm:$0xff]
    %v1393 = vld [vmem:[#allocation8 + $0x10] sm:$0xff]
    %v1394 = vld [vmem:[#allocation8 + $0x18] sm:$0xff]
    %v1395 = vld [vmem:[#allocation8 + $0x20] sm:$0xff]
    %v1396 = vld [vmem:[#allocation8 + $0x28] sm:$0xff]
    %v1397 = vld [vmem:[#allocation8 + $0x30] sm:$0xff]
    %v1398 = vld [vmem:[#allocation8 + $0x38] sm:$0xff]
    %v1399 = vld [vmem:[#allocation8 + $0x40] sm:$0xff]
    %v1400 = vld [vmem:[#allocation8 + $0x48] sm:$0xff]
    %v1401 = vld [vmem:[#allocation8 + $0x50] sm:$0xff]
    %v1402 = vld [vmem:[#allocation8 + $0x58] sm:$0xff]
    %v1403 = vld [vmem:[#allocation8 + $0x60] sm:$0xff]
    %v1404 = vld [vmem:[#allocation8 + $0x68] sm:$0xff]
    %v1405 = vld [vmem:[#allocation8 + $0x70] sm:$0xff]
    %v1406 = vld [vmem:[#allocation8 + $0x78] sm:$0xff]
    %v1407 = vld [vmem:[#allocation8 + $0x80] sm:$0xff]
    %v1408 = vld [vmem:[#allocation8 + $0x88] sm:$0xff]
    %v1409 = vld [vmem:[#allocation8 + $0x90] sm:$0xff]
    %v1410 = vld [vmem:[#allocation8 + $0x98] sm:$0xff]
    %v1411 = vld [vmem:[#allocation8 + $0xa0] sm:$0xff]
    %v1412 = vld [vmem:[#allocation8 + $0xa8] sm:$0xff]
    %v1413 = vld [vmem:[#allocation8 + $0xb0] sm:$0xff]
    %v1414 = vld [vmem:[#allocation8 + $0xb8] sm:$0xff]
    %v1415 = vld [vmem:[#allocation8 + $0xc0] sm:$0xff]
    %v1416 = vld [vmem:[#allocation8 + $0xc8] sm:$0xff]
    %v1417 = vld [vmem:[#allocation8 + $0xd0] sm:$0xff]
    %v1418 = vld [vmem:[#allocation8 + $0xd8] sm:$0xff]
    %v1419 = vld [vmem:[#allocation8 + $0xe0] sm:$0xff]
    %v1420 = vld [vmem:[#allocation8 + $0xe8] sm:$0xff]
    %v1421 = vld [vmem:[#allocation8 + $0xf0] sm:$0xff]
    %v1422 = vld [vmem:[#allocation8 + $0xf8] sm:$0xff]
    %v1423 = vld [vmem:[#allocation8 + $0x100] sm:$0xff]
    %v1424 = vld [vmem:[#allocation8 + $0x108] sm:$0xff]
    %v1425 = vld [vmem:[#allocation8 + $0x110] sm:$0xff]
    %v1426 = vld [vmem:[#allocation8 + $0x118] sm:$0xff]
    %v1427 = vld [vmem:[#allocation8 + $0x120] sm:$0xff]
    %v1428 = vld [vmem:[#allocation8 + $0x128] sm:$0xff]
    %v1429 = vld [vmem:[#allocation8 + $0x130] sm:$0xff]
    %v1430 = vld [vmem:[#allocation8 + $0x138] sm:$0xff]
    %v1431 = vld [vmem:[#allocation8 + $0x140] sm:$0xff]
    %v1432 = vld [vmem:[#allocation8 + $0x148] sm:$0xff]
    %v1433 = vld [vmem:[#allocation8 + $0x150] sm:$0xff]
    %v1434 = vld [vmem:[#allocation8 + $0x158] sm:$0xff]
    %v1435 = vld [vmem:[#allocation8 + $0x160] sm:$0xff]
    %v1436 = vld [vmem:[#allocation8 + $0x168] sm:$0xff]
    %v1437 = vld [vmem:[#allocation8 + $0x170] sm:$0xff]
    %v1438 = vld [vmem:[#allocation8 + $0x178] sm:$0xff]
    %v1439 = vld [vmem:[#allocation8 + $0x180] sm:$0xff]
    %v1440 = vld [vmem:[#allocation8 + $0x188] sm:$0xff]
    %v1441 = vld [vmem:[#allocation8 + $0x190] sm:$0xff]
    %v1442 = vld [vmem:[#allocation8 + $0x198] sm:$0xff]
    %v1443 = vld [vmem:[#allocation8 + $0x1a0] sm:$0xff]
    %v1444 = vld [vmem:[#allocation8 + $0x1a8] sm:$0xff]
    %v1445 = vld [vmem:[#allocation8 + $0x1b0] sm:$0xff]
    %v1446 = vld [vmem:[#allocation8 + $0x1b8] sm:$0xff]
    %v1447 = vld [vmem:[#allocation8 + $0x1c0] sm:$0xff]
    %v1448 = vld [vmem:[#allocation8 + $0x1c8] sm:$0xff]
    %v1449 = vld [vmem:[#allocation8 + $0x1d0] sm:$0xff]
    %v1450 = vld [vmem:[#allocation8 + $0x1d8] sm:$0xff]
    %v1451 = vld [vmem:[#allocation8 + $0x1e0] sm:$0xff]
    %v1452 = vld [vmem:[#allocation8 + $0x1e8] sm:$0xff]
    %v1453 = vld [vmem:[#allocation8 + $0x1f0] sm:$0xff]
    %v1454 = vld [vmem:[#allocation8 + $0x1f8] sm:$0xff]
    %v1455 = vld [vmem:[#allocation8 + $0x200] sm:$0xff]
    %v1456 = vld [vmem:[#allocation8 + $0x208] sm:$0xff]
    %v1457 = vld [vmem:[#allocation8 + $0x210] sm:$0xff]
    %v1458 = vld [vmem:[#allocation8 + $0x218] sm:$0xff]
    %v1459 = vld [vmem:[#allocation8 + $0x220] sm:$0xff]
    %v1460 = vld [vmem:[#allocation8 + $0x228] sm:$0xff]
    %v1461 = vld [vmem:[#allocation8 + $0x230] sm:$0xff]
    %v1462 = vld [vmem:[#allocation8 + $0x238] sm:$0xff]
    %v1463 = vld [vmem:[#allocation8 + $0x240] sm:$0xff]
    %v1464 = vld [vmem:[#allocation8 + $0x248] sm:$0xff]
    %v1465 = vld [vmem:[#allocation8 + $0x250] sm:$0xff]
    %v1466 = vld [vmem:[#allocation8 + $0x258] sm:$0xff]
    %v1467 = vld [vmem:[#allocation8 + $0x260] sm:$0xff]
    %v1468 = vld [vmem:[#allocation8 + $0x268] sm:$0xff]
    %v1469 = vld [vmem:[#allocation8 + $0x270] sm:$0xff]
    %v1470 = vld [vmem:[#allocation8 + $0x278] sm:$0xff]
    %v1471 = vld [vmem:[#allocation8 + $0x280] sm:$0xff]
    %v1472 = vld [vmem:[#allocation8 + $0x288] sm:$0xff]
    %v1473 = vld [vmem:[#allocation8 + $0x290] sm:$0xff]
    %v1474 = vld [vmem:[#allocation8 + $0x298] sm:$0xff]
    %v1475 = vld [vmem:[#allocation8 + $0x2a0] sm:$0xff]
    %v1476 = vld [vmem:[#allocation8 + $0x2a8] sm:$0xff]
    %v1477 = vld [vmem:[#allocation8 + $0x2b0] sm:$0xff]
    %v1478 = vld [vmem:[#allocation8 + $0x2b8] sm:$0xff]
    %v1479 = vld [vmem:[#allocation8 + $0x2c0] sm:$0xff]
    %v1480 = vld [vmem:[#allocation8 + $0x2c8] sm:$0xff]
    %v1481 = vld [vmem:[#allocation8 + $0x2d0] sm:$0xff]
    %v1482 = vld [vmem:[#allocation8 + $0x2d8] sm:$0xff]
    %v1483 = vld [vmem:[#allocation8 + $0x2e0] sm:$0xff]
    %v1484 = vld [vmem:[#allocation8 + $0x2e8] sm:$0xff]
    %v1485 = vld [vmem:[#allocation8 + $0x2f0] sm:$0xff]
    %v1486 = vld [vmem:[#allocation8 + $0x2f8] sm:$0xff]
    %v1487 = vld [vmem:[#allocation8 + $0x300] sm:$0xff]
    %v1488 = vld [vmem:[#allocation8 + $0x308] sm:$0xff]
    %v1489 = vld [vmem:[#allocation8 + $0x310] sm:$0xff]
    %v1490 = vld [vmem:[#allocation8 + $0x318] sm:$0xff]
    %v1491 = vld [vmem:[#allocation8 + $0x320] sm:$0xff]
    %v1492 = vld [vmem:[#allocation8 + $0x328] sm:$0xff]
    %v1493 = vld [vmem:[#allocation8 + $0x330] sm:$0xff]
    %v1494 = vld [vmem:[#allocation8 + $0x338] sm:$0xff]
    %v1495 = vld [vmem:[#allocation8 + $0x340] sm:$0xff]
    %v1496 = vld [vmem:[#allocation8 + $0x348] sm:$0xff]
    %v1497 = vld [vmem:[#allocation8 + $0x350] sm:$0xff]
    %v1498 = vld [vmem:[#allocation8 + $0x358] sm:$0xff]
    %v1499 = vld [vmem:[#allocation8 + $0x360] sm:$0xff]
    %v1500 = vld [vmem:[#allocation8 + $0x368] sm:$0xff]
    %v1501 = vld [vmem:[#allocation8 + $0x370] sm:$0xff]
    %v1502 = vld [vmem:[#allocation8 + $0x378] sm:$0xff]
    %v1503 = vld [vmem:[#allocation8 + $0x380] sm:$0xff]
    %v1504 = vld [vmem:[#allocation8 + $0x388] sm:$0xff]
    %v1505 = vld [vmem:[#allocation8 + $0x390] sm:$0xff]
    %v1506 = vld [vmem:[#allocation8 + $0x398] sm:$0xff]
    %v1507 = vld [vmem:[#allocation8 + $0x3a0] sm:$0xff]
    %v1508 = vld [vmem:[#allocation8 + $0x3a8] sm:$0xff]
    %v1509 = vld [vmem:[#allocation8 + $0x3b0] sm:$0xff]
    %v1510 = vld [vmem:[#allocation8 + $0x3b8] sm:$0xff]
    %v1511 = vld [vmem:[#allocation8 + $0x3c0] sm:$0xff]
    %v1512 = vld [vmem:[#allocation8 + $0x3c8] sm:$0xff]
    %v1513 = vld [vmem:[#allocation8 + $0x3d0] sm:$0xff]
    %v1514 = vld [vmem:[#allocation8 + $0x3d8] sm:$0xff]
    %v1515 = vld [vmem:[#allocation8 + $0x3e0] sm:$0xff]
    %v1516 = vld [vmem:[#allocation8 + $0x3e8] sm:$0xff]
    %v1517 = vld [vmem:[#allocation8 + $0x3f0] sm:$0xff]
    %v1518 = vld [vmem:[#allocation8 + $0x3f8] sm:$0xff]
    %v1519 = vld [vmem:[%s5] sm:$0xf]
    %v1521 = vlaneseq
    %v1522 = vshrl.u32 %v1521, 7
    %v1523 = vsub.s32 0, %v1522
    %v1524 = vrot.slane %v1519, %v1523
    %v1525 = vlaneseq
    %v1526 = vshrl.u32 %v1525, 7
    %v1527 = vsub.s32 1, %v1526
    %v1528 = vrot.slane %v1519, %v1527
    %v1529 = vlaneseq
    %v1530 = vshrl.u32 %v1529, 7
    %v1531 = vsub.s32 2, %v1530
    %v1532 = vrot.slane %v1519, %v1531
    %v1533 = vlaneseq
    %v1534 = vshrl.u32 %v1533, 7
    %v1535 = vsub.s32 3, %v1534
    %v1536 = vrot.slane %v1519, %v1535
    %v1541 = vld [vmem:[#allocation2] sm:$0xff]
    %v1542 = vld [vmem:[#allocation2 + $0x8] sm:$0xff]
    %v1543 = vld [vmem:[#allocation2 + $0x10] sm:$0xff]
    %v1544 = vld [vmem:[#allocation2 + $0x18] sm:$0xff]
    %1545 = vmatprep.subr.mxu0 %v1328
    %1546 = vmatpush1.msra.mxu0 %v1327
    %1547 = vmatprep.subr.mxu0 %v1332
    %1548 = vmatpush1.msra.mxu0 %v1331
    %1549 = vmatprep.subr.mxu0 %v1336
    %1550 = vmatpush1.msra.mxu0 %v1335
    %1551 = vmatprep.subr.mxu0 %v1340
    %1552 = vmatpush1.msra.mxu0 %v1339
    %1553 = vmatprep.subr.mxu0 %v1344
    %1554 = vmatpush1.msra.mxu0 %v1343
    %1555 = vmatprep.subr.mxu0 %v1348
    %1556 = vmatpush1.msra.mxu0 %v1347
    %1557 = vmatprep.subr.mxu0 %v1352
    %1558 = vmatpush1.msra.mxu0 %v1351
    %1559 = vmatprep.subr.mxu0 %v1356
    %1560 = vmatpush1.msra.mxu0 %v1355
    %1561 = vmatprep.subr.mxu0 %v1360
    %1562 = vmatpush1.msra.mxu0 %v1359
    %1563 = vmatprep.subr.mxu0 %v1364
    %1564 = vmatpush1.msra.mxu0 %v1363
    %1565 = vmatprep.subr.mxu0 %v1368
    %1566 = vmatpush1.msra.mxu0 %v1367
    %1567 = vmatprep.subr.mxu0 %v1372
    %1568 = vmatpush1.msra.mxu0 %v1371
    %1569 = vmatprep.subr.mxu0 %v1376
    %1570 = vmatpush1.msra.mxu0 %v1375
    %1571 = vmatprep.subr.mxu0 %v1380
    %1572 = vmatpush1.msra.mxu0 %v1379
    %1573 = vmatprep.subr.mxu0 %v1384
    %1574 = vmatpush1.msra.mxu0 %v1383
    %1575 = vmatprep.subr.mxu0 %v1388
    %1576 = vmatpush1.msra.mxu0 %v1387
    %1577 = vmatprep.subr.mxu0 0.0
    %1578 = vmatpush1.msra.mxu0 0.0
    %1579 = vmatprep.subr.mxu0 0.0
    %1580 = vmatpush1.msra.mxu0 0.0
    %1581 = vmatprep.subr.mxu0 0.0
    %1582 = vmatpush1.msra.mxu0 0.0
    %1583 = vmatprep.subr.mxu0 0.0
    %1584 = vmatpush1.msra.mxu0 0.0
    %1585 = vmatprep.subr.mxu0 0.0
    %1586 = vmatpush1.msra.mxu0 0.0
    %1587 = vmatprep.subr.mxu0 0.0
    %1588 = vmatpush1.msra.mxu0 0.0
    %1589 = vmatprep.subr.mxu0 0.0
    %1590 = vmatpush1.msra.mxu0 0.0
    %1591 = vmatprep.subr.mxu0 0.0
    %1592 = vmatpush1.msra.mxu0 0.0
    %1593 = vmatprep.subr.mxu0 0.0
    %1594 = vmatpush1.msra.mxu0 0.0
    %1595 = vmatprep.subr.mxu0 0.0
    %1596 = vmatpush1.msra.mxu0 0.0
    %1597 = vmatprep.subr.mxu0 0.0
    %1598 = vmatpush1.msra.mxu0 0.0
    %1599 = vmatprep.subr.mxu0 0.0
    %1600 = vmatpush1.msra.mxu0 0.0
    %1601 = vmatprep.subr.mxu0 0.0
    %1602 = vmatpush1.msra.mxu0 0.0
    %1603 = vmatprep.subr.mxu0 0.0
    %1604 = vmatpush1.msra.mxu0 0.0
    %1605 = vmatprep.subr.mxu0 0.0
    %1606 = vmatpush1.msra.mxu0 0.0
    %1607 = vmatprep.subr.mxu0 0.0
    %1608 = vmatpush1.msra.mxu0 0.0
    %1609 = vmatprep.mubr.f32.mxu0 0.0
    %1610 = vmatmul.mubr.f32.gmra.mrb[0].mxu0 0.0
    %v1611 = vpop.f32.mrb[0].mxu0
    %v1612 = vadd.f32 0.0, %v1611
    %v1613 = vpop.f32.mrb[0].mxu0
    %v1614 = vadd.f32 0.0, %v1613
    %1615 = vdwg.mxu0
    %1616 = vmatprep.subr.mxu0 %v1330
    %1617 = vmatpush1.msra.mxu0 %v1329
    %1618 = vmatprep.subr.mxu0 %v1334
    %1619 = vmatpush1.msra.mxu0 %v1333
    %1620 = vmatprep.subr.mxu0 %v1338
    %1621 = vmatpush1.msra.mxu0 %v1337
    %1622 = vmatprep.subr.mxu0 %v1342
    %1623 = vmatpush1.msra.mxu0 %v1341
    %1624 = vmatprep.subr.mxu0 %v1346
    %1625 = vmatpush1.msra.mxu0 %v1345
    %1626 = vmatprep.subr.mxu0 %v1350
    %1627 = vmatpush1.msra.mxu0 %v1349
    %1628 = vmatprep.subr.mxu0 %v1354
    %1629 = vmatpush1.msra.mxu0 %v1353
    %1630 = vmatprep.subr.mxu0 %v1358
    %1631 = vmatpush1.msra.mxu0 %v1357
    %1632 = vmatprep.subr.mxu0 %v1362
    %1633 = vmatpush1.msra.mxu0 %v1361
    %1634 = vmatprep.subr.mxu0 %v1366
    %1635 = vmatpush1.msra.mxu0 %v1365
    %1636 = vmatprep.subr.mxu0 %v1370
    %1637 = vmatpush1.msra.mxu0 %v1369
    %1638 = vmatprep.subr.mxu0 %v1374
    %1639 = vmatpush1.msra.mxu0 %v1373
    %1640 = vmatprep.subr.mxu0 %v1378
    %1641 = vmatpush1.msra.mxu0 %v1377
    %1642 = vmatprep.subr.mxu0 %v1382
    %1643 = vmatpush1.msra.mxu0 %v1381
    %1644 = vmatprep.subr.mxu0 %v1386
    %1645 = vmatpush1.msra.mxu0 %v1385
    %1646 = vmatprep.subr.mxu0 %v1390
    %1647 = vmatpush1.msra.mxu0 %v1389
    %1648 = vmatprep.subr.mxu0 0.0
    %1649 = vmatpush1.msra.mxu0 0.0
    %1650 = vmatprep.subr.mxu0 0.0
    %1651 = vmatpush1.msra.mxu0 0.0
    %1652 = vmatprep.subr.mxu0 0.0
    %1653 = vmatpush1.msra.mxu0 0.0
    %1654 = vmatprep.subr.mxu0 0.0
    %1655 = vmatpush1.msra.mxu0 0.0
    %1656 = vmatprep.subr.mxu0 0.0
    %1657 = vmatpush1.msra.mxu0 0.0
    %1658 = vmatprep.subr.mxu0 0.0
    %1659 = vmatpush1.msra.mxu0 0.0
    %1660 = vmatprep.subr.mxu0 0.0
    %1661 = vmatpush1.msra.mxu0 0.0
    %1662 = vmatprep.subr.mxu0 0.0
    %1663 = vmatpush1.msra.mxu0 0.0
    %1664 = vmatprep.subr.mxu0 0.0
    %1665 = vmatpush1.msra.mxu0 0.0
    %1666 = vmatprep.subr.mxu0 0.0
    %1667 = vmatpush1.msra.mxu0 0.0
    %1668 = vmatprep.subr.mxu0 0.0
    %1669 = vmatpush1.msra.mxu0 0.0
    %1670 = vmatprep.subr.mxu0 0.0
    %1671 = vmatpush1.msra.mxu0 0.0
    %1672 = vmatprep.subr.mxu0 0.0
    %1673 = vmatpush1.msra.mxu0 0.0
    %1674 = vmatprep.subr.mxu0 0.0
    %1675 = vmatpush1.msra.mxu0 0.0
    %1676 = vmatprep.subr.mxu0 0.0
    %1677 = vmatpush1.msra.mxu0 0.0
    %1678 = vmatprep.subr.mxu0 0.0
    %1679 = vmatpush1.msra.mxu0 0.0
    %1680 = vmatprep.mubr.f32.mxu0 0.0
    %1681 = vmatmul.mubr.f32.gmra.mrb[0].mxu0 0.0
    %v1682 = vpop.f32.mrb[0].mxu0
    %v1683 = vadd.f32 0.0, %v1682
    %v1684 = vpop.f32.mrb[0].mxu0
    %v1685 = vadd.f32 0.0, %v1684
    %1686 = vdwg.mxu0
    %v1687 = vadd.f32 %v1541, %v1612
    %v1688 = vadd.f32 %v1542, %v1614
    %v1689 = vadd.f32 %v1543, %v1683
    %v1690 = vadd.f32 %v1544, %v1685
    %v1691 = vxor.u32 %v1687, 2147483648
    %v1692 = vxor.u32 %v1688, 2147483648
    %v1693 = vxor.u32 %v1689, 2147483648
    %v1694 = vmul.f32 %v1691, 1.442695
    %v1695 = vpow.pop %v1694
    %v1696 = vmul.f32 %v1692, 1.442695
    %v1697 = vpow.pop %v1696
    %v1698 = vmul.f32 %v1693, 1.442695
    %v1699 = vpow.pop %v1698
    %v1700 = vadd.f32 %v1695, 1.0
    %v1701 = vadd.f32 %v1697, 1.0
    %v1702 = vadd.f32 %v1699, 1.0
    %v1703 = vrcp.pop %v1700
    %v1704 = vmul.f32 1.0, %v1703
    %v1705 = vrcp.pop %v1701
    %v1706 = vmul.f32 1.0, %v1705
    %v1707 = vrcp.pop %v1702
    %v1708 = vmul.f32 1.0, %v1707
    %v1709 = vtanh.pop %v1690
    %v1710 = vmul.f32 %v1706, 0.0
    %v1711 = vmul.f32 %v1704, %v1709
    %v1712 = vadd.f32 %v1710, %v1711
    %v1713 = vtanh.pop %v1712
    %v1714 = vmul.f32 %v1708, %v1713
    %1715 = vmatprep.subr.mxu0 %v1392
    %1716 = vmatpush1.msra.mxu0 %v1391
    %1717 = vmatprep.subr.mxu0 %v1396
    %1718 = vmatpush1.msra.mxu0 %v1395
    %1719 = vmatprep.subr.mxu0 %v1400
    %1720 = vmatpush1.msra.mxu0 %v1399
    %1721 = vmatprep.subr.mxu0 %v1404
    %1722 = vmatpush1.msra.mxu0 %v1403
    %1723 = vmatprep.subr.mxu0 %v1408
    %1724 = vmatpush1.msra.mxu0 %v1407
    %1725 = vmatprep.subr.mxu0 %v1412
    %1726 = vmatpush1.msra.mxu0 %v1411
    %1727 = vmatprep.subr.mxu0 %v1416
    %1728 = vmatpush1.msra.mxu0 %v1415
    %1729 = vmatprep.subr.mxu0 %v1420
    %1730 = vmatpush1.msra.mxu0 %v1419
    %1731 = vmatprep.subr.mxu0 %v1424
    %1732 = vmatpush1.msra.mxu0 %v1423
    %1733 = vmatprep.subr.mxu0 %v1428
    %1734 = vmatpush1.msra.mxu0 %v1427
    %1735 = vmatprep.subr.mxu0 %v1432
    %1736 = vmatpush1.msra.mxu0 %v1431
    %1737 = vmatprep.subr.mxu0 %v1436
    %1738 = vmatpush1.msra.mxu0 %v1435
    %1739 = vmatprep.subr.mxu0 %v1440
    %1740 = vmatpush1.msra.mxu0 %v1439
    %1741 = vmatprep.subr.mxu0 %v1444
    %1742 = vmatpush1.msra.mxu0 %v1443
    %1743 = vmatprep.subr.mxu0 %v1448
    %1744 = vmatpush1.msra.mxu0 %v1447
    %1745 = vmatprep.subr.mxu0 %v1452
    %1746 = vmatpush1.msra.mxu0 %v1451
    %1747 = vmatprep.subr.mxu0 %v1456
    %1748 = vmatpush1.msra.mxu0 %v1455
    %1749 = vmatprep.subr.mxu0 %v1460
    %1750 = vmatpush1.msra.mxu0 %v1459
    %1751 = vmatprep.subr.mxu0 %v1464
    %1752 = vmatpush1.msra.mxu0 %v1463
    %1753 = vmatprep.subr.mxu0 %v1468
    %1754 = vmatpush1.msra.mxu0 %v1467
    %1755 = vmatprep.subr.mxu0 %v1472
    %1756 = vmatpush1.msra.mxu0 %v1471
    %1757 = vmatprep.subr.mxu0 %v1476
    %1758 = vmatpush1.msra.mxu0 %v1475
    %1759 = vmatprep.subr.mxu0 %v1480
    %1760 = vmatpush1.msra.mxu0 %v1479
    %1761 = vmatprep.subr.mxu0 %v1484
    %1762 = vmatpush1.msra.mxu0 %v1483
    %1763 = vmatprep.subr.mxu0 %v1488
    %1764 = vmatpush1.msra.mxu0 %v1487
    %1765 = vmatprep.subr.mxu0 %v1492
    %1766 = vmatpush1.msra.mxu0 %v1491
    %1767 = vmatprep.subr.mxu0 %v1496
    %1768 = vmatpush1.msra.mxu0 %v1495
    %1769 = vmatprep.subr.mxu0 %v1500
    %1770 = vmatpush1.msra.mxu0 %v1499
    %1771 = vmatprep.subr.mxu0 %v1504
    %1772 = vmatpush1.msra.mxu0 %v1503
    %1773 = vmatprep.subr.mxu0 %v1508
    %1774 = vmatpush1.msra.mxu0 %v1507
    %1775 = vmatprep.subr.mxu0 %v1512
    %1776 = vmatpush1.msra.mxu0 %v1511
    %1777 = vmatprep.subr.mxu0 %v1516
    %1778 = vmatpush1.msra.mxu0 %v1515
    %1779 = vmatprep.mubr.f32.mxu0 0.0
    %1780 = vmatmul.mubr.f32.gmra.mrb[0].mxu0 %v1714
    %v1781 = vpop.f32.mrb[0].mxu0
    %v1782 = vadd.f32 %v1524, %v1781
    %v1783 = vpop.f32.mrb[0].mxu0
    %v1784 = vadd.f32 %v1528, %v1783
    %1785 = vdwg.mxu0
    %1786 = vmatprep.subr.mxu0 %v1394
    %1787 = vmatpush1.msra.mxu0 %v1393
    %1788 = vmatprep.subr.mxu0 %v1398
    %1789 = vmatpush1.msra.mxu0 %v1397
    %1790 = vmatprep.subr.mxu0 %v1402
    %1791 = vmatpush1.msra.mxu0 %v1401
    %1792 = vmatprep.subr.mxu0 %v1406
    %1793 = vmatpush1.msra.mxu0 %v1405
    %1794 = vmatprep.subr.mxu0 %v1410
    %1795 = vmatpush1.msra.mxu0 %v1409
    %1796 = vmatprep.subr.mxu0 %v1414
    %1797 = vmatpush1.msra.mxu0 %v1413
    %1798 = vmatprep.subr.mxu0 %v1418
    %1799 = vmatpush1.msra.mxu0 %v1417
    %1800 = vmatprep.subr.mxu0 %v1422
    %1801 = vmatpush1.msra.mxu0 %v1421
    %1802 = vmatprep.subr.mxu0 %v1426
    %1803 = vmatpush1.msra.mxu0 %v1425
    %1804 = vmatprep.subr.mxu0 %v1430
    %1805 = vmatpush1.msra.mxu0 %v1429
    %1806 = vmatprep.subr.mxu0 %v1434
    %1807 = vmatpush1.msra.mxu0 %v1433
    %1808 = vmatprep.subr.mxu0 %v1438
    %1809 = vmatpush1.msra.mxu0 %v1437
    %1810 = vmatprep.subr.mxu0 %v1442
    %1811 = vmatpush1.msra.mxu0 %v1441
    %1812 = vmatprep.subr.mxu0 %v1446
    %1813 = vmatpush1.msra.mxu0 %v1445
    %1814 = vmatprep.subr.mxu0 %v1450
    %1815 = vmatpush1.msra.mxu0 %v1449
    %1816 = vmatprep.subr.mxu0 %v1454
    %1817 = vmatpush1.msra.mxu0 %v1453
    %1818 = vmatprep.subr.mxu0 %v1458
    %1819 = vmatpush1.msra.mxu0 %v1457
    %1820 = vmatprep.subr.mxu0 %v1462
    %1821 = vmatpush1.msra.mxu0 %v1461
    %1822 = vmatprep.subr.mxu0 %v1466
    %1823 = vmatpush1.msra.mxu0 %v1465
    %1824 = vmatprep.subr.mxu0 %v1470
    %1825 = vmatpush1.msra.mxu0 %v1469
    %1826 = vmatprep.subr.mxu0 %v1474
    %1827 = vmatpush1.msra.mxu0 %v1473
    %1828 = vmatprep.subr.mxu0 %v1478
    %1829 = vmatpush1.msra.mxu0 %v1477
    %1830 = vmatprep.subr.mxu0 %v1482
    %1831 = vmatpush1.msra.mxu0 %v1481
    %1832 = vmatprep.subr.mxu0 %v1486
    %1833 = vmatpush1.msra.mxu0 %v1485
    %1834 = vmatprep.subr.mxu0 %v1490
    %1835 = vmatpush1.msra.mxu0 %v1489
    %1836 = vmatprep.subr.mxu0 %v1494
    %1837 = vmatpush1.msra.mxu0 %v1493
    %1838 = vmatprep.subr.mxu0 %v1498
    %1839 = vmatpush1.msra.mxu0 %v1497
    %1840 = vmatprep.subr.mxu0 %v1502
    %1841 = vmatpush1.msra.mxu0 %v1501
    %1842 = vmatprep.subr.mxu0 %v1506
    %1843 = vmatpush1.msra.mxu0 %v1505
    %1844 = vmatprep.subr.mxu0 %v1510
    %1845 = vmatpush1.msra.mxu0 %v1509
    %1846 = vmatprep.subr.mxu0 %v1514
    %1847 = vmatpush1.msra.mxu0 %v1513
    %1848 = vmatprep.subr.mxu0 %v1518
    %1849 = vmatpush1.msra.mxu0 %v1517
    %1850 = vmatprep.mubr.f32.mxu0 0.0
    %1851 = vmatmul.mubr.f32.gmra.mrb[0].mxu0 %v1714
    %v1852 = vpop.f32.mrb[0].mxu0
    %v1853 = vadd.f32 %v1532, %v1852
    %v1854 = vpop.f32.mrb[0].mxu0
    %v1855 = vadd.f32 %v1536, %v1854
    %1856 = vdwg.mxu0
    %v1857 = vxor.u32 %v1782, 2147483648
    %v1858 = vxor.u32 %v1784, 2147483648
    %v1859 = vxor.u32 %v1853, 2147483648
    %v1860 = vmul.f32 %v1857, 1.442695
    %v1861 = vpow.pop %v1860
    %v1862 = vmul.f32 %v1858, 1.442695
    %v1863 = vpow.pop %v1862
    %v1864 = vmul.f32 %v1859, 1.442695
    %v1865 = vpow.pop %v1864
    %v1866 = vadd.f32 %v1861, 1.0
    %v1867 = vadd.f32 %v1863, 1.0
    %v1868 = vadd.f32 %v1865, 1.0
    %v1869 = vrcp.pop %v1866
    %v1870 = vmul.f32 1.0, %v1869
    %v1871 = vrcp.pop %v1867
    %v1872 = vmul.f32 1.0, %v1871
    %v1873 = vrcp.pop %v1868
    %v1874 = vmul.f32 1.0, %v1873
    %v1875 = vtanh.pop %v1855
    %v1876 = vmul.f32 %v1872, 0.0
    %v1877 = vmul.f32 %v1870, %v1875
    %v1878 = vadd.f32 %v1876, %v1877
    %v1879 = vtanh.pop %v1878
    %v1880 = vmul.f32 %v1874, %v1879
    %v1881 = vld [vmem:[%s410] sm:$0xff]
    %v1882 = vld [vmem:[%s410 + $0x8] sm:$0xff]
    %v1883 = vld [vmem:[%s410 + $0x10] sm:$0xff]
    %v1884 = vld [vmem:[%s410 + $0x18] sm:$0xff]
    %1885 = vmatprep.subr.mxu0 %v1328
    %1886 = vmatpush1.msra.mxu0 %v1327
    %1887 = vmatprep.subr.mxu0 %v1332
    %1888 = vmatpush1.msra.mxu0 %v1331
    %1889 = vmatprep.subr.mxu0 %v1336
    %1890 = vmatpush1.msra.mxu0 %v1335
    %1891 = vmatprep.subr.mxu0 %v1340
    %1892 = vmatpush1.msra.mxu0 %v1339
    %1893 = vmatprep.subr.mxu0 %v1344
    %1894 = vmatpush1.msra.mxu0 %v1343
    %1895 = vmatprep.subr.mxu0 %v1348
    %1896 = vmatpush1.msra.mxu0 %v1347
    %1897 = vmatprep.subr.mxu0 %v1352
    %1898 = vmatpush1.msra.mxu0 %v1351
    %1899 = vmatprep.subr.mxu0 %v1356
    %1900 = vmatpush1.msra.mxu0 %v1355
    %1901 = vmatprep.subr.mxu0 %v1360
    %1902 = vmatpush1.msra.mxu0 %v1359
    %1903 = vmatprep.subr.mxu0 %v1364
    %1904 = vmatpush1.msra.mxu0 %v1363
    %1905 = vmatprep.subr.mxu0 %v1368
    %1906 = vmatpush1.msra.mxu0 %v1367
    %1907 = vmatprep.subr.mxu0 %v1372
    %1908 = vmatpush1.msra.mxu0 %v1371
    %1909 = vmatprep.subr.mxu0 %v1376
    %1910 = vmatpush1.msra.mxu0 %v1375
    %1911 = vmatprep.subr.mxu0 %v1380
    %1912 = vmatpush1.msra.mxu0 %v1379
    %1913 = vmatprep.subr.mxu0 %v1384
    %1914 = vmatpush1.msra.mxu0 %v1383
    %1915 = vmatprep.subr.mxu0 %v1388
    %1916 = vmatpush1.msra.mxu0 %v1387
    %1917 = vmatprep.subr.mxu0 0.0
    %1918 = vmatpush1.msra.mxu0 0.0
    %1919 = vmatprep.subr.mxu0 0.0
    %1920 = vmatpush1.msra.mxu0 0.0
    %1921 = vmatprep.subr.mxu0 0.0
    %1922 = vmatpush1.msra.mxu0 0.0
    %1923 = vmatprep.subr.mxu0 0.0
    %1924 = vmatpush1.msra.mxu0 0.0
    %1925 = vmatprep.subr.mxu0 0.0
    %1926 = vmatpush1.msra.mxu0 0.0
    %1927 = vmatprep.subr.mxu0 0.0
    %1928 = vmatpush1.msra.mxu0 0.0
    %1929 = vmatprep.subr.mxu0 0.0
    %1930 = vmatpush1.msra.mxu0 0.0
    %1931 = vmatprep.subr.mxu0 0.0
    %1932 = vmatpush1.msra.mxu0 0.0
    %1933 = vmatprep.subr.mxu0 0.0
    %1934 = vmatpush1.msra.mxu0 0.0
    %1935 = vmatprep.subr.mxu0 0.0
    %1936 = vmatpush1.msra.mxu0 0.0
    %1937 = vmatprep.subr.mxu0 0.0
    %1938 = vmatpush1.msra.mxu0 0.0
    %1939 = vmatprep.subr.mxu0 0.0
    %1940 = vmatpush1.msra.mxu0 0.0
    %1941 = vmatprep.subr.mxu0 0.0
    %1942 = vmatpush1.msra.mxu0 0.0
    %1943 = vmatprep.subr.mxu0 0.0
    %1944 = vmatpush1.msra.mxu0 0.0
    %1945 = vmatprep.subr.mxu0 0.0
    %1946 = vmatpush1.msra.mxu0 0.0
    %1947 = vmatprep.subr.mxu0 0.0
    %1948 = vmatpush1.msra.mxu0 0.0
    %1949 = vmatprep.mubr.f32.mxu0 0.0
    %1950 = vmatmul.mubr.f32.gmra.mrb[0].mxu0 %v1714
    %v1951 = vpop.f32.mrb[0].mxu0
    %v1952 = vadd.f32 0.0, %v1951
    %v1953 = vpop.f32.mrb[0].mxu0
    %v1954 = vadd.f32 0.0, %v1953
    %1955 = vdwg.mxu0
    %1956 = vmatprep.subr.mxu0 %v1330
    %1957 = vmatpush1.msra.mxu0 %v1329
    %1958 = vmatprep.subr.mxu0 %v1334
    %1959 = vmatpush1.msra.mxu0 %v1333
    %1960 = vmatprep.subr.mxu0 %v1338
    %1961 = vmatpush1.msra.mxu0 %v1337
    %1962 = vmatprep.subr.mxu0 %v1342
    %1963 = vmatpush1.msra.mxu0 %v1341
    %1964 = vmatprep.subr.mxu0 %v1346
    %1965 = vmatpush1.msra.mxu0 %v1345
    %1966 = vmatprep.subr.mxu0 %v1350
    %1967 = vmatpush1.msra.mxu0 %v1349
    %1968 = vmatprep.subr.mxu0 %v1354
    %1969 = vmatpush1.msra.mxu0 %v1353
    %1970 = vmatprep.subr.mxu0 %v1358
    %1971 = vmatpush1.msra.mxu0 %v1357
    %1972 = vmatprep.subr.mxu0 %v1362
    %1973 = vmatpush1.msra.mxu0 %v1361
    %1974 = vmatprep.subr.mxu0 %v1366
    %1975 = vmatpush1.msra.mxu0 %v1365
    %1976 = vmatprep.subr.mxu0 %v1370
    %1977 = vmatpush1.msra.mxu0 %v1369
    %1978 = vmatprep.subr.mxu0 %v1374
    %1979 = vmatpush1.msra.mxu0 %v1373
    %1980 = vmatprep.subr.mxu0 %v1378
    %1981 = vmatpush1.msra.mxu0 %v1377
    %1982 = vmatprep.subr.mxu0 %v1382
    %1983 = vmatpush1.msra.mxu0 %v1381
    %1984 = vmatprep.subr.mxu0 %v1386
    %1985 = vmatpush1.msra.mxu0 %v1385
    %1986 = vmatprep.subr.mxu0 %v1390
    %1987 = vmatpush1.msra.mxu0 %v1389
    %1988 = vmatprep.subr.mxu0 0.0
    %1989 = vmatpush1.msra.mxu0 0.0
    %1990 = vmatprep.subr.mxu0 0.0
    %1991 = vmatpush1.msra.mxu0 0.0
    %1992 = vmatprep.subr.mxu0 0.0
    %1993 = vmatpush1.msra.mxu0 0.0
    %1994 = vmatprep.subr.mxu0 0.0
    %1995 = vmatpush1.msra.mxu0 0.0
    %1996 = vmatprep.subr.mxu0 0.0
    %1997 = vmatpush1.msra.mxu0 0.0
    %1998 = vmatprep.subr.mxu0 0.0
    %1999 = vmatpush1.msra.mxu0 0.0
    %2000 = vmatprep.subr.mxu0 0.0
    %2001 = vmatpush1.msra.mxu0 0.0
    %2002 = vmatprep.subr.mxu0 0.0
    %2003 = vmatpush1.msra.mxu0 0.0
    %2004 = vmatprep.subr.mxu0 0.0
    %2005 = vmatpush1.msra.mxu0 0.0
    %2006 = vmatprep.subr.mxu0 0.0
    %2007 = vmatpush1.msra.mxu0 0.0
    %2008 = vmatprep.subr.mxu0 0.0
    %2009 = vmatpush1.msra.mxu0 0.0
    %2010 = vmatprep.subr.mxu0 0.0
    %2011 = vmatpush1.msra.mxu0 0.0
    %2012 = vmatprep.subr.mxu0 0.0
    %2013 = vmatpush1.msra.mxu0 0.0
    %2014 = vmatprep.subr.mxu0 0.0
    %2015 = vmatpush1.msra.mxu0 0.0
    %2016 = vmatprep.subr.mxu0 0.0
    %2017 = vmatpush1.msra.mxu0 0.0
    %2018 = vmatprep.subr.mxu0 0.0
    %2019 = vmatpush1.msra.mxu0 0.0
    %2020 = vmatprep.mubr.f32.mxu0 0.0
    %2021 = vmatmul.mubr.f32.gmra.mrb[0].mxu0 %v1714
    %v2022 = vpop.f32.mrb[0].mxu0
    %v2023 = vadd.f32 0.0, %v2022
    %v2024 = vpop.f32.mrb[0].mxu0
    %v2025 = vadd.f32 0.0, %v2024
    %2026 = vdwg.mxu0
    %v2027 = vadd.f32 %v1881, %v1952
    %v2028 = vadd.f32 %v1882, %v1954
    %v2029 = vadd.f32 %v1883, %v2023
    %v2030 = vadd.f32 %v1884, %v2025
    %v2031 = vxor.u32 %v2027, 2147483648
    %v2032 = vxor.u32 %v2028, 2147483648
    %v2033 = vxor.u32 %v2029, 2147483648
    %v2034 = vmul.f32 %v2031, 1.442695
    %v2035 = vpow.pop %v2034
    %v2036 = vmul.f32 %v2032, 1.442695
    %v2037 = vpow.pop %v2036
    %v2038 = vmul.f32 %v2033, 1.442695
    %v2039 = vpow.pop %v2038
    %v2040 = vadd.f32 %v2035, 1.0
    %v2041 = vadd.f32 %v2037, 1.0
    %v2042 = vadd.f32 %v2039, 1.0
    %v2043 = vrcp.pop %v2040
    %v2044 = vmul.f32 1.0, %v2043
    %v2045 = vrcp.pop %v2041
    %v2046 = vmul.f32 1.0, %v2045
    %v2047 = vrcp.pop %v2042
    %v2048 = vmul.f32 1.0, %v2047
    %v2049 = vtanh.pop %v2030
    %v2050 = vmul.f32 %v2046, %v1712
    %v2051 = vmul.f32 %v2044, %v2049
    %v2052 = vadd.f32 %v2050, %v2051
    %v2053 = vtanh.pop %v2052
    %v2054 = vmul.f32 %v2048, %v2053
    %2055 = vmatprep.subr.mxu0 %v1392
    %2056 = vmatpush1.msra.mxu0 %v1391
    %2057 = vmatprep.subr.mxu0 %v1396
    %2058 = vmatpush1.msra.mxu0 %v1395
    %2059 = vmatprep.subr.mxu0 %v1400
    %2060 = vmatpush1.msra.mxu0 %v1399
    %2061 = vmatprep.subr.mxu0 %v1404
    %2062 = vmatpush1.msra.mxu0 %v1403
    %2063 = vmatprep.subr.mxu0 %v1408
    %2064 = vmatpush1.msra.mxu0 %v1407
    %2065 = vmatprep.subr.mxu0 %v1412
    %2066 = vmatpush1.msra.mxu0 %v1411
    %2067 = vmatprep.subr.mxu0 %v1416
    %2068 = vmatpush1.msra.mxu0 %v1415
    %2069 = vmatprep.subr.mxu0 %v1420
    %2070 = vmatpush1.msra.mxu0 %v1419
    %2071 = vmatprep.subr.mxu0 %v1424
    %2072 = vmatpush1.msra.mxu0 %v1423
    %2073 = vmatprep.subr.mxu0 %v1428
    %2074 = vmatpush1.msra.mxu0 %v1427
    %2075 = vmatprep.subr.mxu0 %v1432
    %2076 = vmatpush1.msra.mxu0 %v1431
    %2077 = vmatprep.subr.mxu0 %v1436
    %2078 = vmatpush1.msra.mxu0 %v1435
    %2079 = vmatprep.subr.mxu0 %v1440
    %2080 = vmatpush1.msra.mxu0 %v1439
    %2081 = vmatprep.subr.mxu0 %v1444
    %2082 = vmatpush1.msra.mxu0 %v1443
    %2083 = vmatprep.subr.mxu0 %v1448
    %2084 = vmatpush1.msra.mxu0 %v1447
    %2085 = vmatprep.subr.mxu0 %v1452
    %2086 = vmatpush1.msra.mxu0 %v1451
    %2087 = vmatprep.subr.mxu0 %v1456
    %2088 = vmatpush1.msra.mxu0 %v1455
    %2089 = vmatprep.subr.mxu0 %v1460
    %2090 = vmatpush1.msra.mxu0 %v1459
    %2091 = vmatprep.subr.mxu0 %v1464
    %2092 = vmatpush1.msra.mxu0 %v1463
    %2093 = vmatprep.subr.mxu0 %v1468
    %2094 = vmatpush1.msra.mxu0 %v1467
    %2095 = vmatprep.subr.mxu0 %v1472
    %2096 = vmatpush1.msra.mxu0 %v1471
    %2097 = vmatprep.subr.mxu0 %v1476
    %2098 = vmatpush1.msra.mxu0 %v1475
    %2099 = vmatprep.subr.mxu0 %v1480
    %2100 = vmatpush1.msra.mxu0 %v1479
    %2101 = vmatprep.subr.mxu0 %v1484
    %2102 = vmatpush1.msra.mxu0 %v1483
    %2103 = vmatprep.subr.mxu0 %v1488
    %2104 = vmatpush1.msra.mxu0 %v1487
    %2105 = vmatprep.subr.mxu0 %v1492
    %2106 = vmatpush1.msra.mxu0 %v1491
    %2107 = vmatprep.subr.mxu0 %v1496
    %2108 = vmatpush1.msra.mxu0 %v1495
    %2109 = vmatprep.subr.mxu0 %v1500
    %2110 = vmatpush1.msra.mxu0 %v1499
    %2111 = vmatprep.subr.mxu0 %v1504
    %2112 = vmatpush1.msra.mxu0 %v1503
    %2113 = vmatprep.subr.mxu0 %v1508
    %2114 = vmatpush1.msra.mxu0 %v1507
    %2115 = vmatprep.subr.mxu0 %v1512
    %2116 = vmatpush1.msra.mxu0 %v1511
    %2117 = vmatprep.subr.mxu0 %v1516
    %2118 = vmatpush1.msra.mxu0 %v1515
    %2119 = vmatprep.mubr.f32.mxu0 %v1880
    %2120 = vmatmul.mubr.f32.gmra.mrb[0].mxu0 %v2054
    %v2121 = vpop.f32.mrb[0].mxu0
    %v2122 = vadd.f32 %v1524, %v2121
    %v2123 = vpop.f32.mrb[0].mxu0
    %v2124 = vadd.f32 %v1528, %v2123
    %2125 = vdwg.mxu0
    %2126 = vmatprep.subr.mxu0 %v1394
    %2127 = vmatpush1.msra.mxu0 %v1393
    %2128 = vmatprep.subr.mxu0 %v1398
    %2129 = vmatpush1.msra.mxu0 %v1397
    %2130 = vmatprep.subr.mxu0 %v1402
    %2131 = vmatpush1.msra.mxu0 %v1401
    %2132 = vmatprep.subr.mxu0 %v1406
    %2133 = vmatpush1.msra.mxu0 %v1405
    %2134 = vmatprep.subr.mxu0 %v1410
    %2135 = vmatpush1.msra.mxu0 %v1409
    %2136 = vmatprep.subr.mxu0 %v1414
    %2137 = vmatpush1.msra.mxu0 %v1413
    %2138 = vmatprep.subr.mxu0 %v1418
    %2139 = vmatpush1.msra.mxu0 %v1417
    %2140 = vmatprep.subr.mxu0 %v1422
    %2141 = vmatpush1.msra.mxu0 %v1421
    %2142 = vmatprep.subr.mxu0 %v1426
    %2143 = vmatpush1.msra.mxu0 %v1425
    %2144 = vmatprep.subr.mxu0 %v1430
    %2145 = vmatpush1.msra.mxu0 %v1429
    %2146 = vmatprep.subr.mxu0 %v1434
    %2147 = vmatpush1.msra.mxu0 %v1433
    %2148 = vmatprep.subr.mxu0 %v1438
    %2149 = vmatpush1.msra.mxu0 %v1437
    %2150 = vmatprep.subr.mxu0 %v1442
    %2151 = vmatpush1.msra.mxu0 %v1441
    %2152 = vmatprep.subr.mxu0 %v1446
    %2153 = vmatpush1.msra.mxu0 %v1445
    %2154 = vmatprep.subr.mxu0 %v1450
    %2155 = vmatpush1.msra.mxu0 %v1449
    %2156 = vmatprep.subr.mxu0 %v1454
    %2157 = vmatpush1.msra.mxu0 %v1453
    %2158 = vmatprep.subr.mxu0 %v1458
    %2159 = vmatpush1.msra.mxu0 %v1457
    %2160 = vmatprep.subr.mxu0 %v1462
    %2161 = vmatpush1.msra.mxu0 %v1461
    %2162 = vmatprep.subr.mxu0 %v1466
    %2163 = vmatpush1.msra.mxu0 %v1465
    %2164 = vmatprep.subr.mxu0 %v1470
    %2165 = vmatpush1.msra.mxu0 %v1469
    %2166 = vmatprep.subr.mxu0 %v1474
    %2167 = vmatpush1.msra.mxu0 %v1473
    %2168 = vmatprep.subr.mxu0 %v1478
    %2169 = vmatpush1.msra.mxu0 %v1477
    %2170 = vmatprep.subr.mxu0 %v1482
    %2171 = vmatpush1.msra.mxu0 %v1481
    %2172 = vmatprep.subr.mxu0 %v1486
    %2173 = vmatpush1.msra.mxu0 %v1485
    %2174 = vmatprep.subr.mxu0 %v1490
    %2175 = vmatpush1.msra.mxu0 %v1489
    %2176 = vmatprep.subr.mxu0 %v1494
    %2177 = vmatpush1.msra.mxu0 %v1493
    %2178 = vmatprep.subr.mxu0 %v1498
    %2179 = vmatpush1.msra.mxu0 %v1497
    %2180 = vmatprep.subr.mxu0 %v1502
    %2181 = vmatpush1.msra.mxu0 %v1501
    %2182 = vmatprep.subr.mxu0 %v1506
    %2183 = vmatpush1.msra.mxu0 %v1505
    %2184 = vmatprep.subr.mxu0 %v1510
    %2185 = vmatpush1.msra.mxu0 %v1509
    %2186 = vmatprep.subr.mxu0 %v1514
    %2187 = vmatpush1.msra.mxu0 %v1513
    %2188 = vmatprep.subr.mxu0 %v1518
    %2189 = vmatpush1.msra.mxu0 %v1517
    %2190 = vmatprep.mubr.f32.mxu0 %v1880
    %2191 = vmatmul.mubr.f32.gmra.mrb[0].mxu0 %v2054
    %v2192 = vpop.f32.mrb[0].mxu0
    %v2193 = vadd.f32 %v1532, %v2192
    %v2194 = vpop.f32.mrb[0].mxu0
    %v2195 = vadd.f32 %v1536, %v2194
    %2196 = vdwg.mxu0
    %v2197 = vxor.u32 %v2122, 2147483648
    %v2198 = vxor.u32 %v2124, 2147483648
    %v2199 = vxor.u32 %v2193, 2147483648
    %v2200 = vmul.f32 %v2197, 1.442695
    %v2201 = vpow.pop %v2200
    %v2202 = vmul.f32 %v2198, 1.442695
    %v2203 = vpow.pop %v2202
    %v2204 = vmul.f32 %v2199, 1.442695
    %v2205 = vpow.pop %v2204
    %v2206 = vadd.f32 %v2201, 1.0
    %v2207 = vadd.f32 %v2203, 1.0
    %v2208 = vadd.f32 %v2205, 1.0
    %v2209 = vrcp.pop %v2206
    %v2210 = vmul.f32 1.0, %v2209
    %v2211 = vrcp.pop %v2207
    %v2212 = vmul.f32 1.0, %v2211
    %v2213 = vrcp.pop %v2208
    %v2214 = vmul.f32 1.0, %v2213
    %v2215 = vtanh.pop %v2195
    %v2216 = vmul.f32 %v2212, %v1878
    %v2217 = vmul.f32 %v2210, %v2215
    %v2218 = vadd.f32 %v2216, %v2217
    %v2219 = vtanh.pop %v2218
    %v2220 = vmul.f32 %v2214, %v2219
    %v2221 = vld [vmem:[%s562] sm:$0xff]
    %v2222 = vld [vmem:[%s562 + $0x8] sm:$0xff]
    %v2223 = vld [vmem:[%s562 + $0x10] sm:$0xff]
    %v2224 = vld [vmem:[%s562 + $0x18] sm:$0xff]
    %2225 = vmatprep.subr.mxu0 %v1328
    %2226 = vmatpush1.msra.mxu0 %v1327
    %2227 = vmatprep.subr.mxu0 %v1332
    %2228 = vmatpush1.msra.mxu0 %v1331
    %2229 = vmatprep.subr.mxu0 %v1336
    %2230 = vmatpush1.msra.mxu0 %v1335
    %2231 = vmatprep.subr.mxu0 %v1340
    %2232 = vmatpush1.msra.mxu0 %v1339
    %2233 = vmatprep.subr.mxu0 %v1344
    %2234 = vmatpush1.msra.mxu0 %v1343
    %2235 = vmatprep.subr.mxu0 %v1348
    %2236 = vmatpush1.msra.mxu0 %v1347
    %2237 = vmatprep.subr.mxu0 %v1352
    %2238 = vmatpush1.msra.mxu0 %v1351
    %2239 = vmatprep.subr.mxu0 %v1356
    %2240 = vmatpush1.msra.mxu0 %v1355
    %2241 = vmatprep.subr.mxu0 %v1360
    %2242 = vmatpush1.msra.mxu0 %v1359
    %2243 = vmatprep.subr.mxu0 %v1364
    %2244 = vmatpush1.msra.mxu0 %v1363
    %2245 = vmatprep.subr.mxu0 %v1368
    %2246 = vmatpush1.msra.mxu0 %v1367
    %2247 = vmatprep.subr.mxu0 %v1372
    %2248 = vmatpush1.msra.mxu0 %v1371
    %2249 = vmatprep.subr.mxu0 %v1376
    %2250 = vmatpush1.msra.mxu0 %v1375
    %2251 = vmatprep.subr.mxu0 %v1380
    %2252 = vmatpush1.msra.mxu0 %v1379
    %2253 = vmatprep.subr.mxu0 %v1384
    %2254 = vmatpush1.msra.mxu0 %v1383
    %2255 = vmatprep.subr.mxu0 %v1388
    %2256 = vmatpush1.msra.mxu0 %v1387
    %2257 = vmatprep.subr.mxu0 0.0
    %2258 = vmatpush1.msra.mxu0 0.0
    %2259 = vmatprep.subr.mxu0 0.0
    %2260 = vmatpush1.msra.mxu0 0.0
    %2261 = vmatprep.subr.mxu0 0.0
    %2262 = vmatpush1.msra.mxu0 0.0
    %2263 = vmatprep.subr.mxu0 0.0
    %2264 = vmatpush1.msra.mxu0 0.0
    %2265 = vmatprep.subr.mxu0 0.0
    %2266 = vmatpush1.msra.mxu0 0.0
    %2267 = vmatprep.subr.mxu0 0.0
    %2268 = vmatpush1.msra.mxu0 0.0
    %2269 = vmatprep.subr.mxu0 0.0
    %2270 = vmatpush1.msra.mxu0 0.0
    %2271 = vmatprep.subr.mxu0 0.0
    %2272 = vmatpush1.msra.mxu0 0.0
    %2273 = vmatprep.subr.mxu0 0.0
    %2274 = vmatpush1.msra.mxu0 0.0
    %2275 = vmatprep.subr.mxu0 0.0
    %2276 = vmatpush1.msra.mxu0 0.0
    %2277 = vmatprep.subr.mxu0 0.0
    %2278 = vmatpush1.msra.mxu0 0.0
    %2279 = vmatprep.subr.mxu0 0.0
    %2280 = vmatpush1.msra.mxu0 0.0
    %2281 = vmatprep.subr.mxu0 0.0
    %2282 = vmatpush1.msra.mxu0 0.0
    %2283 = vmatprep.subr.mxu0 0.0
    %2284 = vmatpush1.msra.mxu0 0.0
    %2285 = vmatprep.subr.mxu0 0.0
    %2286 = vmatpush1.msra.mxu0 0.0
    %2287 = vmatprep.subr.mxu0 0.0
    %2288 = vmatpush1.msra.mxu0 0.0
    %2289 = vmatprep.mubr.f32.mxu0 0.0
    %2290 = vmatmul.mubr.f32.gmra.mrb[0].mxu0 %v2054
    %v2291 = vpop.f32.mrb[0].mxu0
    %v2292 = vadd.f32 0.0, %v2291
    %v2293 = vpop.f32.mrb[0].mxu0
    %v2294 = vadd.f32 0.0, %v2293
    %2295 = vdwg.mxu0
    %2296 = vmatprep.subr.mxu0 %v1330
    %2297 = vmatpush1.msra.mxu0 %v1329
    %2298 = vmatprep.subr.mxu0 %v1334
    %2299 = vmatpush1.msra.mxu0 %v1333
    %2300 = vmatprep.subr.mxu0 %v1338
    %2301 = vmatpush1.msra.mxu0 %v1337
    %2302 = vmatprep.subr.mxu0 %v1342
    %2303 = vmatpush1.msra.mxu0 %v1341
    %2304 = vmatprep.subr.mxu0 %v1346
    %2305 = vmatpush1.msra.mxu0 %v1345
    %2306 = vmatprep.subr.mxu0 %v1350
    %2307 = vmatpush1.msra.mxu0 %v1349
    %2308 = vmatprep.subr.mxu0 %v1354
    %2309 = vmatpush1.msra.mxu0 %v1353
    %2310 = vmatprep.subr.mxu0 %v1358
    %2311 = vmatpush1.msra.mxu0 %v1357
    %2312 = vmatprep.subr.mxu0 %v1362
    %2313 = vmatpush1.msra.mxu0 %v1361
    %2314 = vmatprep.subr.mxu0 %v1366
    %2315 = vmatpush1.msra.mxu0 %v1365
    %2316 = vmatprep.subr.mxu0 %v1370
    %2317 = vmatpush1.msra.mxu0 %v1369
    %2318 = vmatprep.subr.mxu0 %v1374
    %2319 = vmatpush1.msra.mxu0 %v1373
    %2320 = vmatprep.subr.mxu0 %v1378
    %2321 = vmatpush1.msra.mxu0 %v1377
    %2322 = vmatprep.subr.mxu0 %v1382
    %2323 = vmatpush1.msra.mxu0 %v1381
    %2324 = vmatprep.subr.mxu0 %v1386
    %2325 = vmatpush1.msra.mxu0 %v1385
    %2326 = vmatprep.subr.mxu0 %v1390
    %2327 = vmatpush1.msra.mxu0 %v1389
    %2328 = vmatprep.subr.mxu0 0.0
    %2329 = vmatpush1.msra.mxu0 0.0
    %2330 = vmatprep.subr.mxu0 0.0
    %2331 = vmatpush1.msra.mxu0 0.0
    %2332 = vmatprep.subr.mxu0 0.0
    %2333 = vmatpush1.msra.mxu0 0.0
    %2334 = vmatprep.subr.mxu0 0.0
    %2335 = vmatpush1.msra.mxu0 0.0
    %2336 = vmatprep.subr.mxu0 0.0
    %2337 = vmatpush1.msra.mxu0 0.0
    %2338 = vmatprep.subr.mxu0 0.0
    %2339 = vmatpush1.msra.mxu0 0.0
    %2340 = vmatprep.subr.mxu0 0.0
    %2341 = vmatpush1.msra.mxu0 0.0
    %2342 = vmatprep.subr.mxu0 0.0
    %2343 = vmatpush1.msra.mxu0 0.0
    %2344 = vmatprep.subr.mxu0 0.0
    %2345 = vmatpush1.msra.mxu0 0.0
    %2346 = vmatprep.subr.mxu0 0.0
    %2347 = vmatpush1.msra.mxu0 0.0
    %2348 = vmatprep.subr.mxu0 0.0
    %2349 = vmatpush1.msra.mxu0 0.0
    %2350 = vmatprep.subr.mxu0 0.0
    %2351 = vmatpush1.msra.mxu0 0.0
    %2352 = vmatprep.subr.mxu0 0.0
    %2353 = vmatpush1.msra.mxu0 0.0
    %2354 = vmatprep.subr.mxu0 0.0
    %2355 = vmatpush1.msra.mxu0 0.0
    %2356 = vmatprep.subr.mxu0 0.0
    %2357 = vmatpush1.msra.mxu0 0.0
    %2358 = vmatprep.subr.mxu0 0.0
    %2359 = vmatpush1.msra.mxu0 0.0
    %2360 = vmatprep.mubr.f32.mxu0 0.0
    %2361 = vmatmul.mubr.f32.gmra.mrb[0].mxu0 %v2054
    %v2362 = vpop.f32.mrb[0].mxu0
    %v2363 = vadd.f32 0.0, %v2362
    %v2364 = vpop.f32.mrb[0].mxu0
    %v2365 = vadd.f32 0.0, %v2364
    %2366 = vdwg.mxu0
    %v2367 = vadd.f32 %v2221, %v2292
    %v2368 = vadd.f32 %v2222, %v2294
    %v2369 = vadd.f32 %v2223, %v2363
    %v2370 = vadd.f32 %v2224, %v2365
    %v2371 = vxor.u32 %v2367, 2147483648
    %v2372 = vxor.u32 %v2368, 2147483648
    %v2373 = vxor.u32 %v2369, 2147483648
    %v2374 = vmul.f32 %v2371, 1.442695
    %v2375 = vpow.pop %v2374
    %v2376 = vmul.f32 %v2372, 1.442695
    %v2377 = vpow.pop %v2376
    %v2378 = vmul.f32 %v2373, 1.442695
    %v2379 = vpow.pop %v2378
    %v2380 = vadd.f32 %v2375, 1.0
    %v2381 = vadd.f32 %v2377, 1.0
    %v2382 = vadd.f32 %v2379, 1.0
    %v2383 = vrcp.pop %v2380
    %v2384 = vmul.f32 1.0, %v2383
    %v2385 = vrcp.pop %v2381
    %v2386 = vmul.f32 1.0, %v2385
    %v2387 = vrcp.pop %v2382
    %v2388 = vmul.f32 1.0, %v2387
    %v2389 = vtanh.pop %v2370
    %v2390 = vmul.f32 %v2386, %v2052
    %v2391 = vmul.f32 %v2384, %v2389
    %v2392 = vadd.f32 %v2390, %v2391
    %v2393 = vtanh.pop %v2392
    %v2394 = vmul.f32 %v2388, %v2393
    %2395 = vmatprep.subr.mxu0 %v1392
    %2396 = vmatpush1.msra.mxu0 %v1391
    %2397 = vmatprep.subr.mxu0 %v1396
    %2398 = vmatpush1.msra.mxu0 %v1395
    %2399 = vmatprep.subr.mxu0 %v1400
    %2400 = vmatpush1.msra.mxu0 %v1399
    %2401 = vmatprep.subr.mxu0 %v1404
    %2402 = vmatpush1.msra.mxu0 %v1403
    %2403 = vmatprep.subr.mxu0 %v1408
    %2404 = vmatpush1.msra.mxu0 %v1407
    %2405 = vmatprep.subr.mxu0 %v1412
    %2406 = vmatpush1.msra.mxu0 %v1411
    %2407 = vmatprep.subr.mxu0 %v1416
    %2408 = vmatpush1.msra.mxu0 %v1415
    %2409 = vmatprep.subr.mxu0 %v1420
    %2410 = vmatpush1.msra.mxu0 %v1419
    %2411 = vmatprep.subr.mxu0 %v1424
    %2412 = vmatpush1.msra.mxu0 %v1423
    %2413 = vmatprep.subr.mxu0 %v1428
    %2414 = vmatpush1.msra.mxu0 %v1427
    %2415 = vmatprep.subr.mxu0 %v1432
    %2416 = vmatpush1.msra.mxu0 %v1431
    %2417 = vmatprep.subr.mxu0 %v1436
    %2418 = vmatpush1.msra.mxu0 %v1435
    %2419 = vmatprep.subr.mxu0 %v1440
    %2420 = vmatpush1.msra.mxu0 %v1439
    %2421 = vmatprep.subr.mxu0 %v1444
    %2422 = vmatpush1.msra.mxu0 %v1443
    %2423 = vmatprep.subr.mxu0 %v1448
    %2424 = vmatpush1.msra.mxu0 %v1447
    %2425 = vmatprep.subr.mxu0 %v1452
    %2426 = vmatpush1.msra.mxu0 %v1451
    %2427 = vmatprep.subr.mxu0 %v1456
    %2428 = vmatpush1.msra.mxu0 %v1455
    %2429 = vmatprep.subr.mxu0 %v1460
    %2430 = vmatpush1.msra.mxu0 %v1459
    %2431 = vmatprep.subr.mxu0 %v1464
    %2432 = vmatpush1.msra.mxu0 %v1463
    %2433 = vmatprep.subr.mxu0 %v1468
    %2434 = vmatpush1.msra.mxu0 %v1467
    %2435 = vmatprep.subr.mxu0 %v1472
    %2436 = vmatpush1.msra.mxu0 %v1471
    %2437 = vmatprep.subr.mxu0 %v1476
    %2438 = vmatpush1.msra.mxu0 %v1475
    %2439 = vmatprep.subr.mxu0 %v1480
    %2440 = vmatpush1.msra.mxu0 %v1479
    %2441 = vmatprep.subr.mxu0 %v1484
    %2442 = vmatpush1.msra.mxu0 %v1483
    %2443 = vmatprep.subr.mxu0 %v1488
    %2444 = vmatpush1.msra.mxu0 %v1487
    %2445 = vmatprep.subr.mxu0 %v1492
    %2446 = vmatpush1.msra.mxu0 %v1491
    %2447 = vmatprep.subr.mxu0 %v1496
    %2448 = vmatpush1.msra.mxu0 %v1495
    %2449 = vmatprep.subr.mxu0 %v1500
    %2450 = vmatpush1.msra.mxu0 %v1499
    %2451 = vmatprep.subr.mxu0 %v1504
    %2452 = vmatpush1.msra.mxu0 %v1503
    %2453 = vmatprep.subr.mxu0 %v1508
    %2454 = vmatpush1.msra.mxu0 %v1507
    %2455 = vmatprep.subr.mxu0 %v1512
    %2456 = vmatpush1.msra.mxu0 %v1511
    %2457 = vmatprep.subr.mxu0 %v1516
    %2458 = vmatpush1.msra.mxu0 %v1515
    %2459 = vmatprep.mubr.f32.mxu0 %v2220
    %2460 = vmatmul.mubr.f32.gmra.mrb[0].mxu0 %v2394
    %v2461 = vpop.f32.mrb[0].mxu0
    %v2462 = vadd.f32 %v1524, %v2461
    %v2463 = vpop.f32.mrb[0].mxu0
    %v2464 = vadd.f32 %v1528, %v2463
    %2465 = vdwg.mxu0
    %2466 = vmatprep.subr.mxu0 %v1394
    %2467 = vmatpush1.msra.mxu0 %v1393
    %2468 = vmatprep.subr.mxu0 %v1398
    %2469 = vmatpush1.msra.mxu0 %v1397
    %2470 = vmatprep.subr.mxu0 %v1402
    %2471 = vmatpush1.msra.mxu0 %v1401
    %2472 = vmatprep.subr.mxu0 %v1406
    %2473 = vmatpush1.msra.mxu0 %v1405
    %2474 = vmatprep.subr.mxu0 %v1410
    %2475 = vmatpush1.msra.mxu0 %v1409
    %2476 = vmatprep.subr.mxu0 %v1414
    %2477 = vmatpush1.msra.mxu0 %v1413
    %2478 = vmatprep.subr.mxu0 %v1418
    %2479 = vmatpush1.msra.mxu0 %v1417
    %2480 = vmatprep.subr.mxu0 %v1422
    %2481 = vmatpush1.msra.mxu0 %v1421
    %2482 = vmatprep.subr.mxu0 %v1426
    %2483 = vmatpush1.msra.mxu0 %v1425
    %2484 = vmatprep.subr.mxu0 %v1430
    %2485 = vmatpush1.msra.mxu0 %v1429
    %2486 = vmatprep.subr.mxu0 %v1434
    %2487 = vmatpush1.msra.mxu0 %v1433
    %2488 = vmatprep.subr.mxu0 %v1438
    %2489 = vmatpush1.msra.mxu0 %v1437
    %2490 = vmatprep.subr.mxu0 %v1442
    %2491 = vmatpush1.msra.mxu0 %v1441
    %2492 = vmatprep.subr.mxu0 %v1446
    %2493 = vmatpush1.msra.mxu0 %v1445
    %2494 = vmatprep.subr.mxu0 %v1450
    %2495 = vmatpush1.msra.mxu0 %v1449
    %2496 = vmatprep.subr.mxu0 %v1454
    %2497 = vmatpush1.msra.mxu0 %v1453
    %2498 = vmatprep.subr.mxu0 %v1458
    %2499 = vmatpush1.msra.mxu0 %v1457
    %2500 = vmatprep.subr.mxu0 %v1462
    %2501 = vmatpush1.msra.mxu0 %v1461
    %2502 = vmatprep.subr.mxu0 %v1466
    %2503 = vmatpush1.msra.mxu0 %v1465
    %2504 = vmatprep.subr.mxu0 %v1470
    %2505 = vmatpush1.msra.mxu0 %v1469
    %2506 = vmatprep.subr.mxu0 %v1474
    %2507 = vmatpush1.msra.mxu0 %v1473
    %2508 = vmatprep.subr.mxu0 %v1478
    %2509 = vmatpush1.msra.mxu0 %v1477
    %2510 = vmatprep.subr.mxu0 %v1482
    %2511 = vmatpush1.msra.mxu0 %v1481
    %2512 = vmatprep.subr.mxu0 %v1486
    %2513 = vmatpush1.msra.mxu0 %v1485
    %2514 = vmatprep.subr.mxu0 %v1490
    %2515 = vmatpush1.msra.mxu0 %v1489
    %2516 = vmatprep.subr.mxu0 %v1494
    %2517 = vmatpush1.msra.mxu0 %v1493
    %2518 = vmatprep.subr.mxu0 %v1498
    %2519 = vmatpush1.msra.mxu0 %v1497
    %2520 = vmatprep.subr.mxu0 %v1502
    %2521 = vmatpush1.msra.mxu0 %v1501
    %2522 = vmatprep.subr.mxu0 %v1506
    %2523 = vmatpush1.msra.mxu0 %v1505
    %2524 = vmatprep.subr.mxu0 %v1510
    %2525 = vmatpush1.msra.mxu0 %v1509
    %2526 = vmatprep.subr.mxu0 %v1514
    %2527 = vmatpush1.msra.mxu0 %v1513
    %2528 = vmatprep.subr.mxu0 %v1518
    %2529 = vmatpush1.msra.mxu0 %v1517
    %2530 = vmatprep.mubr.f32.mxu0 %v2220
    %2531 = vmatmul.mubr.f32.gmra.mrb[0].mxu0 %v2394
    %v2532 = vpop.f32.mrb[0].mxu0
    %v2533 = vadd.f32 %v1532, %v2532
    %v2534 = vpop.f32.mrb[0].mxu0
    %v2535 = vadd.f32 %v1536, %v2534
    %2536 = vdwg.mxu0
    %v2537 = vxor.u32 %v2462, 2147483648
    %v2538 = vxor.u32 %v2464, 2147483648
    %v2539 = vxor.u32 %v2533, 2147483648
    %v2540 = vmul.f32 %v2537, 1.442695
    %v2541 = vpow.pop %v2540
    %v2542 = vmul.f32 %v2538, 1.442695
    %v2543 = vpow.pop %v2542
    %v2544 = vmul.f32 %v2539, 1.442695
    %v2545 = vpow.pop %v2544
    %v2546 = vadd.f32 %v2541, 1.0
    %v2547 = vadd.f32 %v2543, 1.0
    %v2548 = vadd.f32 %v2545, 1.0
    %v2549 = vrcp.pop %v2546
    %v2550 = vmul.f32 1.0, %v2549
    %v2551 = vrcp.pop %v2547
    %v2552 = vmul.f32 1.0, %v2551
    %v2553 = vrcp.pop %v2548
    %v2554 = vmul.f32 1.0, %v2553
    %v2555 = vtanh.pop %v2535
    %v2556 = vmul.f32 %v2552, %v2218
    %v2557 = vmul.f32 %v2550, %v2555
    %v2558 = vadd.f32 %v2556, %v2557
    %v2559 = vtanh.pop %v2558
    %v2560 = vmul.f32 %v2554, %v2559
    %v2561 = vld [vmem:[%s714] sm:$0xff]
    %v2562 = vld [vmem:[%s714 + $0x8] sm:$0xff]
    %v2563 = vld [vmem:[%s714 + $0x10] sm:$0xff]
    %v2564 = vld [vmem:[%s714 + $0x18] sm:$0xff]
    %2565 = vmatprep.subr.mxu0 %v1328
    %2566 = vmatpush1.msra.mxu0 %v1327
    %2567 = vmatprep.subr.mxu0 %v1332
    %2568 = vmatpush1.msra.mxu0 %v1331
    %2569 = vmatprep.subr.mxu0 %v1336
    %2570 = vmatpush1.msra.mxu0 %v1335
    %2571 = vmatprep.subr.mxu0 %v1340
    %2572 = vmatpush1.msra.mxu0 %v1339
    %2573 = vmatprep.subr.mxu0 %v1344
    %2574 = vmatpush1.msra.mxu0 %v1343
    %2575 = vmatprep.subr.mxu0 %v1348
    %2576 = vmatpush1.msra.mxu0 %v1347
    %2577 = vmatprep.subr.mxu0 %v1352
    %2578 = vmatpush1.msra.mxu0 %v1351
    %2579 = vmatprep.subr.mxu0 %v1356
    %2580 = vmatpush1.msra.mxu0 %v1355
    %2581 = vmatprep.subr.mxu0 %v1360
    %2582 = vmatpush1.msra.mxu0 %v1359
    %2583 = vmatprep.subr.mxu0 %v1364
    %2584 = vmatpush1.msra.mxu0 %v1363
    %2585 = vmatprep.subr.mxu0 %v1368
    %2586 = vmatpush1.msra.mxu0 %v1367
    %2587 = vmatprep.subr.mxu0 %v1372
    %2588 = vmatpush1.msra.mxu0 %v1371
    %2589 = vmatprep.subr.mxu0 %v1376
    %2590 = vmatpush1.msra.mxu0 %v1375
    %2591 = vmatprep.subr.mxu0 %v1380
    %2592 = vmatpush1.msra.mxu0 %v1379
    %2593 = vmatprep.subr.mxu0 %v1384
    %2594 = vmatpush1.msra.mxu0 %v1383
    %2595 = vmatprep.subr.mxu0 %v1388
    %2596 = vmatpush1.msra.mxu0 %v1387
    %2597 = vmatprep.subr.mxu0 0.0
    %2598 = vmatpush1.msra.mxu0 0.0
    %2599 = vmatprep.subr.mxu0 0.0
    %2600 = vmatpush1.msra.mxu0 0.0
    %2601 = vmatprep.subr.mxu0 0.0
    %2602 = vmatpush1.msra.mxu0 0.0
    %2603 = vmatprep.subr.mxu0 0.0
    %2604 = vmatpush1.msra.mxu0 0.0
    %2605 = vmatprep.subr.mxu0 0.0
    %2606 = vmatpush1.msra.mxu0 0.0
    %2607 = vmatprep.subr.mxu0 0.0
    %2608 = vmatpush1.msra.mxu0 0.0
    %2609 = vmatprep.subr.mxu0 0.0
    %2610 = vmatpush1.msra.mxu0 0.0
    %2611 = vmatprep.subr.mxu0 0.0
    %2612 = vmatpush1.msra.mxu0 0.0
    %2613 = vmatprep.subr.mxu0 0.0
    %2614 = vmatpush1.msra.mxu0 0.0
    %2615 = vmatprep.subr.mxu0 0.0
    %2616 = vmatpush1.msra.mxu0 0.0
    %2617 = vmatprep.subr.mxu0 0.0
    %2618 = vmatpush1.msra.mxu0 0.0
    %2619 = vmatprep.subr.mxu0 0.0
    %2620 = vmatpush1.msra.mxu0 0.0
    %2621 = vmatprep.subr.mxu0 0.0
    %2622 = vmatpush1.msra.mxu0 0.0
    %2623 = vmatprep.subr.mxu0 0.0
    %2624 = vmatpush1.msra.mxu0 0.0
    %2625 = vmatprep.subr.mxu0 0.0
    %2626 = vmatpush1.msra.mxu0 0.0
    %2627 = vmatprep.subr.mxu0 0.0
    %2628 = vmatpush1.msra.mxu0 0.0
    %2629 = vmatprep.mubr.f32.mxu0 0.0
    %2630 = vmatmul.mubr.f32.gmra.mrb[0].mxu0 %v2394
    %v2631 = vpop.f32.mrb[0].mxu0
    %v2632 = vadd.f32 0.0, %v2631
    %v2633 = vpop.f32.mrb[0].mxu0
    %v2634 = vadd.f32 0.0, %v2633
    %2635 = vdwg.mxu0
    %2636 = vmatprep.subr.mxu0 %v1330
    %2637 = vmatpush1.msra.mxu0 %v1329
    %2638 = vmatprep.subr.mxu0 %v1334
    %2639 = vmatpush1.msra.mxu0 %v1333
    %2640 = vmatprep.subr.mxu0 %v1338
    %2641 = vmatpush1.msra.mxu0 %v1337
    %2642 = vmatprep.subr.mxu0 %v1342
    %2643 = vmatpush1.msra.mxu0 %v1341
    %2644 = vmatprep.subr.mxu0 %v1346
    %2645 = vmatpush1.msra.mxu0 %v1345
    %2646 = vmatprep.subr.mxu0 %v1350
    %2647 = vmatpush1.msra.mxu0 %v1349
    %2648 = vmatprep.subr.mxu0 %v1354
    %2649 = vmatpush1.msra.mxu0 %v1353
    %2650 = vmatprep.subr.mxu0 %v1358
    %2651 = vmatpush1.msra.mxu0 %v1357
    %2652 = vmatprep.subr.mxu0 %v1362
    %2653 = vmatpush1.msra.mxu0 %v1361
    %2654 = vmatprep.subr.mxu0 %v1366
    %2655 = vmatpush1.msra.mxu0 %v1365
    %2656 = vmatprep.subr.mxu0 %v1370
    %2657 = vmatpush1.msra.mxu0 %v1369
    %2658 = vmatprep.subr.mxu0 %v1374
    %2659 = vmatpush1.msra.mxu0 %v1373
    %2660 = vmatprep.subr.mxu0 %v1378
    %2661 = vmatpush1.msra.mxu0 %v1377
    %2662 = vmatprep.subr.mxu0 %v1382
    %2663 = vmatpush1.msra.mxu0 %v1381
    %2664 = vmatprep.subr.mxu0 %v1386
    %2665 = vmatpush1.msra.mxu0 %v1385
    %2666 = vmatprep.subr.mxu0 %v1390
    %2667 = vmatpush1.msra.mxu0 %v1389
    %2668 = vmatprep.subr.mxu0 0.0
    %2669 = vmatpush1.msra.mxu0 0.0
    %2670 = vmatprep.subr.mxu0 0.0
    %2671 = vmatpush1.msra.mxu0 0.0
    %2672 = vmatprep.subr.mxu0 0.0
    %2673 = vmatpush1.msra.mxu0 0.0
    %2674 = vmatprep.subr.mxu0 0.0
    %2675 = vmatpush1.msra.mxu0 0.0
    %2676 = vmatprep.subr.mxu0 0.0
    %2677 = vmatpush1.msra.mxu0 0.0
    %2678 = vmatprep.subr.mxu0 0.0
    %2679 = vmatpush1.msra.mxu0 0.0
    %2680 = vmatprep.subr.mxu0 0.0
    %2681 = vmatpush1.msra.mxu0 0.0
    %2682 = vmatprep.subr.mxu0 0.0
    %2683 = vmatpush1.msra.mxu0 0.0
    %2684 = vmatprep.subr.mxu0 0.0
    %2685 = vmatpush1.msra.mxu0 0.0
    %2686 = vmatprep.subr.mxu0 0.0
    %2687 = vmatpush1.msra.mxu0 0.0
    %2688 = vmatprep.subr.mxu0 0.0
    %2689 = vmatpush1.msra.mxu0 0.0
    %2690 = vmatprep.subr.mxu0 0.0
    %2691 = vmatpush1.msra.mxu0 0.0
    %2692 = vmatprep.subr.mxu0 0.0
    %2693 = vmatpush1.msra.mxu0 0.0
    %2694 = vmatprep.subr.mxu0 0.0
    %2695 = vmatpush1.msra.mxu0 0.0
    %2696 = vmatprep.subr.mxu0 0.0
    %2697 = vmatpush1.msra.mxu0 0.0
    %2698 = vmatprep.subr.mxu0 0.0
    %2699 = vmatpush1.msra.mxu0 0.0
    %2700 = vmatprep.mubr.f32.mxu0 0.0
    %2701 = vmatmul.mubr.f32.gmra.mrb[0].mxu0 %v2394
    %v2702 = vpop.f32.mrb[0].mxu0
    %v2703 = vadd.f32 0.0, %v2702
    %v2704 = vpop.f32.mrb[0].mxu0
    %v2705 = vadd.f32 0.0, %v2704
    %2706 = vdwg.mxu0
    %v2707 = vadd.f32 %v2561, %v2632
    %v2708 = vadd.f32 %v2562, %v2634
    %v2709 = vadd.f32 %v2563, %v2703
    %v2710 = vadd.f32 %v2564, %v2705
    %v2711 = vxor.u32 %v2707, 2147483648
    %v2712 = vxor.u32 %v2708, 2147483648
    %v2713 = vxor.u32 %v2709, 2147483648
    %v2714 = vmul.f32 %v2711, 1.442695
    %v2715 = vpow.pop %v2714
    %v2716 = vmul.f32 %v2712, 1.442695
    %v2717 = vpow.pop %v2716
    %v2718 = vmul.f32 %v2713, 1.442695
    %v2719 = vpow.pop %v2718
    %v2720 = vadd.f32 %v2715, 1.0
    %v2721 = vadd.f32 %v2717, 1.0
    %v2722 = vadd.f32 %v2719, 1.0
    %v2723 = vrcp.pop %v2720
    %v2724 = vmul.f32 1.0, %v2723
    %v2725 = vrcp.pop %v2721
    %v2726 = vmul.f32 1.0, %v2725
    %v2727 = vrcp.pop %v2722
    %v2728 = vmul.f32 1.0, %v2727
    %v2729 = vtanh.pop %v2710
    %v2730 = vmul.f32 %v2726, %v2392
    %v2731 = vmul.f32 %v2724, %v2729
    %v2732 = vadd.f32 %v2730, %v2731
    %v2733 = vtanh.pop %v2732
    %v2734 = vmul.f32 %v2728, %v2733
    %2735 = vmatprep.subr.mxu0 %v1392
    %2736 = vmatpush1.msra.mxu0 %v1391
    %2737 = vmatprep.subr.mxu0 %v1396
    %2738 = vmatpush1.msra.mxu0 %v1395
    %2739 = vmatprep.subr.mxu0 %v1400
    %2740 = vmatpush1.msra.mxu0 %v1399
    %2741 = vmatprep.subr.mxu0 %v1404
    %2742 = vmatpush1.msra.mxu0 %v1403
    %2743 = vmatprep.subr.mxu0 %v1408
    %2744 = vmatpush1.msra.mxu0 %v1407
    %2745 = vmatprep.subr.mxu0 %v1412
    %2746 = vmatpush1.msra.mxu0 %v1411
    %2747 = vmatprep.subr.mxu0 %v1416
    %2748 = vmatpush1.msra.mxu0 %v1415
    %2749 = vmatprep.subr.mxu0 %v1420
    %2750 = vmatpush1.msra.mxu0 %v1419
    %2751 = vmatprep.subr.mxu0 %v1424
    %2752 = vmatpush1.msra.mxu0 %v1423
    %2753 = vmatprep.subr.mxu0 %v1428
    %2754 = vmatpush1.msra.mxu0 %v1427
    %2755 = vmatprep.subr.mxu0 %v1432
    %2756 = vmatpush1.msra.mxu0 %v1431
    %2757 = vmatprep.subr.mxu0 %v1436
    %2758 = vmatpush1.msra.mxu0 %v1435
    %2759 = vmatprep.subr.mxu0 %v1440
    %2760 = vmatpush1.msra.mxu0 %v1439
    %2761 = vmatprep.subr.mxu0 %v1444
    %2762 = vmatpush1.msra.mxu0 %v1443
    %2763 = vmatprep.subr.mxu0 %v1448
    %2764 = vmatpush1.msra.mxu0 %v1447
    %2765 = vmatprep.subr.mxu0 %v1452
    %2766 = vmatpush1.msra.mxu0 %v1451
    %2767 = vmatprep.subr.mxu0 %v1456
    %2768 = vmatpush1.msra.mxu0 %v1455
    %2769 = vmatprep.subr.mxu0 %v1460
    %2770 = vmatpush1.msra.mxu0 %v1459
    %2771 = vmatprep.subr.mxu0 %v1464
    %2772 = vmatpush1.msra.mxu0 %v1463
    %2773 = vmatprep.subr.mxu0 %v1468
    %2774 = vmatpush1.msra.mxu0 %v1467
    %2775 = vmatprep.subr.mxu0 %v1472
    %2776 = vmatpush1.msra.mxu0 %v1471
    %2777 = vmatprep.subr.mxu0 %v1476
    %2778 = vmatpush1.msra.mxu0 %v1475
    %2779 = vmatprep.subr.mxu0 %v1480
    %2780 = vmatpush1.msra.mxu0 %v1479
    %2781 = vmatprep.subr.mxu0 %v1484
    %2782 = vmatpush1.msra.mxu0 %v1483
    %2783 = vmatprep.subr.mxu0 %v1488
    %2784 = vmatpush1.msra.mxu0 %v1487
    %2785 = vmatprep.subr.mxu0 %v1492
    %2786 = vmatpush1.msra.mxu0 %v1491
    %2787 = vmatprep.subr.mxu0 %v1496
    %2788 = vmatpush1.msra.mxu0 %v1495
    %2789 = vmatprep.subr.mxu0 %v1500
    %2790 = vmatpush1.msra.mxu0 %v1499
    %2791 = vmatprep.subr.mxu0 %v1504
    %2792 = vmatpush1.msra.mxu0 %v1503
    %2793 = vmatprep.subr.mxu0 %v1508
    %2794 = vmatpush1.msra.mxu0 %v1507
    %2795 = vmatprep.subr.mxu0 %v1512
    %2796 = vmatpush1.msra.mxu0 %v1511
    %2797 = vmatprep.subr.mxu0 %v1516
    %2798 = vmatpush1.msra.mxu0 %v1515
    %2799 = vmatprep.mubr.f32.mxu0 %v2560
    %2800 = vmatmul.mubr.f32.gmra.mrb[0].mxu0 %v2734
    %v2801 = vpop.f32.mrb[0].mxu0
    %v2802 = vadd.f32 %v1524, %v2801
    %v2803 = vpop.f32.mrb[0].mxu0
    %v2804 = vadd.f32 %v1528, %v2803
    %2805 = vdwg.mxu0
    %2806 = vmatprep.subr.mxu0 %v1394
    %2807 = vmatpush1.msra.mxu0 %v1393
    %2808 = vmatprep.subr.mxu0 %v1398
    %2809 = vmatpush1.msra.mxu0 %v1397
    %2810 = vmatprep.subr.mxu0 %v1402
    %2811 = vmatpush1.msra.mxu0 %v1401
    %2812 = vmatprep.subr.mxu0 %v1406
    %2813 = vmatpush1.msra.mxu0 %v1405
    %2814 = vmatprep.subr.mxu0 %v1410
    %2815 = vmatpush1.msra.mxu0 %v1409
    %2816 = vmatprep.subr.mxu0 %v1414
    %2817 = vmatpush1.msra.mxu0 %v1413
    %2818 = vmatprep.subr.mxu0 %v1418
    %2819 = vmatpush1.msra.mxu0 %v1417
    %2820 = vmatprep.subr.mxu0 %v1422
    %2821 = vmatpush1.msra.mxu0 %v1421
    %2822 = vmatprep.subr.mxu0 %v1426
    %2823 = vmatpush1.msra.mxu0 %v1425
    %2824 = vmatprep.subr.mxu0 %v1430
    %2825 = vmatpush1.msra.mxu0 %v1429
    %2826 = vmatprep.subr.mxu0 %v1434
    %2827 = vmatpush1.msra.mxu0 %v1433
    %2828 = vmatprep.subr.mxu0 %v1438
    %2829 = vmatpush1.msra.mxu0 %v1437
    %2830 = vmatprep.subr.mxu0 %v1442
    %2831 = vmatpush1.msra.mxu0 %v1441
    %2832 = vmatprep.subr.mxu0 %v1446
    %2833 = vmatpush1.msra.mxu0 %v1445
    %2834 = vmatprep.subr.mxu0 %v1450
    %2835 = vmatpush1.msra.mxu0 %v1449
    %2836 = vmatprep.subr.mxu0 %v1454
    %2837 = vmatpush1.msra.mxu0 %v1453
    %2838 = vmatprep.subr.mxu0 %v1458
    %2839 = vmatpush1.msra.mxu0 %v1457
    %2840 = vmatprep.subr.mxu0 %v1462
    %2841 = vmatpush1.msra.mxu0 %v1461
    %2842 = vmatprep.subr.mxu0 %v1466
    %2843 = vmatpush1.msra.mxu0 %v1465
    %2844 = vmatprep.subr.mxu0 %v1470
    %2845 = vmatpush1.msra.mxu0 %v1469
    %2846 = vmatprep.subr.mxu0 %v1474
    %2847 = vmatpush1.msra.mxu0 %v1473
    %2848 = vmatprep.subr.mxu0 %v1478
    %2849 = vmatpush1.msra.mxu0 %v1477
    %2850 = vmatprep.subr.mxu0 %v1482
    %2851 = vmatpush1.msra.mxu0 %v1481
    %2852 = vmatprep.subr.mxu0 %v1486
    %2853 = vmatpush1.msra.mxu0 %v1485
    %2854 = vmatprep.subr.mxu0 %v1490
    %2855 = vmatpush1.msra.mxu0 %v1489
    %2856 = vmatprep.subr.mxu0 %v1494
    %2857 = vmatpush1.msra.mxu0 %v1493
    %2858 = vmatprep.subr.mxu0 %v1498
    %2859 = vmatpush1.msra.mxu0 %v1497
    %2860 = vmatprep.subr.mxu0 %v1502
    %2861 = vmatpush1.msra.mxu0 %v1501
    %2862 = vmatprep.subr.mxu0 %v1506
    %2863 = vmatpush1.msra.mxu0 %v1505
    %2864 = vmatprep.subr.mxu0 %v1510
    %2865 = vmatpush1.msra.mxu0 %v1509
    %2866 = vmatprep.subr.mxu0 %v1514
    %2867 = vmatpush1.msra.mxu0 %v1513
    %2868 = vmatprep.subr.mxu0 %v1518
    %2869 = vmatpush1.msra.mxu0 %v1517
    %2870 = vmatprep.mubr.f32.mxu0 %v2560
    %2871 = vmatmul.mubr.f32.gmra.mrb[0].mxu0 %v2734
    %v2872 = vpop.f32.mrb[0].mxu0
    %v2873 = vadd.f32 %v1532, %v2872
    %v2874 = vpop.f32.mrb[0].mxu0
    %v2875 = vadd.f32 %v1536, %v2874
    %2876 = vdwg.mxu0
    %v2877 = vxor.u32 %v2802, 2147483648
    %v2878 = vxor.u32 %v2804, 2147483648
    %v2879 = vxor.u32 %v2873, 2147483648
    %v2880 = vmul.f32 %v2877, 1.442695
    %v2881 = vpow.pop %v2880
    %v2882 = vmul.f32 %v2878, 1.442695
    %v2883 = vpow.pop %v2882
    %v2884 = vmul.f32 %v2879, 1.442695
    %v2885 = vpow.pop %v2884
    %v2886 = vadd.f32 %v2881, 1.0
    %v2887 = vadd.f32 %v2883, 1.0
    %v2888 = vadd.f32 %v2885, 1.0
    %v2889 = vrcp.pop %v2886
    %v2890 = vmul.f32 1.0, %v2889
    %v2891 = vrcp.pop %v2887
    %v2892 = vmul.f32 1.0, %v2891
    %v2893 = vrcp.pop %v2888
    %v2894 = vmul.f32 1.0, %v2893
    %v2895 = vtanh.pop %v2875
    %v2896 = vmul.f32 %v2892, %v2558
    %v2897 = vmul.f32 %v2890, %v2895
    %v2898 = vadd.f32 %v2896, %v2897
    %v2899 = vtanh.pop %v2898
    %v2900 = vmul.f32 %v2894, %v2899
    %v2901 = vld [vmem:[%s866] sm:$0xff]
    %v2902 = vld [vmem:[%s866 + $0x8] sm:$0xff]
    %v2903 = vld [vmem:[%s866 + $0x10] sm:$0xff]
    %v2904 = vld [vmem:[%s866 + $0x18] sm:$0xff]
    %2905 = vmatprep.subr.mxu0 %v1328
    %2906 = vmatpush1.msra.mxu0 %v1327
    %2907 = vmatprep.subr.mxu0 %v1332
    %2908 = vmatpush1.msra.mxu0 %v1331
    %2909 = vmatprep.subr.mxu0 %v1336
    %2910 = vmatpush1.msra.mxu0 %v1335
    %2911 = vmatprep.subr.mxu0 %v1340
    %2912 = vmatpush1.msra.mxu0 %v1339
    %2913 = vmatprep.subr.mxu0 %v1344
    %2914 = vmatpush1.msra.mxu0 %v1343
    %2915 = vmatprep.subr.mxu0 %v1348
    %2916 = vmatpush1.msra.mxu0 %v1347
    %2917 = vmatprep.subr.mxu0 %v1352
    %2918 = vmatpush1.msra.mxu0 %v1351
    %2919 = vmatprep.subr.mxu0 %v1356
    %2920 = vmatpush1.msra.mxu0 %v1355
    %2921 = vmatprep.subr.mxu0 %v1360
    %2922 = vmatpush1.msra.mxu0 %v1359
    %2923 = vmatprep.subr.mxu0 %v1364
    %2924 = vmatpush1.msra.mxu0 %v1363
    %2925 = vmatprep.subr.mxu0 %v1368
    %2926 = vmatpush1.msra.mxu0 %v1367
    %2927 = vmatprep.subr.mxu0 %v1372
    %2928 = vmatpush1.msra.mxu0 %v1371
    %2929 = vmatprep.subr.mxu0 %v1376
    %2930 = vmatpush1.msra.mxu0 %v1375
    %2931 = vmatprep.subr.mxu0 %v1380
    %2932 = vmatpush1.msra.mxu0 %v1379
    %2933 = vmatprep.subr.mxu0 %v1384
    %2934 = vmatpush1.msra.mxu0 %v1383
    %2935 = vmatprep.subr.mxu0 %v1388
    %2936 = vmatpush1.msra.mxu0 %v1387
    %2937 = vmatprep.subr.mxu0 0.0
    %2938 = vmatpush1.msra.mxu0 0.0
    %2939 = vmatprep.subr.mxu0 0.0
    %2940 = vmatpush1.msra.mxu0 0.0
    %2941 = vmatprep.subr.mxu0 0.0
    %2942 = vmatpush1.msra.mxu0 0.0
    %2943 = vmatprep.subr.mxu0 0.0
    %2944 = vmatpush1.msra.mxu0 0.0
    %2945 = vmatprep.subr.mxu0 0.0
    %2946 = vmatpush1.msra.mxu0 0.0
    %2947 = vmatprep.subr.mxu0 0.0
    %2948 = vmatpush1.msra.mxu0 0.0
    %2949 = vmatprep.subr.mxu0 0.0
    %2950 = vmatpush1.msra.mxu0 0.0
    %2951 = vmatprep.subr.mxu0 0.0
    %2952 = vmatpush1.msra.mxu0 0.0
    %2953 = vmatprep.subr.mxu0 0.0
    %2954 = vmatpush1.msra.mxu0 0.0
    %2955 = vmatprep.subr.mxu0 0.0
    %2956 = vmatpush1.msra.mxu0 0.0
    %2957 = vmatprep.subr.mxu0 0.0
    %2958 = vmatpush1.msra.mxu0 0.0
    %2959 = vmatprep.subr.mxu0 0.0
    %2960 = vmatpush1.msra.mxu0 0.0
    %2961 = vmatprep.subr.mxu0 0.0
    %2962 = vmatpush1.msra.mxu0 0.0
    %2963 = vmatprep.subr.mxu0 0.0
    %2964 = vmatpush1.msra.mxu0 0.0
    %2965 = vmatprep.subr.mxu0 0.0
    %2966 = vmatpush1.msra.mxu0 0.0
    %2967 = vmatprep.subr.mxu0 0.0
    %2968 = vmatpush1.msra.mxu0 0.0
    %2969 = vmatprep.mubr.f32.mxu0 0.0
    %2970 = vmatmul.mubr.f32.gmra.mrb[0].mxu0 %v2734
    %v2971 = vpop.f32.mrb[0].mxu0
    %v2972 = vadd.f32 0.0, %v2971
    %v2973 = vpop.f32.mrb[0].mxu0
    %v2974 = vadd.f32 0.0, %v2973
    %2975 = vdwg.mxu0
    %2976 = vmatprep.subr.mxu0 %v1330
    %2977 = vmatpush1.msra.mxu0 %v1329
    %2978 = vmatprep.subr.mxu0 %v1334
    %2979 = vmatpush1.msra.mxu0 %v1333
    %2980 = vmatprep.subr.mxu0 %v1338
    %2981 = vmatpush1.msra.mxu0 %v1337
    %2982 = vmatprep.subr.mxu0 %v1342
    %2983 = vmatpush1.msra.mxu0 %v1341
    %2984 = vmatprep.subr.mxu0 %v1346
    %2985 = vmatpush1.msra.mxu0 %v1345
    %2986 = vmatprep.subr.mxu0 %v1350
    %2987 = vmatpush1.msra.mxu0 %v1349
    %2988 = vmatprep.subr.mxu0 %v1354
    %2989 = vmatpush1.msra.mxu0 %v1353
    %2990 = vmatprep.subr.mxu0 %v1358
    %2991 = vmatpush1.msra.mxu0 %v1357
    %2992 = vmatprep.subr.mxu0 %v1362
    %2993 = vmatpush1.msra.mxu0 %v1361
    %2994 = vmatprep.subr.mxu0 %v1366
    %2995 = vmatpush1.msra.mxu0 %v1365
    %2996 = vmatprep.subr.mxu0 %v1370
    %2997 = vmatpush1.msra.mxu0 %v1369
    %2998 = vmatprep.subr.mxu0 %v1374
    %2999 = vmatpush1.msra.mxu0 %v1373
    %3000 = vmatprep.subr.mxu0 %v1378
    %3001 = vmatpush1.msra.mxu0 %v1377
    %3002 = vmatprep.subr.mxu0 %v1382
    %3003 = vmatpush1.msra.mxu0 %v1381
    %3004 = vmatprep.subr.mxu0 %v1386
    %3005 = vmatpush1.msra.mxu0 %v1385
    %3006 = vmatprep.subr.mxu0 %v1390
    %3007 = vmatpush1.msra.mxu0 %v1389
    %3008 = vmatprep.subr.mxu0 0.0
    %3009 = vmatpush1.msra.mxu0 0.0
    %3010 = vmatprep.subr.mxu0 0.0
    %3011 = vmatpush1.msra.mxu0 0.0
    %3012 = vmatprep.subr.mxu0 0.0
    %3013 = vmatpush1.msra.mxu0 0.0
    %3014 = vmatprep.subr.mxu0 0.0
    %3015 = vmatpush1.msra.mxu0 0.0
    %3016 = vmatprep.subr.mxu0 0.0
    %3017 = vmatpush1.msra.mxu0 0.0
    %3018 = vmatprep.subr.mxu0 0.0
    %3019 = vmatpush1.msra.mxu0 0.0
    %3020 = vmatprep.subr.mxu0 0.0
    %3021 = vmatpush1.msra.mxu0 0.0
    %3022 = vmatprep.subr.mxu0 0.0
    %3023 = vmatpush1.msra.mxu0 0.0
    %3024 = vmatprep.subr.mxu0 0.0
    %3025 = vmatpush1.msra.mxu0 0.0
    %3026 = vmatprep.subr.mxu0 0.0
    %3027 = vmatpush1.msra.mxu0 0.0
    %3028 = vmatprep.subr.mxu0 0.0
    %3029 = vmatpush1.msra.mxu0 0.0
    %3030 = vmatprep.subr.mxu0 0.0
    %3031 = vmatpush1.msra.mxu0 0.0
    %3032 = vmatprep.subr.mxu0 0.0
    %3033 = vmatpush1.msra.mxu0 0.0
    %3034 = vmatprep.subr.mxu0 0.0
    %3035 = vmatpush1.msra.mxu0 0.0
    %3036 = vmatprep.subr.mxu0 0.0
    %3037 = vmatpush1.msra.mxu0 0.0
    %3038 = vmatprep.subr.mxu0 0.0
    %3039 = vmatpush1.msra.mxu0 0.0
    %3040 = vmatprep.mubr.f32.mxu0 0.0
    %3041 = vmatmul.mubr.f32.gmra.mrb[0].mxu0 %v2734
    %v3042 = vpop.f32.mrb[0].mxu0
    %v3043 = vadd.f32 0.0, %v3042
    %v3044 = vpop.f32.mrb[0].mxu0
    %v3045 = vadd.f32 0.0, %v3044
    %3046 = vdwg.mxu0
    %v3047 = vadd.f32 %v2901, %v2972
    %v3048 = vadd.f32 %v2902, %v2974
    %v3049 = vadd.f32 %v2903, %v3043
    %v3050 = vadd.f32 %v2904, %v3045
    %v3051 = vxor.u32 %v3047, 2147483648
    %v3052 = vxor.u32 %v3048, 2147483648
    %v3053 = vxor.u32 %v3049, 2147483648
    %v3054 = vmul.f32 %v3051, 1.442695
    %v3055 = vpow.pop %v3054
    %v3056 = vmul.f32 %v3052, 1.442695
    %v3057 = vpow.pop %v3056
    %v3058 = vmul.f32 %v3053, 1.442695
    %v3059 = vpow.pop %v3058
    %v3060 = vadd.f32 %v3055, 1.0
    %v3061 = vadd.f32 %v3057, 1.0
    %v3062 = vadd.f32 %v3059, 1.0
    %v3063 = vrcp.pop %v3060
    %v3064 = vmul.f32 1.0, %v3063
    %v3065 = vrcp.pop %v3061
    %v3066 = vmul.f32 1.0, %v3065
    %v3067 = vrcp.pop %v3062
    %v3068 = vmul.f32 1.0, %v3067
    %v3069 = vtanh.pop %v3050
    %v3070 = vmul.f32 %v3066, %v2732
    %v3071 = vmul.f32 %v3064, %v3069
    %v3072 = vadd.f32 %v3070, %v3071
    %v3073 = vtanh.pop %v3072
    %v3074 = vmul.f32 %v3068, %v3073
    %3075 = vmatprep.subr.mxu0 %v1392
    %3076 = vmatpush1.msra.mxu0 %v1391
    %3077 = vmatprep.subr.mxu0 %v1396
    %3078 = vmatpush1.msra.mxu0 %v1395
    %3079 = vmatprep.subr.mxu0 %v1400
    %3080 = vmatpush1.msra.mxu0 %v1399
    %3081 = vmatprep.subr.mxu0 %v1404
    %3082 = vmatpush1.msra.mxu0 %v1403
    %3083 = vmatprep.subr.mxu0 %v1408
    %3084 = vmatpush1.msra.mxu0 %v1407
    %3085 = vmatprep.subr.mxu0 %v1412
    %3086 = vmatpush1.msra.mxu0 %v1411
    %3087 = vmatprep.subr.mxu0 %v1416
    %3088 = vmatpush1.msra.mxu0 %v1415
    %3089 = vmatprep.subr.mxu0 %v1420
    %3090 = vmatpush1.msra.mxu0 %v1419
    %3091 = vmatprep.subr.mxu0 %v1424
    %3092 = vmatpush1.msra.mxu0 %v1423
    %3093 = vmatprep.subr.mxu0 %v1428
    %3094 = vmatpush1.msra.mxu0 %v1427
    %3095 = vmatprep.subr.mxu0 %v1432
    %3096 = vmatpush1.msra.mxu0 %v1431
    %3097 = vmatprep.subr.mxu0 %v1436
    %3098 = vmatpush1.msra.mxu0 %v1435
    %3099 = vmatprep.subr.mxu0 %v1440
    %3100 = vmatpush1.msra.mxu0 %v1439
    %3101 = vmatprep.subr.mxu0 %v1444
    %3102 = vmatpush1.msra.mxu0 %v1443
    %3103 = vmatprep.subr.mxu0 %v1448
    %3104 = vmatpush1.msra.mxu0 %v1447
    %3105 = vmatprep.subr.mxu0 %v1452
    %3106 = vmatpush1.msra.mxu0 %v1451
    %3107 = vmatprep.subr.mxu0 %v1456
    %3108 = vmatpush1.msra.mxu0 %v1455
    %3109 = vmatprep.subr.mxu0 %v1460
    %3110 = vmatpush1.msra.mxu0 %v1459
    %3111 = vmatprep.subr.mxu0 %v1464
    %3112 = vmatpush1.msra.mxu0 %v1463
    %3113 = vmatprep.subr.mxu0 %v1468
    %3114 = vmatpush1.msra.mxu0 %v1467
    %3115 = vmatprep.subr.mxu0 %v1472
    %3116 = vmatpush1.msra.mxu0 %v1471
    %3117 = vmatprep.subr.mxu0 %v1476
    %3118 = vmatpush1.msra.mxu0 %v1475
    %3119 = vmatprep.subr.mxu0 %v1480
    %3120 = vmatpush1.msra.mxu0 %v1479
    %3121 = vmatprep.subr.mxu0 %v1484
    %3122 = vmatpush1.msra.mxu0 %v1483
    %3123 = vmatprep.subr.mxu0 %v1488
    %3124 = vmatpush1.msra.mxu0 %v1487
    %3125 = vmatprep.subr.mxu0 %v1492
    %3126 = vmatpush1.msra.mxu0 %v1491
    %3127 = vmatprep.subr.mxu0 %v1496
    %3128 = vmatpush1.msra.mxu0 %v1495
    %3129 = vmatprep.subr.mxu0 %v1500
    %3130 = vmatpush1.msra.mxu0 %v1499
    %3131 = vmatprep.subr.mxu0 %v1504
    %3132 = vmatpush1.msra.mxu0 %v1503
    %3133 = vmatprep.subr.mxu0 %v1508
    %3134 = vmatpush1.msra.mxu0 %v1507
    %3135 = vmatprep.subr.mxu0 %v1512
    %3136 = vmatpush1.msra.mxu0 %v1511
    %3137 = vmatprep.subr.mxu0 %v1516
    %3138 = vmatpush1.msra.mxu0 %v1515
    %3139 = vmatprep.mubr.f32.mxu0 %v2900
    %3140 = vmatmul.mubr.f32.gmra.mrb[0].mxu0 %v3074
    %v3141 = vpop.f32.mrb[0].mxu0
    %v3142 = vadd.f32 %v1524, %v3141
    %v3143 = vpop.f32.mrb[0].mxu0
    %v3144 = vadd.f32 %v1528, %v3143
    %3145 = vdwg.mxu0
    %3146 = vmatprep.subr.mxu0 %v1394
    %3147 = vmatpush1.msra.mxu0 %v1393
    %3148 = vmatprep.subr.mxu0 %v1398
    %3149 = vmatpush1.msra.mxu0 %v1397
    %3150 = vmatprep.subr.mxu0 %v1402
    %3151 = vmatpush1.msra.mxu0 %v1401
    %3152 = vmatprep.subr.mxu0 %v1406
    %3153 = vmatpush1.msra.mxu0 %v1405
    %3154 = vmatprep.subr.mxu0 %v1410
    %3155 = vmatpush1.msra.mxu0 %v1409
    %3156 = vmatprep.subr.mxu0 %v1414
    %3157 = vmatpush1.msra.mxu0 %v1413
    %3158 = vmatprep.subr.mxu0 %v1418
    %3159 = vmatpush1.msra.mxu0 %v1417
    %3160 = vmatprep.subr.mxu0 %v1422
    %3161 = vmatpush1.msra.mxu0 %v1421
    %3162 = vmatprep.subr.mxu0 %v1426
    %3163 = vmatpush1.msra.mxu0 %v1425
    %3164 = vmatprep.subr.mxu0 %v1430
    %3165 = vmatpush1.msra.mxu0 %v1429
    %3166 = vmatprep.subr.mxu0 %v1434
    %3167 = vmatpush1.msra.mxu0 %v1433
    %3168 = vmatprep.subr.mxu0 %v1438
    %3169 = vmatpush1.msra.mxu0 %v1437
    %3170 = vmatprep.subr.mxu0 %v1442
    %3171 = vmatpush1.msra.mxu0 %v1441
    %3172 = vmatprep.subr.mxu0 %v1446
    %3173 = vmatpush1.msra.mxu0 %v1445
    %3174 = vmatprep.subr.mxu0 %v1450
    %3175 = vmatpush1.msra.mxu0 %v1449
    %3176 = vmatprep.subr.mxu0 %v1454
    %3177 = vmatpush1.msra.mxu0 %v1453
    %3178 = vmatprep.subr.mxu0 %v1458
    %3179 = vmatpush1.msra.mxu0 %v1457
    %3180 = vmatprep.subr.mxu0 %v1462
    %3181 = vmatpush1.msra.mxu0 %v1461
    %3182 = vmatprep.subr.mxu0 %v1466
    %3183 = vmatpush1.msra.mxu0 %v1465
    %3184 = vmatprep.subr.mxu0 %v1470
    %3185 = vmatpush1.msra.mxu0 %v1469
    %3186 = vmatprep.subr.mxu0 %v1474
    %3187 = vmatpush1.msra.mxu0 %v1473
    %3188 = vmatprep.subr.mxu0 %v1478
    %3189 = vmatpush1.msra.mxu0 %v1477
    %3190 = vmatprep.subr.mxu0 %v1482
    %3191 = vmatpush1.msra.mxu0 %v1481
    %3192 = vmatprep.subr.mxu0 %v1486
    %3193 = vmatpush1.msra.mxu0 %v1485
    %3194 = vmatprep.subr.mxu0 %v1490
    %3195 = vmatpush1.msra.mxu0 %v1489
    %3196 = vmatprep.subr.mxu0 %v1494
    %3197 = vmatpush1.msra.mxu0 %v1493
    %3198 = vmatprep.subr.mxu0 %v1498
    %3199 = vmatpush1.msra.mxu0 %v1497
    %3200 = vmatprep.subr.mxu0 %v1502
    %3201 = vmatpush1.msra.mxu0 %v1501
    %3202 = vmatprep.subr.mxu0 %v1506
    %3203 = vmatpush1.msra.mxu0 %v1505
    %3204 = vmatprep.subr.mxu0 %v1510
    %3205 = vmatpush1.msra.mxu0 %v1509
    %3206 = vmatprep.subr.mxu0 %v1514
    %3207 = vmatpush1.msra.mxu0 %v1513
    %3208 = vmatprep.subr.mxu0 %v1518
    %3209 = vmatpush1.msra.mxu0 %v1517
    %3210 = vmatprep.mubr.f32.mxu0 %v2900
    %3211 = vmatmul.mubr.f32.gmra.mrb[0].mxu0 %v3074
    %v3212 = vpop.f32.mrb[0].mxu0
    %v3213 = vadd.f32 %v1532, %v3212
    %v3214 = vpop.f32.mrb[0].mxu0
    %v3215 = vadd.f32 %v1536, %v3214
    %3216 = vdwg.mxu0
    %v3217 = vxor.u32 %v3142, 2147483648
    %v3218 = vxor.u32 %v3144, 2147483648
    %v3219 = vxor.u32 %v3213, 2147483648
    %v3220 = vmul.f32 %v3217, 1.442695
    %v3221 = vpow.pop %v3220
    %v3222 = vmul.f32 %v3218, 1.442695
    %v3223 = vpow.pop %v3222
    %v3224 = vmul.f32 %v3219, 1.442695
    %v3225 = vpow.pop %v3224
    %v3226 = vadd.f32 %v3221, 1.0
    %v3227 = vadd.f32 %v3223, 1.0
    %v3228 = vadd.f32 %v3225, 1.0
    %v3229 = vrcp.pop %v3226
    %v3230 = vmul.f32 1.0, %v3229
    %v3231 = vrcp.pop %v3227
    %v3232 = vmul.f32 1.0, %v3231
    %v3233 = vrcp.pop %v3228
    %v3234 = vmul.f32 1.0, %v3233
    %v3235 = vtanh.pop %v3215
    %v3236 = vmul.f32 %v3232, %v2898
    %v3237 = vmul.f32 %v3230, %v3235
    %v3238 = vadd.f32 %v3236, %v3237
    %v3239 = vtanh.pop %v3238
    %v3240 = vmul.f32 %v3234, %v3239
    %v3241 = vld [vmem:[%s1018] sm:$0xff]
    %v3242 = vld [vmem:[%s1018 + $0x8] sm:$0xff]
    %v3243 = vld [vmem:[%s1018 + $0x10] sm:$0xff]
    %v3244 = vld [vmem:[%s1018 + $0x18] sm:$0xff]
    %3245 = vmatprep.subr.mxu0 %v1328
    %3246 = vmatpush1.msra.mxu0 %v1327
    %3247 = vmatprep.subr.mxu0 %v1332
    %3248 = vmatpush1.msra.mxu0 %v1331
    %3249 = vmatprep.subr.mxu0 %v1336
    %3250 = vmatpush1.msra.mxu0 %v1335
    %3251 = vmatprep.subr.mxu0 %v1340
    %3252 = vmatpush1.msra.mxu0 %v1339
    %3253 = vmatprep.subr.mxu0 %v1344
    %3254 = vmatpush1.msra.mxu0 %v1343
    %3255 = vmatprep.subr.mxu0 %v1348
    %3256 = vmatpush1.msra.mxu0 %v1347
    %3257 = vmatprep.subr.mxu0 %v1352
    %3258 = vmatpush1.msra.mxu0 %v1351
    %3259 = vmatprep.subr.mxu0 %v1356
    %3260 = vmatpush1.msra.mxu0 %v1355
    %3261 = vmatprep.subr.mxu0 %v1360
    %3262 = vmatpush1.msra.mxu0 %v1359
    %3263 = vmatprep.subr.mxu0 %v1364
    %3264 = vmatpush1.msra.mxu0 %v1363
    %3265 = vmatprep.subr.mxu0 %v1368
    %3266 = vmatpush1.msra.mxu0 %v1367
    %3267 = vmatprep.subr.mxu0 %v1372
    %3268 = vmatpush1.msra.mxu0 %v1371
    %3269 = vmatprep.subr.mxu0 %v1376
    %3270 = vmatpush1.msra.mxu0 %v1375
    %3271 = vmatprep.subr.mxu0 %v1380
    %3272 = vmatpush1.msra.mxu0 %v1379
    %3273 = vmatprep.subr.mxu0 %v1384
    %3274 = vmatpush1.msra.mxu0 %v1383
    %3275 = vmatprep.subr.mxu0 %v1388
    %3276 = vmatpush1.msra.mxu0 %v1387
    %3277 = vmatprep.subr.mxu0 0.0
    %3278 = vmatpush1.msra.mxu0 0.0
    %3279 = vmatprep.subr.mxu0 0.0
    %3280 = vmatpush1.msra.mxu0 0.0
    %3281 = vmatprep.subr.mxu0 0.0
    %3282 = vmatpush1.msra.mxu0 0.0
    %3283 = vmatprep.subr.mxu0 0.0
    %3284 = vmatpush1.msra.mxu0 0.0
    %3285 = vmatprep.subr.mxu0 0.0
    %3286 = vmatpush1.msra.mxu0 0.0
    %3287 = vmatprep.subr.mxu0 0.0
    %3288 = vmatpush1.msra.mxu0 0.0
    %3289 = vmatprep.subr.mxu0 0.0
    %3290 = vmatpush1.msra.mxu0 0.0
    %3291 = vmatprep.subr.mxu0 0.0
    %3292 = vmatpush1.msra.mxu0 0.0
    %3293 = vmatprep.subr.mxu0 0.0
    %3294 = vmatpush1.msra.mxu0 0.0
    %3295 = vmatprep.subr.mxu0 0.0
    %3296 = vmatpush1.msra.mxu0 0.0
    %3297 = vmatprep.subr.mxu0 0.0
    %3298 = vmatpush1.msra.mxu0 0.0
    %3299 = vmatprep.subr.mxu0 0.0
    %3300 = vmatpush1.msra.mxu0 0.0
    %3301 = vmatprep.subr.mxu0 0.0
    %3302 = vmatpush1.msra.mxu0 0.0
    %3303 = vmatprep.subr.mxu0 0.0
    %3304 = vmatpush1.msra.mxu0 0.0
    %3305 = vmatprep.subr.mxu0 0.0
    %3306 = vmatpush1.msra.mxu0 0.0
    %3307 = vmatprep.subr.mxu0 0.0
    %3308 = vmatpush1.msra.mxu0 0.0
    %3309 = vmatprep.mubr.f32.mxu0 0.0
    %3310 = vmatmul.mubr.f32.gmra.mrb[0].mxu0 %v3074
    %v3311 = vpop.f32.mrb[0].mxu0
    %v3312 = vadd.f32 0.0, %v3311
    %v3313 = vpop.f32.mrb[0].mxu0
    %v3314 = vadd.f32 0.0, %v3313
    %3315 = vdwg.mxu0
    %3316 = vmatprep.subr.mxu0 %v1330
    %3317 = vmatpush1.msra.mxu0 %v1329
    %3318 = vmatprep.subr.mxu0 %v1334
    %3319 = vmatpush1.msra.mxu0 %v1333
    %3320 = vmatprep.subr.mxu0 %v1338
    %3321 = vmatpush1.msra.mxu0 %v1337
    %3322 = vmatprep.subr.mxu0 %v1342
    %3323 = vmatpush1.msra.mxu0 %v1341
    %3324 = vmatprep.subr.mxu0 %v1346
    %3325 = vmatpush1.msra.mxu0 %v1345
    %3326 = vmatprep.subr.mxu0 %v1350
    %3327 = vmatpush1.msra.mxu0 %v1349
    %3328 = vmatprep.subr.mxu0 %v1354
    %3329 = vmatpush1.msra.mxu0 %v1353
    %3330 = vmatprep.subr.mxu0 %v1358
    %3331 = vmatpush1.msra.mxu0 %v1357
    %3332 = vmatprep.subr.mxu0 %v1362
    %3333 = vmatpush1.msra.mxu0 %v1361
    %3334 = vmatprep.subr.mxu0 %v1366
    %3335 = vmatpush1.msra.mxu0 %v1365
    %3336 = vmatprep.subr.mxu0 %v1370
    %3337 = vmatpush1.msra.mxu0 %v1369
    %3338 = vmatprep.subr.mxu0 %v1374
    %3339 = vmatpush1.msra.mxu0 %v1373
    %3340 = vmatprep.subr.mxu0 %v1378
    %3341 = vmatpush1.msra.mxu0 %v1377
    %3342 = vmatprep.subr.mxu0 %v1382
    %3343 = vmatpush1.msra.mxu0 %v1381
    %3344 = vmatprep.subr.mxu0 %v1386
    %3345 = vmatpush1.msra.mxu0 %v1385
    %3346 = vmatprep.subr.mxu0 %v1390
    %3347 = vmatpush1.msra.mxu0 %v1389
    %3348 = vmatprep.subr.mxu0 0.0
    %3349 = vmatpush1.msra.mxu0 0.0
    %3350 = vmatprep.subr.mxu0 0.0
    %3351 = vmatpush1.msra.mxu0 0.0
    %3352 = vmatprep.subr.mxu0 0.0
    %3353 = vmatpush1.msra.mxu0 0.0
    %3354 = vmatprep.subr.mxu0 0.0
    %3355 = vmatpush1.msra.mxu0 0.0
    %3356 = vmatprep.subr.mxu0 0.0
    %3357 = vmatpush1.msra.mxu0 0.0
    %3358 = vmatprep.subr.mxu0 0.0
    %3359 = vmatpush1.msra.mxu0 0.0
    %3360 = vmatprep.subr.mxu0 0.0
    %3361 = vmatpush1.msra.mxu0 0.0
    %3362 = vmatprep.subr.mxu0 0.0
    %3363 = vmatpush1.msra.mxu0 0.0
    %3364 = vmatprep.subr.mxu0 0.0
    %3365 = vmatpush1.msra.mxu0 0.0
    %3366 = vmatprep.subr.mxu0 0.0
    %3367 = vmatpush1.msra.mxu0 0.0
    %3368 = vmatprep.subr.mxu0 0.0
    %3369 = vmatpush1.msra.mxu0 0.0
    %3370 = vmatprep.subr.mxu0 0.0
    %3371 = vmatpush1.msra.mxu0 0.0
    %3372 = vmatprep.subr.mxu0 0.0
    %3373 = vmatpush1.msra.mxu0 0.0
    %3374 = vmatprep.subr.mxu0 0.0
    %3375 = vmatpush1.msra.mxu0 0.0
    %3376 = vmatprep.subr.mxu0 0.0
    %3377 = vmatpush1.msra.mxu0 0.0
    %3378 = vmatprep.subr.mxu0 0.0
    %3379 = vmatpush1.msra.mxu0 0.0
    %3380 = vmatprep.mubr.f32.mxu0 0.0
    %3381 = vmatmul.mubr.f32.gmra.mrb[0].mxu0 %v3074
    %v3382 = vpop.f32.mrb[0].mxu0
    %v3383 = vadd.f32 0.0, %v3382
    %v3384 = vpop.f32.mrb[0].mxu0
    %v3385 = vadd.f32 0.0, %v3384
    %3386 = vdwg.mxu0
    %v3387 = vadd.f32 %v3241, %v3312
    %v3388 = vadd.f32 %v3242, %v3314
    %v3389 = vadd.f32 %v3243, %v3383
    %v3390 = vadd.f32 %v3244, %v3385
    %v3391 = vxor.u32 %v3387, 2147483648
    %v3392 = vxor.u32 %v3388, 2147483648
    %v3393 = vxor.u32 %v3389, 2147483648
    %v3394 = vmul.f32 %v3391, 1.442695
    %v3395 = vpow.pop %v3394
    %v3396 = vmul.f32 %v3392, 1.442695
    %v3397 = vpow.pop %v3396
    %v3398 = vmul.f32 %v3393, 1.442695
    %v3399 = vpow.pop %v3398
    %v3400 = vadd.f32 %v3395, 1.0
    %v3401 = vadd.f32 %v3397, 1.0
    %v3402 = vadd.f32 %v3399, 1.0
    %v3403 = vrcp.pop %v3400
    %v3404 = vmul.f32 1.0, %v3403
    %v3405 = vrcp.pop %v3401
    %v3406 = vmul.f32 1.0, %v3405
    %v3407 = vrcp.pop %v3402
    %v3408 = vmul.f32 1.0, %v3407
    %v3409 = vtanh.pop %v3390
    %v3410 = vmul.f32 %v3406, %v3072
    %v3411 = vmul.f32 %v3404, %v3409
    %v3412 = vadd.f32 %v3410, %v3411
    %v3413 = vtanh.pop %v3412
    %v3414 = vmul.f32 %v3408, %v3413
    %3415 = vmatprep.subr.mxu0 %v1392
    %3416 = vmatpush1.msra.mxu0 %v1391
    %3417 = vmatprep.subr.mxu0 %v1396
    %3418 = vmatpush1.msra.mxu0 %v1395
    %3419 = vmatprep.subr.mxu0 %v1400
    %3420 = vmatpush1.msra.mxu0 %v1399
    %3421 = vmatprep.subr.mxu0 %v1404
    %3422 = vmatpush1.msra.mxu0 %v1403
    %3423 = vmatprep.subr.mxu0 %v1408
    %3424 = vmatpush1.msra.mxu0 %v1407
    %3425 = vmatprep.subr.mxu0 %v1412
    %3426 = vmatpush1.msra.mxu0 %v1411
    %3427 = vmatprep.subr.mxu0 %v1416
    %3428 = vmatpush1.msra.mxu0 %v1415
    %3429 = vmatprep.subr.mxu0 %v1420
    %3430 = vmatpush1.msra.mxu0 %v1419
    %3431 = vmatprep.subr.mxu0 %v1424
    %3432 = vmatpush1.msra.mxu0 %v1423
    %3433 = vmatprep.subr.mxu0 %v1428
    %3434 = vmatpush1.msra.mxu0 %v1427
    %3435 = vmatprep.subr.mxu0 %v1432
    %3436 = vmatpush1.msra.mxu0 %v1431
    %3437 = vmatprep.subr.mxu0 %v1436
    %3438 = vmatpush1.msra.mxu0 %v1435
    %3439 = vmatprep.subr.mxu0 %v1440
    %3440 = vmatpush1.msra.mxu0 %v1439
    %3441 = vmatprep.subr.mxu0 %v1444
    %3442 = vmatpush1.msra.mxu0 %v1443
    %3443 = vmatprep.subr.mxu0 %v1448
    %3444 = vmatpush1.msra.mxu0 %v1447
    %3445 = vmatprep.subr.mxu0 %v1452
    %3446 = vmatpush1.msra.mxu0 %v1451
    %3447 = vmatprep.subr.mxu0 %v1456
    %3448 = vmatpush1.msra.mxu0 %v1455
    %3449 = vmatprep.subr.mxu0 %v1460
    %3450 = vmatpush1.msra.mxu0 %v1459
    %3451 = vmatprep.subr.mxu0 %v1464
    %3452 = vmatpush1.msra.mxu0 %v1463
    %3453 = vmatprep.subr.mxu0 %v1468
    %3454 = vmatpush1.msra.mxu0 %v1467
    %3455 = vmatprep.subr.mxu0 %v1472
    %3456 = vmatpush1.msra.mxu0 %v1471
    %3457 = vmatprep.subr.mxu0 %v1476
    %3458 = vmatpush1.msra.mxu0 %v1475
    %3459 = vmatprep.subr.mxu0 %v1480
    %3460 = vmatpush1.msra.mxu0 %v1479
    %3461 = vmatprep.subr.mxu0 %v1484
    %3462 = vmatpush1.msra.mxu0 %v1483
    %3463 = vmatprep.subr.mxu0 %v1488
    %3464 = vmatpush1.msra.mxu0 %v1487
    %3465 = vmatprep.subr.mxu0 %v1492
    %3466 = vmatpush1.msra.mxu0 %v1491
    %3467 = vmatprep.subr.mxu0 %v1496
    %3468 = vmatpush1.msra.mxu0 %v1495
    %3469 = vmatprep.subr.mxu0 %v1500
    %3470 = vmatpush1.msra.mxu0 %v1499
    %3471 = vmatprep.subr.mxu0 %v1504
    %3472 = vmatpush1.msra.mxu0 %v1503
    %3473 = vmatprep.subr.mxu0 %v1508
    %3474 = vmatpush1.msra.mxu0 %v1507
    %3475 = vmatprep.subr.mxu0 %v1512
    %3476 = vmatpush1.msra.mxu0 %v1511
    %3477 = vmatprep.subr.mxu0 %v1516
    %3478 = vmatpush1.msra.mxu0 %v1515
    %3479 = vmatprep.mubr.f32.mxu0 %v3240
    %3480 = vmatmul.mubr.f32.gmra.mrb[0].mxu0 %v3414
    %v3481 = vpop.f32.mrb[0].mxu0
    %v3482 = vadd.f32 %v1524, %v3481
    %v3483 = vpop.f32.mrb[0].mxu0
    %v3484 = vadd.f32 %v1528, %v3483
    %3485 = vdwg.mxu0
    %3486 = vmatprep.subr.mxu0 %v1394
    %3487 = vmatpush1.msra.mxu0 %v1393
    %3488 = vmatprep.subr.mxu0 %v1398
    %3489 = vmatpush1.msra.mxu0 %v1397
    %3490 = vmatprep.subr.mxu0 %v1402
    %3491 = vmatpush1.msra.mxu0 %v1401
    %3492 = vmatprep.subr.mxu0 %v1406
    %3493 = vmatpush1.msra.mxu0 %v1405
    %3494 = vmatprep.subr.mxu0 %v1410
    %3495 = vmatpush1.msra.mxu0 %v1409
    %3496 = vmatprep.subr.mxu0 %v1414
    %3497 = vmatpush1.msra.mxu0 %v1413
    %3498 = vmatprep.subr.mxu0 %v1418
    %3499 = vmatpush1.msra.mxu0 %v1417
    %3500 = vmatprep.subr.mxu0 %v1422
    %3501 = vmatpush1.msra.mxu0 %v1421
    %3502 = vmatprep.subr.mxu0 %v1426
    %3503 = vmatpush1.msra.mxu0 %v1425
    %3504 = vmatprep.subr.mxu0 %v1430
    %3505 = vmatpush1.msra.mxu0 %v1429
    %3506 = vmatprep.subr.mxu0 %v1434
    %3507 = vmatpush1.msra.mxu0 %v1433
    %3508 = vmatprep.subr.mxu0 %v1438
    %3509 = vmatpush1.msra.mxu0 %v1437
    %3510 = vmatprep.subr.mxu0 %v1442
    %3511 = vmatpush1.msra.mxu0 %v1441
    %3512 = vmatprep.subr.mxu0 %v1446
    %3513 = vmatpush1.msra.mxu0 %v1445
    %3514 = vmatprep.subr.mxu0 %v1450
    %3515 = vmatpush1.msra.mxu0 %v1449
    %3516 = vmatprep.subr.mxu0 %v1454
    %3517 = vmatpush1.msra.mxu0 %v1453
    %3518 = vmatprep.subr.mxu0 %v1458
    %3519 = vmatpush1.msra.mxu0 %v1457
    %3520 = vmatprep.subr.mxu0 %v1462
    %3521 = vmatpush1.msra.mxu0 %v1461
    %3522 = vmatprep.subr.mxu0 %v1466
    %3523 = vmatpush1.msra.mxu0 %v1465
    %3524 = vmatprep.subr.mxu0 %v1470
    %3525 = vmatpush1.msra.mxu0 %v1469
    %3526 = vmatprep.subr.mxu0 %v1474
    %3527 = vmatpush1.msra.mxu0 %v1473
    %3528 = vmatprep.subr.mxu0 %v1478
    %3529 = vmatpush1.msra.mxu0 %v1477
    %3530 = vmatprep.subr.mxu0 %v1482
    %3531 = vmatpush1.msra.mxu0 %v1481
    %3532 = vmatprep.subr.mxu0 %v1486
    %3533 = vmatpush1.msra.mxu0 %v1485
    %3534 = vmatprep.subr.mxu0 %v1490
    %3535 = vmatpush1.msra.mxu0 %v1489
    %3536 = vmatprep.subr.mxu0 %v1494
    %3537 = vmatpush1.msra.mxu0 %v1493
    %3538 = vmatprep.subr.mxu0 %v1498
    %3539 = vmatpush1.msra.mxu0 %v1497
    %3540 = vmatprep.subr.mxu0 %v1502
    %3541 = vmatpush1.msra.mxu0 %v1501
    %3542 = vmatprep.subr.mxu0 %v1506
    %3543 = vmatpush1.msra.mxu0 %v1505
    %3544 = vmatprep.subr.mxu0 %v1510
    %3545 = vmatpush1.msra.mxu0 %v1509
    %3546 = vmatprep.subr.mxu0 %v1514
    %3547 = vmatpush1.msra.mxu0 %v1513
    %3548 = vmatprep.subr.mxu0 %v1518
    %3549 = vmatpush1.msra.mxu0 %v1517
    %3550 = vmatprep.mubr.f32.mxu0 %v3240
    %3551 = vmatmul.mubr.f32.gmra.mrb[0].mxu0 %v3414
    %v3552 = vpop.f32.mrb[0].mxu0
    %v3553 = vadd.f32 %v1532, %v3552
    %v3554 = vpop.f32.mrb[0].mxu0
    %v3555 = vadd.f32 %v1536, %v3554
    %3556 = vdwg.mxu0
    %v3557 = vxor.u32 %v3482, 2147483648
    %v3558 = vxor.u32 %v3484, 2147483648
    %v3559 = vxor.u32 %v3553, 2147483648
    %v3560 = vmul.f32 %v3557, 1.442695
    %v3561 = vpow.pop %v3560
    %v3562 = vmul.f32 %v3558, 1.442695
    %v3563 = vpow.pop %v3562
    %v3564 = vmul.f32 %v3559, 1.442695
    %v3565 = vpow.pop %v3564
    %v3566 = vadd.f32 %v3561, 1.0
    %v3567 = vadd.f32 %v3563, 1.0
    %v3568 = vadd.f32 %v3565, 1.0
    %v3569 = vrcp.pop %v3566
    %v3570 = vmul.f32 1.0, %v3569
    %v3571 = vrcp.pop %v3567
    %v3572 = vmul.f32 1.0, %v3571
    %v3573 = vrcp.pop %v3568
    %v3574 = vmul.f32 1.0, %v3573
    %v3575 = vtanh.pop %v3555
    %v3576 = vmul.f32 %v3572, %v3238
    %v3577 = vmul.f32 %v3570, %v3575
    %v3578 = vadd.f32 %v3576, %v3577
    %v3579 = vtanh.pop %v3578
    %v3580 = vmul.f32 %v3574, %v3579
    %v3581 = vld [vmem:[%s1170] sm:$0xff]
    %v3582 = vld [vmem:[%s1170 + $0x8] sm:$0xff]
    %v3583 = vld [vmem:[%s1170 + $0x10] sm:$0xff]
    %v3584 = vld [vmem:[%s1170 + $0x18] sm:$0xff]
    %3585 = vmatprep.subr.mxu0 %v1328
    %3586 = vmatpush1.msra.mxu0 %v1327
    %3587 = vmatprep.subr.mxu0 %v1332
    %3588 = vmatpush1.msra.mxu0 %v1331
    %3589 = vmatprep.subr.mxu0 %v1336
    %3590 = vmatpush1.msra.mxu0 %v1335
    %3591 = vmatprep.subr.mxu0 %v1340
    %3592 = vmatpush1.msra.mxu0 %v1339
    %3593 = vmatprep.subr.mxu0 %v1344
    %3594 = vmatpush1.msra.mxu0 %v1343
    %3595 = vmatprep.subr.mxu0 %v1348
    %3596 = vmatpush1.msra.mxu0 %v1347
    %3597 = vmatprep.subr.mxu0 %v1352
    %3598 = vmatpush1.msra.mxu0 %v1351
    %3599 = vmatprep.subr.mxu0 %v1356
    %3600 = vmatpush1.msra.mxu0 %v1355
    %3601 = vmatprep.subr.mxu0 %v1360
    %3602 = vmatpush1.msra.mxu0 %v1359
    %3603 = vmatprep.subr.mxu0 %v1364
    %3604 = vmatpush1.msra.mxu0 %v1363
    %3605 = vmatprep.subr.mxu0 %v1368
    %3606 = vmatpush1.msra.mxu0 %v1367
    %3607 = vmatprep.subr.mxu0 %v1372
    %3608 = vmatpush1.msra.mxu0 %v1371
    %3609 = vmatprep.subr.mxu0 %v1376
    %3610 = vmatpush1.msra.mxu0 %v1375
    %3611 = vmatprep.subr.mxu0 %v1380
    %3612 = vmatpush1.msra.mxu0 %v1379
    %3613 = vmatprep.subr.mxu0 %v1384
    %3614 = vmatpush1.msra.mxu0 %v1383
    %3615 = vmatprep.subr.mxu0 %v1388
    %3616 = vmatpush1.msra.mxu0 %v1387
    %3617 = vmatprep.subr.mxu0 0.0
    %3618 = vmatpush1.msra.mxu0 0.0
    %3619 = vmatprep.subr.mxu0 0.0
    %3620 = vmatpush1.msra.mxu0 0.0
    %3621 = vmatprep.subr.mxu0 0.0
    %3622 = vmatpush1.msra.mxu0 0.0
    %3623 = vmatprep.subr.mxu0 0.0
    %3624 = vmatpush1.msra.mxu0 0.0
    %3625 = vmatprep.subr.mxu0 0.0
    %3626 = vmatpush1.msra.mxu0 0.0
    %3627 = vmatprep.subr.mxu0 0.0
    %3628 = vmatpush1.msra.mxu0 0.0
    %3629 = vmatprep.subr.mxu0 0.0
    %3630 = vmatpush1.msra.mxu0 0.0
    %3631 = vmatprep.subr.mxu0 0.0
    %3632 = vmatpush1.msra.mxu0 0.0
    %3633 = vmatprep.subr.mxu0 0.0
    %3634 = vmatpush1.msra.mxu0 0.0
    %3635 = vmatprep.subr.mxu0 0.0
    %3636 = vmatpush1.msra.mxu0 0.0
    %3637 = vmatprep.subr.mxu0 0.0
    %3638 = vmatpush1.msra.mxu0 0.0
    %3639 = vmatprep.subr.mxu0 0.0
    %3640 = vmatpush1.msra.mxu0 0.0
    %3641 = vmatprep.subr.mxu0 0.0
    %3642 = vmatpush1.msra.mxu0 0.0
    %3643 = vmatprep.subr.mxu0 0.0
    %3644 = vmatpush1.msra.mxu0 0.0
    %3645 = vmatprep.subr.mxu0 0.0
    %3646 = vmatpush1.msra.mxu0 0.0
    %3647 = vmatprep.subr.mxu0 0.0
    %3648 = vmatpush1.msra.mxu0 0.0
    %3649 = vmatprep.mubr.f32.mxu0 0.0
    %3650 = vmatmul.mubr.f32.gmra.mrb[0].mxu0 %v3414
    %v3651 = vpop.f32.mrb[0].mxu0
    %v3652 = vadd.f32 0.0, %v3651
    %v3653 = vpop.f32.mrb[0].mxu0
    %v3654 = vadd.f32 0.0, %v3653
    %3655 = vdwg.mxu0
    %3656 = vmatprep.subr.mxu0 %v1330
    %3657 = vmatpush1.msra.mxu0 %v1329
    %3658 = vmatprep.subr.mxu0 %v1334
    %3659 = vmatpush1.msra.mxu0 %v1333
    %3660 = vmatprep.subr.mxu0 %v1338
    %3661 = vmatpush1.msra.mxu0 %v1337
    %3662 = vmatprep.subr.mxu0 %v1342
    %3663 = vmatpush1.msra.mxu0 %v1341
    %3664 = vmatprep.subr.mxu0 %v1346
    %3665 = vmatpush1.msra.mxu0 %v1345
    %3666 = vmatprep.subr.mxu0 %v1350
    %3667 = vmatpush1.msra.mxu0 %v1349
    %3668 = vmatprep.subr.mxu0 %v1354
    %3669 = vmatpush1.msra.mxu0 %v1353
    %3670 = vmatprep.subr.mxu0 %v1358
    %3671 = vmatpush1.msra.mxu0 %v1357
    %3672 = vmatprep.subr.mxu0 %v1362
    %3673 = vmatpush1.msra.mxu0 %v1361
    %3674 = vmatprep.subr.mxu0 %v1366
    %3675 = vmatpush1.msra.mxu0 %v1365
    %3676 = vmatprep.subr.mxu0 %v1370
    %3677 = vmatpush1.msra.mxu0 %v1369
    %3678 = vmatprep.subr.mxu0 %v1374
    %3679 = vmatpush1.msra.mxu0 %v1373
    %3680 = vmatprep.subr.mxu0 %v1378
    %3681 = vmatpush1.msra.mxu0 %v1377
    %3682 = vmatprep.subr.mxu0 %v1382
    %3683 = vmatpush1.msra.mxu0 %v1381
    %3684 = vmatprep.subr.mxu0 %v1386
    %3685 = vmatpush1.msra.mxu0 %v1385
    %3686 = vmatprep.subr.mxu0 %v1390
    %3687 = vmatpush1.msra.mxu0 %v1389
    %3688 = vmatprep.subr.mxu0 0.0
    %3689 = vmatpush1.msra.mxu0 0.0
    %3690 = vmatprep.subr.mxu0 0.0
    %3691 = vmatpush1.msra.mxu0 0.0
    %3692 = vmatprep.subr.mxu0 0.0
    %3693 = vmatpush1.msra.mxu0 0.0
    %3694 = vmatprep.subr.mxu0 0.0
    %3695 = vmatpush1.msra.mxu0 0.0
    %3696 = vmatprep.subr.mxu0 0.0
    %3697 = vmatpush1.msra.mxu0 0.0
    %3698 = vmatprep.subr.mxu0 0.0
    %3699 = vmatpush1.msra.mxu0 0.0
    %3700 = vmatprep.subr.mxu0 0.0
    %3701 = vmatpush1.msra.mxu0 0.0
    %3702 = vmatprep.subr.mxu0 0.0
    %3703 = vmatpush1.msra.mxu0 0.0
    %3704 = vmatprep.subr.mxu0 0.0
    %3705 = vmatpush1.msra.mxu0 0.0
    %3706 = vmatprep.subr.mxu0 0.0
    %3707 = vmatpush1.msra.mxu0 0.0
    %3708 = vmatprep.subr.mxu0 0.0
    %3709 = vmatpush1.msra.mxu0 0.0
    %3710 = vmatprep.subr.mxu0 0.0
    %3711 = vmatpush1.msra.mxu0 0.0
    %3712 = vmatprep.subr.mxu0 0.0
    %3713 = vmatpush1.msra.mxu0 0.0
    %3714 = vmatprep.subr.mxu0 0.0
    %3715 = vmatpush1.msra.mxu0 0.0
    %3716 = vmatprep.subr.mxu0 0.0
    %3717 = vmatpush1.msra.mxu0 0.0
    %3718 = vmatprep.subr.mxu0 0.0
    %3719 = vmatpush1.msra.mxu0 0.0
    %3720 = vmatprep.mubr.f32.mxu0 0.0
    %3721 = vmatmul.mubr.f32.gmra.mrb[0].mxu0 %v3414
    %v3722 = vpop.f32.mrb[0].mxu0
    %v3723 = vadd.f32 0.0, %v3722
    %v3724 = vpop.f32.mrb[0].mxu0
    %v3725 = vadd.f32 0.0, %v3724
    %3726 = vdwg.mxu0
    %v3727 = vadd.f32 %v3581, %v3652
    %v3728 = vadd.f32 %v3582, %v3654
    %v3729 = vadd.f32 %v3583, %v3723
    %v3730 = vadd.f32 %v3584, %v3725
    %v3731 = vxor.u32 %v3727, 2147483648
    %v3732 = vxor.u32 %v3728, 2147483648
    %v3733 = vxor.u32 %v3729, 2147483648
    %v3734 = vmul.f32 %v3731, 1.442695
    %v3735 = vpow.pop %v3734
    %v3736 = vmul.f32 %v3732, 1.442695
    %v3737 = vpow.pop %v3736
    %v3738 = vmul.f32 %v3733, 1.442695
    %v3739 = vpow.pop %v3738
    %v3740 = vadd.f32 %v3735, 1.0
    %v3741 = vadd.f32 %v3737, 1.0
    %v3742 = vadd.f32 %v3739, 1.0
    %v3743 = vrcp.pop %v3740
    %v3744 = vmul.f32 1.0, %v3743
    %v3745 = vrcp.pop %v3741
    %v3746 = vmul.f32 1.0, %v3745
    %v3747 = vrcp.pop %v3742
    %v3748 = vmul.f32 1.0, %v3747
    %v3749 = vtanh.pop %v3730
    %v3750 = vmul.f32 %v3746, %v3412
    %v3751 = vmul.f32 %v3744, %v3749
    %v3752 = vadd.f32 %v3750, %v3751
    %v3753 = vtanh.pop %v3752
    %v3754 = vmul.f32 %v3748, %v3753
    %3755 = vmatprep.subr.mxu0 %v1392
    %3756 = vmatpush1.msra.mxu0 %v1391
    %3757 = vmatprep.subr.mxu0 %v1396
    %3758 = vmatpush1.msra.mxu0 %v1395
    %3759 = vmatprep.subr.mxu0 %v1400
    %3760 = vmatpush1.msra.mxu0 %v1399
    %3761 = vmatprep.subr.mxu0 %v1404
    %3762 = vmatpush1.msra.mxu0 %v1403
    %3763 = vmatprep.subr.mxu0 %v1408
    %3764 = vmatpush1.msra.mxu0 %v1407
    %3765 = vmatprep.subr.mxu0 %v1412
    %3766 = vmatpush1.msra.mxu0 %v1411
    %3767 = vmatprep.subr.mxu0 %v1416
    %3768 = vmatpush1.msra.mxu0 %v1415
    %3769 = vmatprep.subr.mxu0 %v1420
    %3770 = vmatpush1.msra.mxu0 %v1419
    %3771 = vmatprep.subr.mxu0 %v1424
    %3772 = vmatpush1.msra.mxu0 %v1423
    %3773 = vmatprep.subr.mxu0 %v1428
    %3774 = vmatpush1.msra.mxu0 %v1427
    %3775 = vmatprep.subr.mxu0 %v1432
    %3776 = vmatpush1.msra.mxu0 %v1431
    %3777 = vmatprep.subr.mxu0 %v1436
    %3778 = vmatpush1.msra.mxu0 %v1435
    %3779 = vmatprep.subr.mxu0 %v1440
    %3780 = vmatpush1.msra.mxu0 %v1439
    %3781 = vmatprep.subr.mxu0 %v1444
    %3782 = vmatpush1.msra.mxu0 %v1443
    %3783 = vmatprep.subr.mxu0 %v1448
    %3784 = vmatpush1.msra.mxu0 %v1447
    %3785 = vmatprep.subr.mxu0 %v1452
    %3786 = vmatpush1.msra.mxu0 %v1451
    %3787 = vmatprep.subr.mxu0 %v1456
    %3788 = vmatpush1.msra.mxu0 %v1455
    %3789 = vmatprep.subr.mxu0 %v1460
    %3790 = vmatpush1.msra.mxu0 %v1459
    %3791 = vmatprep.subr.mxu0 %v1464
    %3792 = vmatpush1.msra.mxu0 %v1463
    %3793 = vmatprep.subr.mxu0 %v1468
    %3794 = vmatpush1.msra.mxu0 %v1467
    %3795 = vmatprep.subr.mxu0 %v1472
    %3796 = vmatpush1.msra.mxu0 %v1471
    %3797 = vmatprep.subr.mxu0 %v1476
    %3798 = vmatpush1.msra.mxu0 %v1475
    %3799 = vmatprep.subr.mxu0 %v1480
    %3800 = vmatpush1.msra.mxu0 %v1479
    %3801 = vmatprep.subr.mxu0 %v1484
    %3802 = vmatpush1.msra.mxu0 %v1483
    %3803 = vmatprep.subr.mxu0 %v1488
    %3804 = vmatpush1.msra.mxu0 %v1487
    %3805 = vmatprep.subr.mxu0 %v1492
    %3806 = vmatpush1.msra.mxu0 %v1491
    %3807 = vmatprep.subr.mxu0 %v1496
    %3808 = vmatpush1.msra.mxu0 %v1495
    %3809 = vmatprep.subr.mxu0 %v1500
    %3810 = vmatpush1.msra.mxu0 %v1499
    %3811 = vmatprep.subr.mxu0 %v1504
    %3812 = vmatpush1.msra.mxu0 %v1503
    %3813 = vmatprep.subr.mxu0 %v1508
    %3814 = vmatpush1.msra.mxu0 %v1507
    %3815 = vmatprep.subr.mxu0 %v1512
    %3816 = vmatpush1.msra.mxu0 %v1511
    %3817 = vmatprep.subr.mxu0 %v1516
    %3818 = vmatpush1.msra.mxu0 %v1515
    %3819 = vmatprep.mubr.f32.mxu0 %v3580
    %3820 = vmatmul.mubr.f32.gmra.mrb[0].mxu0 %v3754
    %v3821 = vpop.f32.mrb[0].mxu0
    %v3822 = vadd.f32 %v1524, %v3821
    %v3823 = vpop.f32.mrb[0].mxu0
    %v3824 = vadd.f32 %v1528, %v3823
    %3825 = vdwg.mxu0
    %3826 = vmatprep.subr.mxu0 %v1394
    %3827 = vmatpush1.msra.mxu0 %v1393
    %3828 = vmatprep.subr.mxu0 %v1398
    %3829 = vmatpush1.msra.mxu0 %v1397
    %3830 = vmatprep.subr.mxu0 %v1402
    %3831 = vmatpush1.msra.mxu0 %v1401
    %3832 = vmatprep.subr.mxu0 %v1406
    %3833 = vmatpush1.msra.mxu0 %v1405
    %3834 = vmatprep.subr.mxu0 %v1410
    %3835 = vmatpush1.msra.mxu0 %v1409
    %3836 = vmatprep.subr.mxu0 %v1414
    %3837 = vmatpush1.msra.mxu0 %v1413
    %3838 = vmatprep.subr.mxu0 %v1418
    %3839 = vmatpush1.msra.mxu0 %v1417
    %3840 = vmatprep.subr.mxu0 %v1422
    %3841 = vmatpush1.msra.mxu0 %v1421
    %3842 = vmatprep.subr.mxu0 %v1426
    %3843 = vmatpush1.msra.mxu0 %v1425
    %3844 = vmatprep.subr.mxu0 %v1430
    %3845 = vmatpush1.msra.mxu0 %v1429
    %3846 = vmatprep.subr.mxu0 %v1434
    %3847 = vmatpush1.msra.mxu0 %v1433
    %3848 = vmatprep.subr.mxu0 %v1438
    %3849 = vmatpush1.msra.mxu0 %v1437
    %3850 = vmatprep.subr.mxu0 %v1442
    %3851 = vmatpush1.msra.mxu0 %v1441
    %3852 = vmatprep.subr.mxu0 %v1446
    %3853 = vmatpush1.msra.mxu0 %v1445
    %3854 = vmatprep.subr.mxu0 %v1450
    %3855 = vmatpush1.msra.mxu0 %v1449
    %3856 = vmatprep.subr.mxu0 %v1454
    %3857 = vmatpush1.msra.mxu0 %v1453
    %3858 = vmatprep.subr.mxu0 %v1458
    %3859 = vmatpush1.msra.mxu0 %v1457
    %3860 = vmatprep.subr.mxu0 %v1462
    %3861 = vmatpush1.msra.mxu0 %v1461
    %3862 = vmatprep.subr.mxu0 %v1466
    %3863 = vmatpush1.msra.mxu0 %v1465
    %3864 = vmatprep.subr.mxu0 %v1470
    %3865 = vmatpush1.msra.mxu0 %v1469
    %3866 = vmatprep.subr.mxu0 %v1474
    %3867 = vmatpush1.msra.mxu0 %v1473
    %3868 = vmatprep.subr.mxu0 %v1478
    %3869 = vmatpush1.msra.mxu0 %v1477
    %3870 = vmatprep.subr.mxu0 %v1482
    %3871 = vmatpush1.msra.mxu0 %v1481
    %3872 = vmatprep.subr.mxu0 %v1486
    %3873 = vmatpush1.msra.mxu0 %v1485
    %3874 = vmatprep.subr.mxu0 %v1490
    %3875 = vmatpush1.msra.mxu0 %v1489
    %3876 = vmatprep.subr.mxu0 %v1494
    %3877 = vmatpush1.msra.mxu0 %v1493
    %3878 = vmatprep.subr.mxu0 %v1498
    %3879 = vmatpush1.msra.mxu0 %v1497
    %3880 = vmatprep.subr.mxu0 %v1502
    %3881 = vmatpush1.msra.mxu0 %v1501
    %3882 = vmatprep.subr.mxu0 %v1506
    %3883 = vmatpush1.msra.mxu0 %v1505
    %3884 = vmatprep.subr.mxu0 %v1510
    %3885 = vmatpush1.msra.mxu0 %v1509
    %3886 = vmatprep.subr.mxu0 %v1514
    %3887 = vmatpush1.msra.mxu0 %v1513
    %3888 = vmatprep.subr.mxu0 %v1518
    %3889 = vmatpush1.msra.mxu0 %v1517
    %3890 = vmatprep.mubr.f32.mxu0 %v3580
    %3891 = vmatmul.mubr.f32.gmra.mrb[0].mxu0 %v3754
    %v3892 = vpop.f32.mrb[0].mxu0
    %v3893 = vadd.f32 %v1532, %v3892
    %v3894 = vpop.f32.mrb[0].mxu0
    %v3895 = vadd.f32 %v1536, %v3894
    %3896 = vdwg.mxu0
    %v3897 = vxor.u32 %v3822, 2147483648
    %v3898 = vxor.u32 %v3824, 2147483648
    %v3899 = vxor.u32 %v3893, 2147483648
    %v3900 = vmul.f32 %v3897, 1.442695
    %v3901 = vpow.pop %v3900
    %v3902 = vmul.f32 %v3898, 1.442695
    %v3903 = vpow.pop %v3902
    %v3904 = vmul.f32 %v3899, 1.442695
    %v3905 = vpow.pop %v3904
    %v3906 = vadd.f32 %v3901, 1.0
    %v3907 = vadd.f32 %v3903, 1.0
    %v3908 = vadd.f32 %v3905, 1.0
    %v3909 = vrcp.pop %v3906
    %v3910 = vmul.f32 1.0, %v3909
    %v3911 = vrcp.pop %v3907
    %v3912 = vmul.f32 1.0, %v3911
    %v3913 = vrcp.pop %v3908
    %v3914 = vmul.f32 1.0, %v3913
    %v3915 = vtanh.pop %v3895
    %v3916 = vmul.f32 %v3912, %v3578
    %v3917 = vmul.f32 %v3910, %v3915
    %v3918 = vadd.f32 %v3916, %v3917
    %v3919 = vtanh.pop %v3918
    %v3920 = vmul.f32 %v3914, %v3919
    %v3921 = vld [vmem:[%s1322] sm:$0xff]
    %v3922 = vld [vmem:[%s1322 + $0x8] sm:$0xff]
    %v3923 = vld [vmem:[%s1322 + $0x10] sm:$0xff]
    %v3924 = vld [vmem:[%s1322 + $0x18] sm:$0xff]
    %3925 = vmatprep.subr.mxu0 %v1328
    %3926 = vmatpush1.msra.mxu0 %v1327
    %3927 = vmatprep.subr.mxu0 %v1332
    %3928 = vmatpush1.msra.mxu0 %v1331
    %3929 = vmatprep.subr.mxu0 %v1336
    %3930 = vmatpush1.msra.mxu0 %v1335
    %3931 = vmatprep.subr.mxu0 %v1340
    %3932 = vmatpush1.msra.mxu0 %v1339
    %3933 = vmatprep.subr.mxu0 %v1344
    %3934 = vmatpush1.msra.mxu0 %v1343
    %3935 = vmatprep.subr.mxu0 %v1348
    %3936 = vmatpush1.msra.mxu0 %v1347
    %3937 = vmatprep.subr.mxu0 %v1352
    %3938 = vmatpush1.msra.mxu0 %v1351
    %3939 = vmatprep.subr.mxu0 %v1356
    %3940 = vmatpush1.msra.mxu0 %v1355
    %3941 = vmatprep.subr.mxu0 %v1360
    %3942 = vmatpush1.msra.mxu0 %v1359
    %3943 = vmatprep.subr.mxu0 %v1364
    %3944 = vmatpush1.msra.mxu0 %v1363
    %3945 = vmatprep.subr.mxu0 %v1368
    %3946 = vmatpush1.msra.mxu0 %v1367
    %3947 = vmatprep.subr.mxu0 %v1372
    %3948 = vmatpush1.msra.mxu0 %v1371
    %3949 = vmatprep.subr.mxu0 %v1376
    %3950 = vmatpush1.msra.mxu0 %v1375
    %3951 = vmatprep.subr.mxu0 %v1380
    %3952 = vmatpush1.msra.mxu0 %v1379
    %3953 = vmatprep.subr.mxu0 %v1384
    %3954 = vmatpush1.msra.mxu0 %v1383
    %3955 = vmatprep.subr.mxu0 %v1388
    %3956 = vmatpush1.msra.mxu0 %v1387
    %3957 = vmatprep.subr.mxu0 0.0
    %3958 = vmatpush1.msra.mxu0 0.0
    %3959 = vmatprep.subr.mxu0 0.0
    %3960 = vmatpush1.msra.mxu0 0.0
    %3961 = vmatprep.subr.mxu0 0.0
    %3962 = vmatpush1.msra.mxu0 0.0
    %3963 = vmatprep.subr.mxu0 0.0
    %3964 = vmatpush1.msra.mxu0 0.0
    %3965 = vmatprep.subr.mxu0 0.0
    %3966 = vmatpush1.msra.mxu0 0.0
    %3967 = vmatprep.subr.mxu0 0.0
    %3968 = vmatpush1.msra.mxu0 0.0
    %3969 = vmatprep.subr.mxu0 0.0
    %3970 = vmatpush1.msra.mxu0 0.0
    %3971 = vmatprep.subr.mxu0 0.0
    %3972 = vmatpush1.msra.mxu0 0.0
    %3973 = vmatprep.subr.mxu0 0.0
    %3974 = vmatpush1.msra.mxu0 0.0
    %3975 = vmatprep.subr.mxu0 0.0
    %3976 = vmatpush1.msra.mxu0 0.0
    %3977 = vmatprep.subr.mxu0 0.0
    %3978 = vmatpush1.msra.mxu0 0.0
    %3979 = vmatprep.subr.mxu0 0.0
    %3980 = vmatpush1.msra.mxu0 0.0
    %3981 = vmatprep.subr.mxu0 0.0
    %3982 = vmatpush1.msra.mxu0 0.0
    %3983 = vmatprep.subr.mxu0 0.0
    %3984 = vmatpush1.msra.mxu0 0.0
    %3985 = vmatprep.subr.mxu0 0.0
    %3986 = vmatpush1.msra.mxu0 0.0
    %3987 = vmatprep.subr.mxu0 0.0
    %3988 = vmatpush1.msra.mxu0 0.0
    %3989 = vmatprep.mubr.f32.mxu0 0.0
    %3990 = vmatmul.mubr.f32.gmra.mrb[0].mxu0 %v3754
    %v3991 = vpop.f32.mrb[0].mxu0
    %v3992 = vadd.f32 0.0, %v3991
    %v3993 = vpop.f32.mrb[0].mxu0
    %v3994 = vadd.f32 0.0, %v3993
    %3995 = vdwg.mxu0
    %3996 = vmatprep.subr.mxu0 %v1330
    %3997 = vmatpush1.msra.mxu0 %v1329
    %3998 = vmatprep.subr.mxu0 %v1334
    %3999 = vmatpush1.msra.mxu0 %v1333
    %4000 = vmatprep.subr.mxu0 %v1338
    %4001 = vmatpush1.msra.mxu0 %v1337
    %4002 = vmatprep.subr.mxu0 %v1342
    %4003 = vmatpush1.msra.mxu0 %v1341
    %4004 = vmatprep.subr.mxu0 %v1346
    %4005 = vmatpush1.msra.mxu0 %v1345
    %4006 = vmatprep.subr.mxu0 %v1350
    %4007 = vmatpush1.msra.mxu0 %v1349
    %4008 = vmatprep.subr.mxu0 %v1354
    %4009 = vmatpush1.msra.mxu0 %v1353
    %4010 = vmatprep.subr.mxu0 %v1358
    %4011 = vmatpush1.msra.mxu0 %v1357
    %4012 = vmatprep.subr.mxu0 %v1362
    %4013 = vmatpush1.msra.mxu0 %v1361
    %4014 = vmatprep.subr.mxu0 %v1366
    %4015 = vmatpush1.msra.mxu0 %v1365
    %4016 = vmatprep.subr.mxu0 %v1370
    %4017 = vmatpush1.msra.mxu0 %v1369
    %4018 = vmatprep.subr.mxu0 %v1374
    %4019 = vmatpush1.msra.mxu0 %v1373
    %4020 = vmatprep.subr.mxu0 %v1378
    %4021 = vmatpush1.msra.mxu0 %v1377
    %4022 = vmatprep.subr.mxu0 %v1382
    %4023 = vmatpush1.msra.mxu0 %v1381
    %4024 = vmatprep.subr.mxu0 %v1386
    %4025 = vmatpush1.msra.mxu0 %v1385
    %4026 = vmatprep.subr.mxu0 %v1390
    %4027 = vmatpush1.msra.mxu0 %v1389
    %4028 = vmatprep.subr.mxu0 0.0
    %4029 = vmatpush1.msra.mxu0 0.0
    %4030 = vmatprep.subr.mxu0 0.0
    %4031 = vmatpush1.msra.mxu0 0.0
    %4032 = vmatprep.subr.mxu0 0.0
    %4033 = vmatpush1.msra.mxu0 0.0
    %4034 = vmatprep.subr.mxu0 0.0
    %4035 = vmatpush1.msra.mxu0 0.0
    %4036 = vmatprep.subr.mxu0 0.0
    %4037 = vmatpush1.msra.mxu0 0.0
    %4038 = vmatprep.subr.mxu0 0.0
    %4039 = vmatpush1.msra.mxu0 0.0
    %4040 = vmatprep.subr.mxu0 0.0
    %4041 = vmatpush1.msra.mxu0 0.0
    %4042 = vmatprep.subr.mxu0 0.0
    %4043 = vmatpush1.msra.mxu0 0.0
    %4044 = vmatprep.subr.mxu0 0.0
    %4045 = vmatpush1.msra.mxu0 0.0
    %4046 = vmatprep.subr.mxu0 0.0
    %4047 = vmatpush1.msra.mxu0 0.0
    %4048 = vmatprep.subr.mxu0 0.0
    %4049 = vmatpush1.msra.mxu0 0.0
    %4050 = vmatprep.subr.mxu0 0.0
    %4051 = vmatpush1.msra.mxu0 0.0
    %4052 = vmatprep.subr.mxu0 0.0
    %4053 = vmatpush1.msra.mxu0 0.0
    %4054 = vmatprep.subr.mxu0 0.0
    %4055 = vmatpush1.msra.mxu0 0.0
    %4056 = vmatprep.subr.mxu0 0.0
    %4057 = vmatpush1.msra.mxu0 0.0
    %4058 = vmatprep.subr.mxu0 0.0
    %4059 = vmatpush1.msra.mxu0 0.0
    %4060 = vmatprep.mubr.f32.mxu0 0.0
    %4061 = vmatmul.mubr.f32.gmra.mrb[0].mxu0 %v3754
    %v4062 = vpop.f32.mrb[0].mxu0
    %v4063 = vadd.f32 0.0, %v4062
    %v4064 = vpop.f32.mrb[0].mxu0
    %v4065 = vadd.f32 0.0, %v4064
    %4066 = vdwg.mxu0
    %v4067 = vadd.f32 %v3921, %v3992
    %v4068 = vadd.f32 %v3922, %v3994
    %v4069 = vadd.f32 %v3923, %v4063
    %v4070 = vadd.f32 %v3924, %v4065
    %v4071 = vxor.u32 %v4067, 2147483648
    %v4072 = vxor.u32 %v4068, 2147483648
    %v4073 = vxor.u32 %v4069, 2147483648
    %v4074 = vmul.f32 %v4071, 1.442695
    %v4075 = vpow.pop %v4074
    %v4076 = vmul.f32 %v4072, 1.442695
    %v4077 = vpow.pop %v4076
    %v4078 = vmul.f32 %v4073, 1.442695
    %v4079 = vpow.pop %v4078
    %v4080 = vadd.f32 %v4075, 1.0
    %v4081 = vadd.f32 %v4077, 1.0
    %v4082 = vadd.f32 %v4079, 1.0
    %v4083 = vrcp.pop %v4080
    %v4084 = vmul.f32 1.0, %v4083
    %v4085 = vrcp.pop %v4081
    %v4086 = vmul.f32 1.0, %v4085
    %v4087 = vrcp.pop %v4082
    %v4088 = vmul.f32 1.0, %v4087
    %v4089 = vtanh.pop %v4070
    %v4090 = vmul.f32 %v4086, %v3752
    %v4091 = vmul.f32 %v4084, %v4089
    %v4092 = vadd.f32 %v4090, %v4091
    %v4093 = vtanh.pop %v4092
    %v4094 = vmul.f32 %v4088, %v4093
    %4095 = vmatprep.subr.mxu0 %v1392
    %4096 = vmatpush1.msra.mxu0 %v1391
    %4097 = vmatprep.subr.mxu0 %v1396
    %4098 = vmatpush1.msra.mxu0 %v1395
    %4099 = vmatprep.subr.mxu0 %v1400
    %4100 = vmatpush1.msra.mxu0 %v1399
    %4101 = vmatprep.subr.mxu0 %v1404
    %4102 = vmatpush1.msra.mxu0 %v1403
    %4103 = vmatprep.subr.mxu0 %v1408
    %4104 = vmatpush1.msra.mxu0 %v1407
    %4105 = vmatprep.subr.mxu0 %v1412
    %4106 = vmatpush1.msra.mxu0 %v1411
    %4107 = vmatprep.subr.mxu0 %v1416
    %4108 = vmatpush1.msra.mxu0 %v1415
    %4109 = vmatprep.subr.mxu0 %v1420
    %4110 = vmatpush1.msra.mxu0 %v1419
    %4111 = vmatprep.subr.mxu0 %v1424
    %4112 = vmatpush1.msra.mxu0 %v1423
    %4113 = vmatprep.subr.mxu0 %v1428
    %4114 = vmatpush1.msra.mxu0 %v1427
    %4115 = vmatprep.subr.mxu0 %v1432
    %4116 = vmatpush1.msra.mxu0 %v1431
    %4117 = vmatprep.subr.mxu0 %v1436
    %4118 = vmatpush1.msra.mxu0 %v1435
    %4119 = vmatprep.subr.mxu0 %v1440
    %4120 = vmatpush1.msra.mxu0 %v1439
    %4121 = vmatprep.subr.mxu0 %v1444
    %4122 = vmatpush1.msra.mxu0 %v1443
    %4123 = vmatprep.subr.mxu0 %v1448
    %4124 = vmatpush1.msra.mxu0 %v1447
    %4125 = vmatprep.subr.mxu0 %v1452
    %4126 = vmatpush1.msra.mxu0 %v1451
    %4127 = vmatprep.subr.mxu0 %v1456
    %4128 = vmatpush1.msra.mxu0 %v1455
    %4129 = vmatprep.subr.mxu0 %v1460
    %4130 = vmatpush1.msra.mxu0 %v1459
    %4131 = vmatprep.subr.mxu0 %v1464
    %4132 = vmatpush1.msra.mxu0 %v1463
    %4133 = vmatprep.subr.mxu0 %v1468
    %4134 = vmatpush1.msra.mxu0 %v1467
    %4135 = vmatprep.subr.mxu0 %v1472
    %4136 = vmatpush1.msra.mxu0 %v1471
    %4137 = vmatprep.subr.mxu0 %v1476
    %4138 = vmatpush1.msra.mxu0 %v1475
    %4139 = vmatprep.subr.mxu0 %v1480
    %4140 = vmatpush1.msra.mxu0 %v1479
    %4141 = vmatprep.subr.mxu0 %v1484
    %4142 = vmatpush1.msra.mxu0 %v1483
    %4143 = vmatprep.subr.mxu0 %v1488
    %4144 = vmatpush1.msra.mxu0 %v1487
    %4145 = vmatprep.subr.mxu0 %v1492
    %4146 = vmatpush1.msra.mxu0 %v1491
    %4147 = vmatprep.subr.mxu0 %v1496
    %4148 = vmatpush1.msra.mxu0 %v1495
    %4149 = vmatprep.subr.mxu0 %v1500
    %4150 = vmatpush1.msra.mxu0 %v1499
    %4151 = vmatprep.subr.mxu0 %v1504
    %4152 = vmatpush1.msra.mxu0 %v1503
    %4153 = vmatprep.subr.mxu0 %v1508
    %4154 = vmatpush1.msra.mxu0 %v1507
    %4155 = vmatprep.subr.mxu0 %v1512
    %4156 = vmatpush1.msra.mxu0 %v1511
    %4157 = vmatprep.subr.mxu0 %v1516
    %4158 = vmatpush1.msra.mxu0 %v1515
    %4159 = vmatprep.mubr.f32.mxu0 %v3920
    %4160 = vmatmul.mubr.f32.gmra.mrb[0].mxu0 %v4094
    %v4161 = vpop.f32.mrb[0].mxu0
    %v4162 = vadd.f32 %v1524, %v4161
    %v4163 = vpop.f32.mrb[0].mxu0
    %v4164 = vadd.f32 %v1528, %v4163
    %4165 = vdwg.mxu0
    %4166 = vmatprep.subr.mxu0 %v1394
    %4167 = vmatpush1.msra.mxu0 %v1393
    %4168 = vmatprep.subr.mxu0 %v1398
    %4169 = vmatpush1.msra.mxu0 %v1397
    %4170 = vmatprep.subr.mxu0 %v1402
    %4171 = vmatpush1.msra.mxu0 %v1401
    %4172 = vmatprep.subr.mxu0 %v1406
    %4173 = vmatpush1.msra.mxu0 %v1405
    %4174 = vmatprep.subr.mxu0 %v1410
    %4175 = vmatpush1.msra.mxu0 %v1409
    %4176 = vmatprep.subr.mxu0 %v1414
    %4177 = vmatpush1.msra.mxu0 %v1413
    %4178 = vmatprep.subr.mxu0 %v1418
    %4179 = vmatpush1.msra.mxu0 %v1417
    %4180 = vmatprep.subr.mxu0 %v1422
    %4181 = vmatpush1.msra.mxu0 %v1421
    %4182 = vmatprep.subr.mxu0 %v1426
    %4183 = vmatpush1.msra.mxu0 %v1425
    %4184 = vmatprep.subr.mxu0 %v1430
    %4185 = vmatpush1.msra.mxu0 %v1429
    %4186 = vmatprep.subr.mxu0 %v1434
    %4187 = vmatpush1.msra.mxu0 %v1433
    %4188 = vmatprep.subr.mxu0 %v1438
    %4189 = vmatpush1.msra.mxu0 %v1437
    %4190 = vmatprep.subr.mxu0 %v1442
    %4191 = vmatpush1.msra.mxu0 %v1441
    %4192 = vmatprep.subr.mxu0 %v1446
    %4193 = vmatpush1.msra.mxu0 %v1445
    %4194 = vmatprep.subr.mxu0 %v1450
    %4195 = vmatpush1.msra.mxu0 %v1449
    %4196 = vmatprep.subr.mxu0 %v1454
    %4197 = vmatpush1.msra.mxu0 %v1453
    %4198 = vmatprep.subr.mxu0 %v1458
    %4199 = vmatpush1.msra.mxu0 %v1457
    %4200 = vmatprep.subr.mxu0 %v1462
    %4201 = vmatpush1.msra.mxu0 %v1461
    %4202 = vmatprep.subr.mxu0 %v1466
    %4203 = vmatpush1.msra.mxu0 %v1465
    %4204 = vmatprep.subr.mxu0 %v1470
    %4205 = vmatpush1.msra.mxu0 %v1469
    %4206 = vmatprep.subr.mxu0 %v1474
    %4207 = vmatpush1.msra.mxu0 %v1473
    %4208 = vmatprep.subr.mxu0 %v1478
    %4209 = vmatpush1.msra.mxu0 %v1477
    %4210 = vmatprep.subr.mxu0 %v1482
    %4211 = vmatpush1.msra.mxu0 %v1481
    %4212 = vmatprep.subr.mxu0 %v1486
    %4213 = vmatpush1.msra.mxu0 %v1485
    %4214 = vmatprep.subr.mxu0 %v1490
    %4215 = vmatpush1.msra.mxu0 %v1489
    %4216 = vmatprep.subr.mxu0 %v1494
    %4217 = vmatpush1.msra.mxu0 %v1493
    %4218 = vmatprep.subr.mxu0 %v1498
    %4219 = vmatpush1.msra.mxu0 %v1497
    %4220 = vmatprep.subr.mxu0 %v1502
    %4221 = vmatpush1.msra.mxu0 %v1501
    %4222 = vmatprep.subr.mxu0 %v1506
    %4223 = vmatpush1.msra.mxu0 %v1505
    %4224 = vmatprep.subr.mxu0 %v1510
    %4225 = vmatpush1.msra.mxu0 %v1509
    %4226 = vmatprep.subr.mxu0 %v1514
    %4227 = vmatpush1.msra.mxu0 %v1513
    %4228 = vmatprep.subr.mxu0 %v1518
    %4229 = vmatpush1.msra.mxu0 %v1517
    %4230 = vmatprep.mubr.f32.mxu0 %v3920
    %4231 = vmatmul.mubr.f32.gmra.mrb[0].mxu0 %v4094
    %v4232 = vpop.f32.mrb[0].mxu0
    %v4233 = vadd.f32 %v1532, %v4232
    %v4234 = vpop.f32.mrb[0].mxu0
    %v4235 = vadd.f32 %v1536, %v4234
    %4236 = vdwg.mxu0
    %v4237 = vxor.u32 %v4162, 2147483648
    %v4238 = vxor.u32 %v4164, 2147483648
    %v4239 = vxor.u32 %v4233, 2147483648
    %v4240 = vmul.f32 %v4237, 1.442695
    %v4241 = vpow.pop %v4240
    %v4242 = vmul.f32 %v4238, 1.442695
    %v4243 = vpow.pop %v4242
    %v4244 = vmul.f32 %v4239, 1.442695
    %v4245 = vpow.pop %v4244
    %v4246 = vadd.f32 %v4241, 1.0
    %v4247 = vadd.f32 %v4243, 1.0
    %v4248 = vadd.f32 %v4245, 1.0
    %v4249 = vrcp.pop %v4246
    %v4250 = vmul.f32 1.0, %v4249
    %v4251 = vrcp.pop %v4247
    %v4252 = vmul.f32 1.0, %v4251
    %v4253 = vrcp.pop %v4248
    %v4254 = vmul.f32 1.0, %v4253
    %v4255 = vtanh.pop %v4235
    %v4256 = vmul.f32 %v4252, %v3918
    %v4257 = vmul.f32 %v4250, %v4255
    %v4258 = vadd.f32 %v4256, %v4257
    %v4259 = vtanh.pop %v4258
    %v4260 = vmul.f32 %v4254, %v4259
    %v4261 = vld [vmem:[%s6] sm:$0xff]
    %v4262 = vld [vmem:[%s6 + $0x8] sm:$0xff]
    %v4263 = vld [vmem:[%s6 + $0x10] sm:$0xff]
    %v4264 = vld [vmem:[%s6 + $0x18] sm:$0xff]
    %v4265 = vld [vmem:[%s6 + $0x20] sm:$0xff]
    %v4266 = vld [vmem:[%s6 + $0x28] sm:$0xff]
    %v4267 = vld [vmem:[%s6 + $0x30] sm:$0xff]
    %v4268 = vld [vmem:[%s6 + $0x38] sm:$0xff]
    %v4269 = vld [vmem:[%s6 + $0x40] sm:$0xff]
    %v4270 = vld [vmem:[%s6 + $0x48] sm:$0xff]
    %v4271 = vld [vmem:[%s6 + $0x50] sm:$0xff]
    %v4272 = vld [vmem:[%s6 + $0x58] sm:$0xff]
    %v4273 = vld [vmem:[%s6 + $0x60] sm:$0xff]
    %v4274 = vld [vmem:[%s6 + $0x68] sm:$0xff]
    %v4275 = vld [vmem:[%s6 + $0x70] sm:$0xff]
    %v4276 = vld [vmem:[%s6 + $0x78] sm:$0xff]
    %v4277 = vld [vmem:[%s7] sm:$0x1]
    %v4279 = vlaneseq
    %v4280 = vshrl.u32 %v4279, 7
    %v4281 = vsub.s32 0, %v4280
    %v4282 = vrot.slane %v4277, %v4281
    %4284 = vmatprep.subr.mxu0 0.0
    %4285 = vmatpush1.msra.mxu0 %v4261
    %4286 = vmatprep.subr.mxu0 0.0
    %4287 = vmatpush1.msra.mxu0 %v4262
    %4288 = vmatprep.subr.mxu0 0.0
    %4289 = vmatpush1.msra.mxu0 %v4263
    %4290 = vmatprep.subr.mxu0 0.0
    %4291 = vmatpush1.msra.mxu0 %v4264
    %4292 = vmatprep.subr.mxu0 0.0
    %4293 = vmatpush1.msra.mxu0 %v4265
    %4294 = vmatprep.subr.mxu0 0.0
    %4295 = vmatpush1.msra.mxu0 %v4266
    %4296 = vmatprep.subr.mxu0 0.0
    %4297 = vmatpush1.msra.mxu0 %v4267
    %4298 = vmatprep.subr.mxu0 0.0
    %4299 = vmatpush1.msra.mxu0 %v4268
    %4300 = vmatprep.subr.mxu0 0.0
    %4301 = vmatpush1.msra.mxu0 %v4269
    %4302 = vmatprep.subr.mxu0 0.0
    %4303 = vmatpush1.msra.mxu0 %v4270
    %4304 = vmatprep.subr.mxu0 0.0
    %4305 = vmatpush1.msra.mxu0 %v4271
    %4306 = vmatprep.subr.mxu0 0.0
    %4307 = vmatpush1.msra.mxu0 %v4272
    %4308 = vmatprep.subr.mxu0 0.0
    %4309 = vmatpush1.msra.mxu0 %v4273
    %4310 = vmatprep.subr.mxu0 0.0
    %4311 = vmatpush1.msra.mxu0 %v4274
    %4312 = vmatprep.subr.mxu0 0.0
    %4313 = vmatpush1.msra.mxu0 %v4275
    %4314 = vmatprep.subr.mxu0 0.0
    %4315 = vmatpush1.msra.mxu0 %v4276
    %4316 = vmatprep.subr.mxu0 0.0
    %4317 = vmatpush1.msra.mxu0 0.0
    %4318 = vmatprep.subr.mxu0 0.0
    %4319 = vmatpush1.msra.mxu0 0.0
    %4320 = vmatprep.subr.mxu0 0.0
    %4321 = vmatpush1.msra.mxu0 0.0
    %4322 = vmatprep.subr.mxu0 0.0
    %4323 = vmatpush1.msra.mxu0 0.0
    %4324 = vmatprep.subr.mxu0 0.0
    %4325 = vmatpush1.msra.mxu0 0.0
    %4326 = vmatprep.subr.mxu0 0.0
    %4327 = vmatpush1.msra.mxu0 0.0
    %4328 = vmatprep.subr.mxu0 0.0
    %4329 = vmatpush1.msra.mxu0 0.0
    %4330 = vmatprep.subr.mxu0 0.0
    %4331 = vmatpush1.msra.mxu0 0.0
    %4332 = vmatprep.subr.mxu0 0.0
    %4333 = vmatpush1.msra.mxu0 0.0
    %4334 = vmatprep.subr.mxu0 0.0
    %4335 = vmatpush1.msra.mxu0 0.0
    %4336 = vmatprep.subr.mxu0 0.0
    %4337 = vmatpush1.msra.mxu0 0.0
    %4338 = vmatprep.subr.mxu0 0.0
    %4339 = vmatpush1.msra.mxu0 0.0
    %4340 = vmatprep.subr.mxu0 0.0
    %4341 = vmatpush1.msra.mxu0 0.0
    %4342 = vmatprep.subr.mxu0 0.0
    %4343 = vmatpush1.msra.mxu0 0.0
    %4344 = vmatprep.subr.mxu0 0.0
    %4345 = vmatpush1.msra.mxu0 0.0
    %4346 = vmatprep.subr.mxu0 0.0
    %4347 = vmatpush1.msra.mxu0 0.0
    %4348 = vmatprep.mubr.f32.mxu0 0.0
    %4349 = vmatmul.mubr.f32.gmra.mrb[0].mxu0 %v4260
    %v4350 = vpop.f32.mrb[0].mxu0
    %v4351 = vadd.f32 %v4282, %v4350
    %v4352 = vpop.f32.mrb[0].mxu0
    %4353 = vdwg.mxu0
    %4354 = vst [vmem:[%s8] sm:$0xff] %v4351
    // Predicated region
    $region50: #{nap_lstm_forward.1} parent=1 // pred_check
      _
    $region51: #{nap_lstm_forward.1} parent=1 // pred_check_branch
      %4356 = sbr.rel (0) target = $region53
    $region52: #{nap_lstm_forward.1} parent=1 // pred_region
      _
    $region53: #{nap_lstm_forward.1} parent=1 // pred_fallthru
      _
    // Predicated region
    $region54: #{nap_lstm_forward.1} parent=1 // pred_check
      _
    $region55: #{nap_lstm_forward.1} parent=1 // pred_check_branch
      %4358 = sbr.rel (0) target = $region57
    $region56: #{nap_lstm_forward.1} parent=1 // pred_region
      _
    $region57: #{nap_lstm_forward.1} parent=1 // pred_fallthru
      _
    %4359 = vsyncpa [#allocation4], 1
    %4360 = vsyncpa [#allocation6], 1
    %4361 = vsyncpa [#allocation9], 1

</llo_original>
